<compile_context>
chip_gen: v7x
topology: tpu7x:2x2x1
jax: 0.10.0
libtpu: 0.0.40
codegen_flags: <defaults>
</compile_context>

<pallas_src>
import jax
import jax.numpy as jnp
from jax.experimental import pallas as pl
from jax.experimental.pallas import tpu as pltpu

IMG_SHAPE = (1, 28, 28)
IN_DIM = 1 * 28 * 28        # 784
K_PAD = 896                 # 784 padded up to a multiple of 128 lanes
H1 = 512
H2 = 256
OUT_DIM = 1


def _leaky_relu(x, slope=0.2):
    # max(x, 0.2*x): 2 VALU ops per vreg instead of cmp+mul+select.
    return jnp.maximum(x, slope * x)


def _choose_tile_b(b):
    """Batch-tile size: 256-512 rows, >=2 grid steps once the batch allows it."""
    if b <= 256:
        return -(-b // 8) * 8      # single tile, rounded to sublane multiple
    if b <= 1024:
        return 256                 # 2-4 steps -> both v7x TCs stay busy
    return 512                     # large batches: bigger tile, still >=3 steps


def discriminator_kernel(x_ref, w1_ref, b1_ref, w2_ref, b2_ref, w3_ref, b3_ref,
                         o_ref):
    """One batch tile of the MLP.

    x_ref : (TILE_B, 896) bf16   (columns 784..895 are zero padding)
    w1    : (896, 512) bf16,  b1 : (1, 512) f32   (rows 784..895 are zeros)
    w2    : (512, 256) bf16,  b2 : (1, 256) f32
    w3    : (1, 256)   f32,   b3 : (1, 1)   f32   (torch (out, in) layout)
    o_ref : (TILE_B, 1) f32
    """
    x = x_ref[...]                                                  # bf16

    # Layer 1: bf16 MXU matmul, f32 accumulation; activation math in f32.
    h1 = jnp.dot(x, w1_ref[...], preferred_element_type=jnp.float32)
    h1 = _leaky_relu(h1 + b1_ref[...])                              # f32

    # Layer 2.
    h2 = jnp.dot(h1.astype(jnp.bfloat16), w2_ref[...],
                 preferred_element_type=jnp.float32)
    h2 = _leaky_relu(h2 + b2_ref[...])                              # f32

    # Layer 3: N=1 output -> VPU multiply + cross-lane reduce (skip the MXU).
    logits = jnp.sum(h2 * w3_ref[...], axis=-1, keepdims=True) + b3_ref[...]

    o_ref[...] = jax.nn.sigmoid(logits)


def discriminator_forward(img, params, tile_b=None):
    """img: (B, 1, 28, 28) -> validity: (B, 1) float32."""
    w1, b1, w2, b2, w3, b3 = params

    b = img.shape[0]
    # torch .view(B, -1) on NCHW == row-major reshape.
    x = img.reshape(b, IN_DIM).astype(jnp.bfloat16)

    if tile_b is None:
        tile_b = _choose_tile_b(b)
    b_pad = -(-b // tile_b) * tile_b

    # Single pad: batch rows up to a tile multiple, K columns 784 -> 896.
    x = jnp.pad(x, ((0, b_pad - b), (0, K_PAD - IN_DIM)))
    grid = (b_pad // tile_b,)

    resident = lambda shape: pl.BlockSpec(shape, lambda i: (0,) * len(shape))

    out = pl.pallas_call(
        discriminator_kernel,
        out_shape=jax.ShapeDtypeStruct((b_pad, OUT_DIM), jnp.float32),
        grid=grid,
        in_specs=[
            pl.BlockSpec((tile_b, K_PAD), lambda i: (i, 0)),    # x tile
            resident(w1.shape), resident(b1.shape),             # weights stay
            resident(w2.shape), resident(b2.shape),             # VMEM-resident
            resident(w3.shape), resident(b3.shape),
        ],
        out_specs=pl.BlockSpec((tile_b, OUT_DIM), lambda i: (i, 0)),
        compiler_params=pltpu.CompilerParams(
            dimension_semantics=("parallel",)),
    )(x, w1, b1, w2, b2, w3, b3)

    return out[:b]


def init_params(key):
    """torch.nn.Linear default init: U(-1/sqrt(fan_in), 1/sqrt(fan_in)).

    w1/w2 stored transposed relative to torch ((in, out)); w1's K dim is
    zero-padded 784 -> 896 once here.  w3 stored as torch's (out, in) = (1,256)
    and kept in f32 (cast hoisted out of the kernel).  Biases are f32.
    """
    def linear(k, fan_in, fan_out, transpose=True):
        kw, kb = jax.random.split(k)
        bound = 1.0 / jnp.sqrt(fan_in)
        shape = (fan_in, fan_out) if transpose else (fan_out, fan_in)
        w = jax.random.uniform(kw, shape, jnp.float32, -bound, bound)
        b = jax.random.uniform(kb, (1, fan_out), jnp.float32, -bound, bound)
        return w, b

    k1, k2, k3 = jax.random.split(key, 3)
    w1, b1 = linear(k1, IN_DIM, H1)
    w1 = jnp.pad(w1, ((0, K_PAD - IN_DIM), (0, 0)))      # (896, 512), zero rows
    w2, b2 = linear(k2, H1, H2)
    w3, b3 = linear(k3, H2, OUT_DIM, transpose=False)     # (1, 256), stays f32
    return (w1.astype(jnp.bfloat16), b1,
            w2.astype(jnp.bfloat16), b2,
            w3, b3)


def reference_forward(img, params):
    """Pure-JAX reference using identical dtype policy."""
    w1, b1, w2, b2, w3, b3 = params
    b = img.shape[0]
    x = img.reshape(b, IN_DIM).astype(jnp.bfloat16)
    x = jnp.pad(x, ((0, 0), (0, K_PAD - IN_DIM)))
    h1 = _leaky_relu(jnp.dot(x, w1, preferred_element_type=jnp.float32) + b1)
    h2 = _leaky_relu(jnp.dot(h1.astype(jnp.bfloat16), w2,
                             preferred_element_type=jnp.float32) + b2)
    logits = jnp.sum(h2 * w3, axis=-1, keepdims=True) + b3
    return jax.nn.sigmoid(logits)


if __name__ == "__main__":
    key = jax.random.PRNGKey(0)
    k_params, k_img = jax.random.split(key)

    params = init_params(k_params)

    # 384 rows -> tile_b=256, padded to 512, 2 grid steps (exercises tiling,
    # batch padding, and v7x's two-TensorCore sharding path).
    batch = 384
    img = jax.random.normal(k_img, (batch,) + IMG_SHAPE, dtype=jnp.float32)

    out = discriminator_forward(img, params)
    out = jax.block_until_ready(out)

    ref = reference_forward(img, params)
    assert out.shape == (batch, OUT_DIM), out.shape
    assert jnp.allclose(out, ref, atol=2e-3, rtol=2e-3), (
        f"max abs err {jnp.max(jnp.abs(out - ref))}")

    print("KERNEL_OK")
</pallas_src>

<mosaic_0001>
module attributes {stable_mosaic.version = 11 : i64} {
  func.func @discriminator_kernel(%arg0: i32, %arg1: memref<256x896xbf16, #tpu.memory_space<vmem>>, %arg2: memref<896x512xbf16, #tpu.memory_space<vmem>>, %arg3: memref<1x512xf32, #tpu.memory_space<vmem>>, %arg4: memref<512x256xbf16, #tpu.memory_space<vmem>>, %arg5: memref<1x256xf32, #tpu.memory_space<vmem>>, %arg6: memref<1x256xf32, #tpu.memory_space<vmem>>, %arg7: memref<1x1xf32, #tpu.memory_space<vmem>>, %arg8: memref<256x1xf32, #tpu.memory_space<vmem>>) attributes {dimension_semantics = [#tpu.dimension_semantics<parallel>], iteration_bounds = array<i64: 2>, scalar_prefetch = 0 : i64, scratch_operands = 0 : i64, tpu.core_type = #tpu.core_type<tc>, window_params = [{transform_indices = @transform_0, window_bounds = array<i64: 256, 896>}, {pipeline_mode = #tpu.pipeline_mode<synchronous>, transform_indices = @transform_1, window_bounds = array<i64: 896, 512>}, {pipeline_mode = #tpu.pipeline_mode<synchronous>, transform_indices = @transform_2, window_bounds = array<i64: 1, 512>}, {pipeline_mode = #tpu.pipeline_mode<synchronous>, transform_indices = @transform_3, window_bounds = array<i64: 512, 256>}, {pipeline_mode = #tpu.pipeline_mode<synchronous>, transform_indices = @transform_4, window_bounds = array<i64: 1, 256>}, {pipeline_mode = #tpu.pipeline_mode<synchronous>, transform_indices = @transform_5, window_bounds = array<i64: 1, 256>}, {pipeline_mode = #tpu.pipeline_mode<synchronous>, transform_indices = @transform_6, window_bounds = array<i64: 1, 1>}, {transform_indices = @transform_7, window_bounds = array<i64: 256, 1>}]} {
    %c0 = arith.constant 0 : index
    %c0_0 = arith.constant 0 : index
    %0 = vector.load %arg1[%c0, %c0_0] : memref<256x896xbf16, #tpu.memory_space<vmem>>, vector<256x896xbf16>
    %c0_1 = arith.constant 0 : index
    %c0_2 = arith.constant 0 : index
    %1 = vector.load %arg2[%c0_1, %c0_2] : memref<896x512xbf16, #tpu.memory_space<vmem>>, vector<896x512xbf16>
    %cst = arith.constant dense<0.000000e+00> : vector<256x512xf32>
    %2 = tpu.matmul %0, %1, %cst {dimension_numbers = #tpu.dot_dimension_numbers<[1], [0], [0], [1], [0, 0, 1, 1], [], []>} : vector<256x896xbf16>, vector<896x512xbf16>, vector<256x512xf32> -> vector<256x512xf32>
    %c0_3 = arith.constant 0 : index
    %c0_4 = arith.constant 0 : index
    %3 = vector.load %arg3[%c0_3, %c0_4] : memref<1x512xf32, #tpu.memory_space<vmem>>, vector<1x512xf32>
    %4 = vector.broadcast %3 : vector<1x512xf32> to vector<256x512xf32>
    %5 = arith.addf %2, %4 : vector<256x512xf32>
    %cst_5 = arith.constant 2.000000e-01 : f32
    %6 = vector.broadcast %cst_5 : f32 to vector<256x512xf32>
    %7 = arith.mulf %6, %5 : vector<256x512xf32>
    %8 = arith.maximumf %5, %7 : vector<256x512xf32>
    %9 = arith.truncf %8 : vector<256x512xf32> to vector<256x512xbf16>
    %c0_6 = arith.constant 0 : index
    %c0_7 = arith.constant 0 : index
    %10 = vector.load %arg4[%c0_6, %c0_7] : memref<512x256xbf16, #tpu.memory_space<vmem>>, vector<512x256xbf16>
    %cst_8 = arith.constant dense<0.000000e+00> : vector<256x256xf32>
    %11 = tpu.matmul %9, %10, %cst_8 {dimension_numbers = #tpu.dot_dimension_numbers<[1], [0], [0], [1], [0, 0, 1, 1], [], []>} : vector<256x512xbf16>, vector<512x256xbf16>, vector<256x256xf32> -> vector<256x256xf32>
    %c0_9 = arith.constant 0 : index
    %c0_10 = arith.constant 0 : index
    %12 = vector.load %arg5[%c0_9, %c0_10] : memref<1x256xf32, #tpu.memory_space<vmem>>, vector<1x256xf32>
    %13 = vector.broadcast %12 : vector<1x256xf32> to vector<256x256xf32>
    %14 = arith.addf %11, %13 : vector<256x256xf32>
    %cst_11 = arith.constant 2.000000e-01 : f32
    %15 = vector.broadcast %cst_11 : f32 to vector<256x256xf32>
    %16 = arith.mulf %15, %14 : vector<256x256xf32>
    %17 = arith.maximumf %14, %16 : vector<256x256xf32>
    %c0_12 = arith.constant 0 : index
    %c0_13 = arith.constant 0 : index
    %18 = vector.load %arg6[%c0_12, %c0_13] : memref<1x256xf32, #tpu.memory_space<vmem>>, vector<1x256xf32>
    %19 = vector.broadcast %18 : vector<1x256xf32> to vector<256x256xf32>
    %20 = arith.mulf %17, %19 : vector<256x256xf32>
    %cst_14 = arith.constant dense<0.000000e+00> : vector<256xf32>
    %21 = vector.multi_reduction <add>, %20, %cst_14 [1] : vector<256x256xf32> to vector<256xf32>
    %22 = vector.shape_cast %21 : vector<256xf32> to vector<256x1xf32>
    %c0_15 = arith.constant 0 : index
    %c0_16 = arith.constant 0 : index
    %23 = vector.load %arg7[%c0_15, %c0_16] : memref<1x1xf32, #tpu.memory_space<vmem>>, vector<1x1xf32>
    %24 = vector.broadcast %23 : vector<1x1xf32> to vector<256x1xf32>
    %25 = arith.addf %22, %24 : vector<256x1xf32>
    %26 = arith.negf %25 : vector<256x1xf32>
    %27 = math.exp %26 : vector<256x1xf32>
    %cst_17 = arith.constant 1.000000e+00 : f32
    %28 = vector.broadcast %cst_17 : f32 to vector<256x1xf32>
    %29 = arith.addf %28, %27 : vector<256x1xf32>
    %30 = arith.divf %28, %29 : vector<256x1xf32>
    %c0_18 = arith.constant 0 : index
    %c0_19 = arith.constant 0 : index
    %31 = vector.load %arg8[%c0_18, %c0_19] : memref<256x1xf32, #tpu.memory_space<vmem>>, vector<256x1xf32>
    tpu.vector_store %arg8[%c0_18, %c0_19], %30 {strides = array<i32>} : memref<256x1xf32, #tpu.memory_space<vmem>>, vector<256x1xf32>,
    return
  }
  func.func @transform_0(%arg0: i32) -> (i32, i32) {
    %c0_i32 = arith.constant 0 : i32
    %c0_i32_0 = arith.constant 0 : i32
    return %arg0, %c0_i32 : i32, i32
  }
  func.func @transform_1(%arg0: i32) -> (i32, i32) {
    %c0_i32 = arith.constant 0 : i32
    %c0_i32_0 = arith.constant 0 : i32
    %c0_i32_1 = arith.constant 0 : i32
    return %c0_i32, %c0_i32_0 : i32, i32
  }
  func.func @transform_2(%arg0: i32) -> (i32, i32) {
    %c0_i32 = arith.constant 0 : i32
    %c0_i32_0 = arith.constant 0 : i32
    %c0_i32_1 = arith.constant 0 : i32
    return %c0_i32, %c0_i32_0 : i32, i32
  }
  func.func @transform_3(%arg0: i32) -> (i32, i32) {
    %c0_i32 = arith.constant 0 : i32
    %c0_i32_0 = arith.constant 0 : i32
    %c0_i32_1 = arith.constant 0 : i32
    return %c0_i32, %c0_i32_0 : i32, i32
  }
  func.func @transform_4(%arg0: i32) -> (i32, i32) {
    %c0_i32 = arith.constant 0 : i32
    %c0_i32_0 = arith.constant 0 : i32
    %c0_i32_1 = arith.constant 0 : i32
    return %c0_i32, %c0_i32_0 : i32, i32
  }
  func.func @transform_5(%arg0: i32) -> (i32, i32) {
    %c0_i32 = arith.constant 0 : i32
    %c0_i32_0 = arith.constant 0 : i32
    %c0_i32_1 = arith.constant 0 : i32
    return %c0_i32, %c0_i32_0 : i32, i32
  }
  func.func @transform_6(%arg0: i32) -> (i32, i32) {
    %c0_i32 = arith.constant 0 : i32
    %c0_i32_0 = arith.constant 0 : i32
    %c0_i32_1 = arith.constant 0 : i32
    return %c0_i32, %c0_i32_0 : i32, i32
  }
  func.func @transform_7(%arg0: i32) -> (i32, i32) {
    %c0_i32 = arith.constant 0 : i32
    %c0_i32_0 = arith.constant 0 : i32
    return %arg0, %c0_i32 : i32, i32
  }
}

</mosaic_0001>

<llo_original>
// kernel: tpu_custom_call.1
$region0: #{tpu_custom_call.1}
  #allocation0 [shape = 'u32[]', space=smem, size = 0x4, offset = 0x4, fixed_abs, tag = 'smem constant byte address 0x4 - core index']
  #allocation1 [shape = 'u32[144,128]{1,0:T(1,128)}', space=vmem, size = 0x12000, scoped, tag = 'internal scratch']
  #allocation2 [shape = 'f32[1,1]{1,0:T(1,128)S(1)}', space=vmem, size = 0x200, scoped, tag = 'scoped memory for tpu_custom_call.1']
  %s0 = inlined_call_operand.hbm [shape: bf16[512,896], index: 0, kind: input, shape index: {}]
  %s1 = inlined_call_operand.hbm [shape: bf16[896,512], index: 1, kind: input, shape index: {}]
  %s2 = inlined_call_operand.vmem [shape: f32[1,512], index: 2, kind: input, shape index: {}]
  %s3 = inlined_call_operand.hbm [shape: bf16[512,256], index: 3, kind: input, shape index: {}]
  %s4 = inlined_call_operand.vmem [shape: f32[1,256], index: 4, kind: input, shape index: {}]
  %s5 = inlined_call_operand.vmem [shape: f32[1,256], index: 5, kind: input, shape index: {}]
  %s6 = inlined_call_operand.<no memory space> [shape: f32[1,1], index: 6, kind: input, shape index: {}]
  %s7 = inlined_call_operand.vmem [shape: f32[512,1], index: 7, kind: output, shape index: {}]
  %s8 = sld [smem:[#allocation0]]
  $region73: #{tpu_custom_call.1} parent=0
    _
  %s10 = ssub.s32 1, %s8
  %s11 = scalar_select 0, %s10, %s8
  %v12 = vstv %s6
  %13 = vst [vmem:[#allocation2] sm:$0x1] %v12
  $region1: #{tpu_custom_call.1} parent=0
    #allocation3 [shape = 'u8[917504]{0}', space=vmem, size = 0xe0000, scoped, tag = 'input window, operand 0']
    #allocation4 [shape = 's32[2]{0}', space=sflag, size = 0x8, scoped, tag = 'scoped memory for tpu_custom_call.1']
    #allocation5 [shape = 'u8[917504]{0}', space=vmem, size = 0xe0000, scoped, tag = 'input window, operand 1, single buffered']
    #allocation6 [shape = 's32[1]{0}', space=sflag, size = 0x4, scoped, tag = 'scoped memory for tpu_custom_call.1']
    #allocation7 [shape = 'u8[262144]{0}', space=vmem, size = 0x40000, scoped, tag = 'input window, operand 3, single buffered']
    %14 = vsyncpa [#allocation4], 0
    %s15 = scalar_lea.sflag [#allocation4], 1
    %16 = vsyncpa %s15, 0
    %17 = vsyncpa [#allocation6], 0
    loop: start=0, step=1, limit=4
    $region2: #{tpu_custom_call.1} parent=1 // loop_pre_header
      _
    $region3: #{tpu_custom_call.1} parent=1 // loop_header
      %s19 = sphi 0, %s23
      %p20 = scmp.ge.s32.totalorder %s19, 4
      %s29 = sphi 0, %s31
      %s32 = sphi 0, %s29
      %s33 = sphi 0, %s32
      %s49 = sphi 0, %s33
      %s53 = sphi 0, %s53
      %s55 = sphi 0, %s53
      %s56 = sphi 0, %s55
      %s70 = sphi 0, %s56
      %s74 = sphi 0, %s74
      %s76 = sphi 0, %s74
      %s77 = sphi 0, %s76
      %s91 = sphi 0, %s77
      %s95 = sphi 0, %s95
      %s97 = sphi 0, %s95
      %s98 = sphi 0, %s97
      %s112 = sphi 0, %s98
      %s116 = sphi 0, %s116
      %s118 = sphi 0, %s116
      %s119 = sphi 0, %s118
      %s133 = sphi 0, %s119
      %s137 = sphi 0, %s137
      %s139 = sphi 0, %s137
      %s140 = sphi 0, %s139
      %s154 = sphi 0, %s140
      %s158 = sphi 0, %s158
      %s160 = sphi 0, %s158
      %s161 = sphi 0, %s160
      %s175 = sphi 0, %s161
      %s181 = sphi 0, %s183
      %s184 = sphi 0, %s181
      %s185 = sphi 0, %s184
      %s201 = sphi 0, %s185
    $region4: #{tpu_custom_call.1} parent=1 // loop_header_branch
      %22 = sbr.rel (%p20) target = $region8
    $region5: #{tpu_custom_call.1} parent=1 // loop_body
      %s24 = ssub.s32 %s19, 1
      %s25 = ssub.s32 %s19, 2
      %s26 = sadd.s32 %s19, 1
      %s27 = ssub.s32 %s19, %s26
      %p28 = scmp.eq.s32.totalorder %s27, 0
      %s30 = sadd.s32 %s29, 1
      %s31 = scalar_select %p28, %s29, %s30
      %p34 = pneg %p28
      %p35 = scmp.eq.s32.totalorder %s19, 1
      %p36 = por %p34, %p35
      %p37 = scmp.ne.s32.totalorder %s29, %s32
      %p38 = scmp.eq.s32.totalorder %s19, 0
      %p39 = por %p37, %p38
      %p40 = scmp.ne.s32.totalorder %s29, %s32
      %p41 = scmp.eq.s32.totalorder %s24, 1
      %p42 = por %p40, %p41
      %p43 = scmp.ne.s32.totalorder %s32, %s33
      %p44 = scmp.eq.s32.totalorder %s24, 0
      %p45 = por %p43, %p44
      %p46 = scmp.ne.s32.totalorder %s32, %s33
      %p47 = scmp.eq.s32.totalorder %s25, 1
      %p48 = por %p46, %p47
      %p50 = scmp.ne.s32.totalorder %s33, %s49
      %p51 = scmp.eq.s32.totalorder %s25, 0
      %p52 = por %p50, %p51
      %s54 = sadd.s32 %s53, 1
      %p57 = scmp.eq.s32.totalorder %s19, 1
      %p58 = scmp.ne.s32.totalorder %s53, %s55
      %p59 = scmp.eq.s32.totalorder %s19, 0
      %p60 = por %p58, %p59
      %p61 = scmp.ne.s32.totalorder %s53, %s55
      %p62 = scmp.eq.s32.totalorder %s24, 1
      %p63 = por %p61, %p62
      %p64 = scmp.ne.s32.totalorder %s55, %s56
      %p65 = scmp.eq.s32.totalorder %s24, 0
      %p66 = por %p64, %p65
      %p67 = scmp.ne.s32.totalorder %s55, %s56
      %p68 = scmp.eq.s32.totalorder %s25, 1
      %p69 = por %p67, %p68
      %p71 = scmp.ne.s32.totalorder %s56, %s70
      %p72 = scmp.eq.s32.totalorder %s25, 0
      %p73 = por %p71, %p72
      %s75 = sadd.s32 %s74, 1
      %p78 = scmp.eq.s32.totalorder %s19, 1
      %p79 = scmp.ne.s32.totalorder %s74, %s76
      %p80 = scmp.eq.s32.totalorder %s19, 0
      %p81 = por %p79, %p80
      %p82 = scmp.ne.s32.totalorder %s74, %s76
      %p83 = scmp.eq.s32.totalorder %s24, 1
      %p84 = por %p82, %p83
      %p85 = scmp.ne.s32.totalorder %s76, %s77
      %p86 = scmp.eq.s32.totalorder %s24, 0
      %p87 = por %p85, %p86
      %p88 = scmp.ne.s32.totalorder %s76, %s77
      %p89 = scmp.eq.s32.totalorder %s25, 1
      %p90 = por %p88, %p89
      %p92 = scmp.ne.s32.totalorder %s77, %s91
      %p93 = scmp.eq.s32.totalorder %s25, 0
      %p94 = por %p92, %p93
      %s96 = sadd.s32 %s95, 1
      %p99 = scmp.eq.s32.totalorder %s19, 1
      %p100 = scmp.ne.s32.totalorder %s95, %s97
      %p101 = scmp.eq.s32.totalorder %s19, 0
      %p102 = por %p100, %p101
      %p103 = scmp.ne.s32.totalorder %s95, %s97
      %p104 = scmp.eq.s32.totalorder %s24, 1
      %p105 = por %p103, %p104
      %p106 = scmp.ne.s32.totalorder %s97, %s98
      %p107 = scmp.eq.s32.totalorder %s24, 0
      %p108 = por %p106, %p107
      %p109 = scmp.ne.s32.totalorder %s97, %s98
      %p110 = scmp.eq.s32.totalorder %s25, 1
      %p111 = por %p109, %p110
      %p113 = scmp.ne.s32.totalorder %s98, %s112
      %p114 = scmp.eq.s32.totalorder %s25, 0
      %p115 = por %p113, %p114
      %s117 = sadd.s32 %s116, 1
      %p120 = scmp.eq.s32.totalorder %s19, 1
      %p121 = scmp.ne.s32.totalorder %s116, %s118
      %p122 = scmp.eq.s32.totalorder %s19, 0
      %p123 = por %p121, %p122
      %p124 = scmp.ne.s32.totalorder %s116, %s118
      %p125 = scmp.eq.s32.totalorder %s24, 1
      %p126 = por %p124, %p125
      %p127 = scmp.ne.s32.totalorder %s118, %s119
      %p128 = scmp.eq.s32.totalorder %s24, 0
      %p129 = por %p127, %p128
      %p130 = scmp.ne.s32.totalorder %s118, %s119
      %p131 = scmp.eq.s32.totalorder %s25, 1
      %p132 = por %p130, %p131
      %p134 = scmp.ne.s32.totalorder %s119, %s133
      %p135 = scmp.eq.s32.totalorder %s25, 0
      %p136 = por %p134, %p135
      %s138 = sadd.s32 %s137, 1
      %p141 = scmp.eq.s32.totalorder %s19, 1
      %p142 = scmp.ne.s32.totalorder %s137, %s139
      %p143 = scmp.eq.s32.totalorder %s19, 0
      %p144 = por %p142, %p143
      %p145 = scmp.ne.s32.totalorder %s137, %s139
      %p146 = scmp.eq.s32.totalorder %s24, 1
      %p147 = por %p145, %p146
      %p148 = scmp.ne.s32.totalorder %s139, %s140
      %p149 = scmp.eq.s32.totalorder %s24, 0
      %p150 = por %p148, %p149
      %p151 = scmp.ne.s32.totalorder %s139, %s140
      %p152 = scmp.eq.s32.totalorder %s25, 1
      %p153 = por %p151, %p152
      %p155 = scmp.ne.s32.totalorder %s140, %s154
      %p156 = scmp.eq.s32.totalorder %s25, 0
      %p157 = por %p155, %p156
      %s159 = sadd.s32 %s158, 1
      %p162 = scmp.eq.s32.totalorder %s19, 1
      %p163 = scmp.ne.s32.totalorder %s158, %s160
      %p164 = scmp.eq.s32.totalorder %s19, 0
      %p165 = por %p163, %p164
      %p166 = scmp.ne.s32.totalorder %s158, %s160
      %p167 = scmp.eq.s32.totalorder %s24, 1
      %p168 = por %p166, %p167
      %p169 = scmp.ne.s32.totalorder %s160, %s161
      %p170 = scmp.eq.s32.totalorder %s24, 0
      %p171 = por %p169, %p170
      %p172 = scmp.ne.s32.totalorder %s160, %s161
      %p173 = scmp.eq.s32.totalorder %s25, 1
      %p174 = por %p172, %p173
      %p176 = scmp.ne.s32.totalorder %s161, %s175
      %p177 = scmp.eq.s32.totalorder %s25, 0
      %p178 = por %p176, %p177
      %s179 = ssub.s32 %s19, %s26
      %p180 = scmp.eq.s32.totalorder %s179, 0
      %s182 = sadd.s32 %s181, 1
      %s183 = scalar_select %p180, %s181, %s182
      %p186 = pneg %p180
      %p187 = scmp.eq.s32.totalorder %s19, 1
      %p188 = por %p186, %p187
      %p189 = scmp.ne.s32.totalorder %s181, %s184
      %p190 = scmp.eq.s32.totalorder %s19, 0
      %p191 = por %p189, %p190
      %p192 = scmp.ne.s32.totalorder %s181, %s184
      %p193 = scmp.eq.s32.totalorder %s24, 1
      %p194 = por %p192, %p193
      %p195 = scmp.ne.s32.totalorder %s184, %s185
      %p196 = scmp.eq.s32.totalorder %s24, 0
      %p197 = por %p195, %p196
      %p198 = scmp.ne.s32.totalorder %s184, %s185
      %p199 = scmp.eq.s32.totalorder %s25, 1
      %p200 = por %p198, %p199
      %p202 = scmp.ne.s32.totalorder %s185, %s201
      %p203 = scmp.eq.s32.totalorder %s25, 0
      %p204 = por %p202, %p203
      %p205 = scmp.le.s32.totalorder 1, %s19
      %p206 = scmp.lt.s32.totalorder %s19, 3
      %p207 = pnand %p205, %p206
      %p208 = pneg %p207
      // Predicated region
      $region9: #{tpu_custom_call.1} parent=5 // pred_check
        _
      $region10: #{tpu_custom_call.1} parent=5 // pred_check_branch
        %210 = sbr.rel (%p207) target = $region12
      $region11: #{tpu_custom_call.1} parent=5 // pred_region
        %s211 = ssub.s32 %s19, 1
        // Predicated region
        $region13: #{tpu_custom_call.1} parent=11 // pred_check
          %p212 = pneg %p66
        $region14: #{tpu_custom_call.1} parent=11 // pred_check_branch
          %214 = sbr.rel (%p212) target = $region16
        $region15: #{tpu_custom_call.1} parent=11 // pred_region
          %s216 = ssub.s32 28672, 28672
          %217 = vsyncadd [#allocation6], %s216
          %s218 = sshll.u32 [#allocation5], 4
          %s219 = int_to_ptr.vmem [resolvable:$true] %s218
          %224 = dma.hbm_to_vmem [thread:$0]  %s1, 28672, %s219, [#allocation6], 256, 256, 16
        $region16: #{tpu_custom_call.1} parent=11 // pred_fallthru
          _
        // Predicated region
        $region17: #{tpu_custom_call.1} parent=11 // pred_check
          %p225 = pneg %p87
        $region18: #{tpu_custom_call.1} parent=11 // pred_check_branch
          %227 = sbr.rel (%p225) target = $region20
        $region19: #{tpu_custom_call.1} parent=11 // pred_region
          _
        $region20: #{tpu_custom_call.1} parent=11 // pred_fallthru
          _
        // Predicated region
        $region21: #{tpu_custom_call.1} parent=11 // pred_check
          %p228 = pneg %p108
        $region22: #{tpu_custom_call.1} parent=11 // pred_check_branch
          %230 = sbr.rel (%p228) target = $region24
        $region23: #{tpu_custom_call.1} parent=11 // pred_region
          %s232 = ssub.s32 8192, 8192
          %233 = vsyncadd [#allocation6], %s232
          %s234 = sshll.u32 [#allocation7], 4
          %s235 = int_to_ptr.vmem [resolvable:$true] %s234
          %240 = dma.hbm_to_vmem [thread:$0]  %s3, 8192, %s235, [#allocation6], 128, 128, 8
        $region24: #{tpu_custom_call.1} parent=11 // pred_fallthru
          _
        // Predicated region
        $region25: #{tpu_custom_call.1} parent=11 // pred_check
          %p241 = pneg %p129
        $region26: #{tpu_custom_call.1} parent=11 // pred_check_branch
          %243 = sbr.rel (%p241) target = $region28
        $region27: #{tpu_custom_call.1} parent=11 // pred_region
          _
        $region28: #{tpu_custom_call.1} parent=11 // pred_fallthru
          _
        // Predicated region
        $region29: #{tpu_custom_call.1} parent=11 // pred_check
          %p244 = pneg %p150
        $region30: #{tpu_custom_call.1} parent=11 // pred_check_branch
          %246 = sbr.rel (%p244) target = $region32
        $region31: #{tpu_custom_call.1} parent=11 // pred_region
          _
        $region32: #{tpu_custom_call.1} parent=11 // pred_fallthru
          _
        // Predicated region
        $region33: #{tpu_custom_call.1} parent=11 // pred_check
          %p247 = pneg %p171
        $region34: #{tpu_custom_call.1} parent=11 // pred_check_branch
          %249 = sbr.rel (%p247) target = $region36
        $region35: #{tpu_custom_call.1} parent=11 // pred_region
          _
        $region36: #{tpu_custom_call.1} parent=11 // pred_fallthru
          _
      $region12: #{tpu_custom_call.1} parent=5 // pred_fallthru
        _
      %p250 = scmp.lt.s32.totalorder %s19, 2
      // Predicated region
      $region37: #{tpu_custom_call.1} parent=5 // pred_check
        %p251 = pneg %p250
      $region38: #{tpu_custom_call.1} parent=5 // pred_check_branch
        %253 = sbr.rel (%p251) target = $region40
      $region39: #{tpu_custom_call.1} parent=5 // pred_region
        // Predicated region
        $region41: #{tpu_custom_call.1} parent=39 // pred_check
          %p254 = pneg %p39
        $region42: #{tpu_custom_call.1} parent=39 // pred_check_branch
          %256 = sbr.rel (%p254) target = $region44
        $region43: #{tpu_custom_call.1} parent=39 // pred_region
          %s257 = sand.u32 %s29, 1
          %s258 = scalar_lea.sflag [#allocation4], %s257
          %s259 = sand.u32 %s29, 1
          %s260 = smul.addr %s259, 896
          %s261 = scalar_lea.vmem [#allocation3], %s260
          %s262 = smul.u32 32, %s19
          %s264 = ssub.s32 14336, 14336
          %265 = vsyncadd %s258, %s264
          %s266 = smul.addr %s262, 7
          %s267 = smul.addr %s266, 64
          %s268 = scalar_lea.hbm %s0, %s267
          %s269 = sshll.u32 %s261, 4
          %s270 = int_to_ptr.vmem [resolvable:$true] %s269
          %275 = dma.hbm_to_vmem [thread:$0]  %s268, 14336, %s270, %s258, 448, 448, 28
        $region44: #{tpu_custom_call.1} parent=39 // pred_fallthru
          _
      $region40: #{tpu_custom_call.1} parent=5 // pred_fallthru
        _
      %p276 = scmp.le.s32.totalorder 1, %s19
      %p277 = scmp.lt.s32.totalorder %s19, 3
      %p278 = pnand %p276, %p277
      %p279 = pneg %p278
      // Predicated region
      $region45: #{tpu_custom_call.1} parent=5 // pred_check
        _
      $region46: #{tpu_custom_call.1} parent=5 // pred_check_branch
        %281 = sbr.rel (%p278) target = $region48
      $region47: #{tpu_custom_call.1} parent=5 // pred_region
        %s282 = ssub.s32 %s19, 1
        %s283 = sand.u32 %s32, 1
        %s284 = scalar_lea.sflag [#allocation4], %s283
        %s285 = sand.u32 %s32, 1
        %s286 = smul.addr %s285, 896
        %s287 = scalar_lea.vmem [#allocation3], %s286
        // Predicated region
        $region49: #{tpu_custom_call.1} parent=47 // pred_check
          %p288 = pneg %p45
        $region50: #{tpu_custom_call.1} parent=47 // pred_check_branch
          %290 = sbr.rel (%p288) target = $region52
        $region51: #{tpu_custom_call.1} parent=47 // pred_region
          %291 = dma.done %s284, 14336
        $region52: #{tpu_custom_call.1} parent=47 // pred_fallthru
          _
        // Predicated region
        $region53: #{tpu_custom_call.1} parent=47 // pred_check
          %p292 = pneg %p66
        $region54: #{tpu_custom_call.1} parent=47 // pred_check_branch
          %294 = sbr.rel (%p292) target = $region56
        $region55: #{tpu_custom_call.1} parent=47 // pred_region
          %295 = dma.done [#allocation6], 28672
        $region56: #{tpu_custom_call.1} parent=47 // pred_fallthru
          _
        // Predicated region
        $region57: #{tpu_custom_call.1} parent=47 // pred_check
          %p296 = pneg %p108
        $region58: #{tpu_custom_call.1} parent=47 // pred_check_branch
          %298 = sbr.rel (%p296) target = $region60
        $region59: #{tpu_custom_call.1} parent=47 // pred_region
          %299 = dma.done [#allocation6], 8192
        $region60: #{tpu_custom_call.1} parent=47 // pred_fallthru
          _
        %s300 = sand.u32 %s32, 1
        %s301 = scalar_lea.sflag [#allocation4], %s300
        %s302 = sand.u32 %s32, 1
        %s303 = smul.addr %s302, 896
        %s304 = scalar_lea.vmem [#allocation3], %s303
        %p305 = pneg %p45
        %p306 = pneg %p42
        %p307 = pneg %p66
        %p308 = pneg %p63
        %p309 = pneg %p87
        %p310 = pneg %p84
        %p311 = pneg %p108
        %p312 = pneg %p105
        %p313 = pneg %p129
        %p314 = pneg %p126
        %p315 = pneg %p150
        %p316 = pneg %p147
        %p317 = pneg %p171
        %p318 = pneg %p168
        %p319 = pneg %p197
        %p320 = pneg %p194
        %s321 = smul.u32 32, %s24
        %p322 = scmp.lt.s32.totalorder %s321, 63
        %s323 = scalar_select %p322, %s321, 63
        %s324 = smul.addr %s323, 8
        %s325 = scalar_lea.vmem %s7, %s324
        %s326 = smul.u32 32, %s24
        %s327 = smul.u32 32, %s24
        %p328 = scmp.lt.s32.totalorder %s327, 63
        %s329 = scalar_select %p328, %s327, 63
        %s330 = smul.addr %s329, 8
        %s331 = scalar_lea.vmem %s7, %s330
        %s332 = smul.u32 32, %s24
        %v334 = vld [vmem:[%s287] sm:$0xff]
        %v335 = vld [vmem:[%s287 + $0x8] sm:$0xff]
        %v336 = vld [vmem:[%s287 + $0x10] sm:$0xff]
        %v337 = vld [vmem:[%s287 + $0x18] sm:$0xf]
        %v338 = vld [vmem:[%s287 + $0x1c] sm:$0xff]
        %v339 = vld [vmem:[%s287 + $0x24] sm:$0xff]
        %v340 = vld [vmem:[%s287 + $0x2c] sm:$0xff]
        %v341 = vld [vmem:[%s287 + $0x34] sm:$0xf]
        %v342 = vld [vmem:[%s287 + $0x38] sm:$0xff]
        %v343 = vld [vmem:[%s287 + $0x40] sm:$0xff]
        %v344 = vld [vmem:[%s287 + $0x48] sm:$0xff]
        %v345 = vld [vmem:[%s287 + $0x50] sm:$0xf]
        %v346 = vld [vmem:[%s287 + $0x54] sm:$0xff]
        %v347 = vld [vmem:[%s287 + $0x5c] sm:$0xff]
        %v348 = vld [vmem:[%s287 + $0x64] sm:$0xff]
        %v349 = vld [vmem:[%s287 + $0x6c] sm:$0xf]
        %v350 = vld [vmem:[%s287 + $0x70] sm:$0xff]
        %v351 = vld [vmem:[%s287 + $0x78] sm:$0xff]
        %v352 = vld [vmem:[%s287 + $0x80] sm:$0xff]
        %v353 = vld [vmem:[%s287 + $0x88] sm:$0xf]
        %v354 = vld [vmem:[%s287 + $0x8c] sm:$0xff]
        %v355 = vld [vmem:[%s287 + $0x94] sm:$0xff]
        %v356 = vld [vmem:[%s287 + $0x9c] sm:$0xff]
        %v357 = vld [vmem:[%s287 + $0xa4] sm:$0xf]
        %v358 = vld [vmem:[%s287 + $0xa8] sm:$0xff]
        %v359 = vld [vmem:[%s287 + $0xb0] sm:$0xff]
        %v360 = vld [vmem:[%s287 + $0xb8] sm:$0xff]
        %v361 = vld [vmem:[%s287 + $0xc0] sm:$0xf]
        %v362 = vld [vmem:[%s287 + $0xc4] sm:$0xff]
        %v363 = vld [vmem:[%s287 + $0xcc] sm:$0xff]
        %v364 = vld [vmem:[%s287 + $0xd4] sm:$0xff]
        %v365 = vld [vmem:[%s287 + $0xdc] sm:$0xf]
        %v366 = vld [vmem:[%s287 + $0xe0] sm:$0xff]
        %v367 = vld [vmem:[%s287 + $0xe8] sm:$0xff]
        %v368 = vld [vmem:[%s287 + $0xf0] sm:$0xff]
        %v369 = vld [vmem:[%s287 + $0xf8] sm:$0xf]
        %v370 = vld [vmem:[%s287 + $0xfc] sm:$0xff]
        %v371 = vld [vmem:[%s287 + $0x104] sm:$0xff]
        %v372 = vld [vmem:[%s287 + $0x10c] sm:$0xff]
        %v373 = vld [vmem:[%s287 + $0x114] sm:$0xf]
        %v374 = vld [vmem:[%s287 + $0x118] sm:$0xff]
        %v375 = vld [vmem:[%s287 + $0x120] sm:$0xff]
        %v376 = vld [vmem:[%s287 + $0x128] sm:$0xff]
        %v377 = vld [vmem:[%s287 + $0x130] sm:$0xf]
        %v378 = vld [vmem:[%s287 + $0x134] sm:$0xff]
        %v379 = vld [vmem:[%s287 + $0x13c] sm:$0xff]
        %v380 = vld [vmem:[%s287 + $0x144] sm:$0xff]
        %v381 = vld [vmem:[%s287 + $0x14c] sm:$0xf]
        %v382 = vld [vmem:[%s287 + $0x150] sm:$0xff]
        %v383 = vld [vmem:[%s287 + $0x158] sm:$0xff]
        %v384 = vld [vmem:[%s287 + $0x160] sm:$0xff]
        %v385 = vld [vmem:[%s287 + $0x168] sm:$0xf]
        %v386 = vld [vmem:[%s287 + $0x16c] sm:$0xff]
        %v387 = vld [vmem:[%s287 + $0x174] sm:$0xff]
        %v388 = vld [vmem:[%s287 + $0x17c] sm:$0xff]
        %v389 = vld [vmem:[%s287 + $0x184] sm:$0xf]
        %v390 = vld [vmem:[%s287 + $0x188] sm:$0xff]
        %v391 = vld [vmem:[%s287 + $0x190] sm:$0xff]
        %v392 = vld [vmem:[%s287 + $0x198] sm:$0xff]
        %v393 = vld [vmem:[%s287 + $0x1a0] sm:$0xf]
        %v394 = vld [vmem:[%s287 + $0x1a4] sm:$0xff]
        %v395 = vld [vmem:[%s287 + $0x1ac] sm:$0xff]
        %v396 = vld [vmem:[%s287 + $0x1b4] sm:$0xff]
        %v397 = vld [vmem:[%s287 + $0x1bc] sm:$0xf]
        %v398 = vld [vmem:[%s287 + $0x1c0] sm:$0xff]
        %v399 = vld [vmem:[%s287 + $0x1c8] sm:$0xff]
        %v400 = vld [vmem:[%s287 + $0x1d0] sm:$0xff]
        %v401 = vld [vmem:[%s287 + $0x1d8] sm:$0xf]
        %v402 = vld [vmem:[%s287 + $0x1dc] sm:$0xff]
        %v403 = vld [vmem:[%s287 + $0x1e4] sm:$0xff]
        %v404 = vld [vmem:[%s287 + $0x1ec] sm:$0xff]
        %v405 = vld [vmem:[%s287 + $0x1f4] sm:$0xf]
        %v406 = vld [vmem:[%s287 + $0x1f8] sm:$0xff]
        %v407 = vld [vmem:[%s287 + $0x200] sm:$0xff]
        %v408 = vld [vmem:[%s287 + $0x208] sm:$0xff]
        %v409 = vld [vmem:[%s287 + $0x210] sm:$0xf]
        %v410 = vld [vmem:[%s287 + $0x214] sm:$0xff]
        %v411 = vld [vmem:[%s287 + $0x21c] sm:$0xff]
        %v412 = vld [vmem:[%s287 + $0x224] sm:$0xff]
        %v413 = vld [vmem:[%s287 + $0x22c] sm:$0xf]
        %v414 = vld [vmem:[%s287 + $0x230] sm:$0xff]
        %v415 = vld [vmem:[%s287 + $0x238] sm:$0xff]
        %v416 = vld [vmem:[%s287 + $0x240] sm:$0xff]
        %v417 = vld [vmem:[%s287 + $0x248] sm:$0xf]
        %v418 = vld [vmem:[%s287 + $0x24c] sm:$0xff]
        %v419 = vld [vmem:[%s287 + $0x254] sm:$0xff]
        %v420 = vld [vmem:[%s287 + $0x25c] sm:$0xff]
        %v421 = vld [vmem:[%s287 + $0x264] sm:$0xf]
        %v422 = vld [vmem:[%s287 + $0x268] sm:$0xff]
        %v423 = vld [vmem:[%s287 + $0x270] sm:$0xff]
        %v424 = vld [vmem:[%s287 + $0x278] sm:$0xff]
        %v425 = vld [vmem:[%s287 + $0x280] sm:$0xf]
        %v426 = vld [vmem:[%s287 + $0x284] sm:$0xff]
        %v427 = vld [vmem:[%s287 + $0x28c] sm:$0xff]
        %v428 = vld [vmem:[%s287 + $0x294] sm:$0xff]
        %v429 = vld [vmem:[%s287 + $0x29c] sm:$0xf]
        %v430 = vld [vmem:[%s287 + $0x2a0] sm:$0xff]
        %v431 = vld [vmem:[%s287 + $0x2a8] sm:$0xff]
        %v432 = vld [vmem:[%s287 + $0x2b0] sm:$0xff]
        %v433 = vld [vmem:[%s287 + $0x2b8] sm:$0xf]
        %v434 = vld [vmem:[%s287 + $0x2bc] sm:$0xff]
        %v435 = vld [vmem:[%s287 + $0x2c4] sm:$0xff]
        %v436 = vld [vmem:[%s287 + $0x2cc] sm:$0xff]
        %v437 = vld [vmem:[%s287 + $0x2d4] sm:$0xf]
        %v438 = vld [vmem:[%s287 + $0x2d8] sm:$0xff]
        %v439 = vld [vmem:[%s287 + $0x2e0] sm:$0xff]
        %v440 = vld [vmem:[%s287 + $0x2e8] sm:$0xff]
        %v441 = vld [vmem:[%s287 + $0x2f0] sm:$0xf]
        %v442 = vld [vmem:[%s287 + $0x2f4] sm:$0xff]
        %v443 = vld [vmem:[%s287 + $0x2fc] sm:$0xff]
        %v444 = vld [vmem:[%s287 + $0x304] sm:$0xff]
        %v445 = vld [vmem:[%s287 + $0x30c] sm:$0xf]
        %v446 = vld [vmem:[%s287 + $0x310] sm:$0xff]
        %v447 = vld [vmem:[%s287 + $0x318] sm:$0xff]
        %v448 = vld [vmem:[%s287 + $0x320] sm:$0xff]
        %v449 = vld [vmem:[%s287 + $0x328] sm:$0xf]
        %v450 = vld [vmem:[%s287 + $0x32c] sm:$0xff]
        %v451 = vld [vmem:[%s287 + $0x334] sm:$0xff]
        %v452 = vld [vmem:[%s287 + $0x33c] sm:$0xff]
        %v453 = vld [vmem:[%s287 + $0x344] sm:$0xf]
        %v454 = vld [vmem:[%s287 + $0x348] sm:$0xff]
        %v455 = vld [vmem:[%s287 + $0x350] sm:$0xff]
        %v456 = vld [vmem:[%s287 + $0x358] sm:$0xff]
        %v457 = vld [vmem:[%s287 + $0x360] sm:$0xf]
        %v458 = vld [vmem:[%s287 + $0x364] sm:$0xff]
        %v459 = vld [vmem:[%s287 + $0x36c] sm:$0xff]
        %v460 = vld [vmem:[%s287 + $0x374] sm:$0xff]
        %v461 = vld [vmem:[%s287 + $0x37c] sm:$0xf]
        %v462 = vld [vmem:[#allocation5] sm:$0xff]
        %v463 = vld [vmem:[#allocation5 + $0x8] sm:$0xff]
        %v464 = vld [vmem:[#allocation5 + $0x10] sm:$0xff]
        %v465 = vld [vmem:[#allocation5 + $0x18] sm:$0xff]
        %v466 = vld [vmem:[#allocation5 + $0x20] sm:$0xff]
        %v467 = vld [vmem:[#allocation5 + $0x28] sm:$0xff]
        %v468 = vld [vmem:[#allocation5 + $0x30] sm:$0xff]
        %v469 = vld [vmem:[#allocation5 + $0x38] sm:$0xff]
        %v470 = vld [vmem:[#allocation5 + $0x40] sm:$0xff]
        %v471 = vld [vmem:[#allocation5 + $0x48] sm:$0xff]
        %v472 = vld [vmem:[#allocation5 + $0x50] sm:$0xff]
        %v473 = vld [vmem:[#allocation5 + $0x58] sm:$0xff]
        %v474 = vld [vmem:[#allocation5 + $0x60] sm:$0xff]
        %v475 = vld [vmem:[#allocation5 + $0x68] sm:$0xff]
        %v476 = vld [vmem:[#allocation5 + $0x70] sm:$0xff]
        %v477 = vld [vmem:[#allocation5 + $0x78] sm:$0xff]
        %v478 = vld [vmem:[#allocation5 + $0x80] sm:$0xff]
        %v479 = vld [vmem:[#allocation5 + $0x88] sm:$0xff]
        %v480 = vld [vmem:[#allocation5 + $0x90] sm:$0xff]
        %v481 = vld [vmem:[#allocation5 + $0x98] sm:$0xff]
        %v482 = vld [vmem:[#allocation5 + $0xa0] sm:$0xff]
        %v483 = vld [vmem:[#allocation5 + $0xa8] sm:$0xff]
        %v484 = vld [vmem:[#allocation5 + $0xb0] sm:$0xff]
        %v485 = vld [vmem:[#allocation5 + $0xb8] sm:$0xff]
        %v486 = vld [vmem:[#allocation5 + $0xc0] sm:$0xff]
        %v487 = vld [vmem:[#allocation5 + $0xc8] sm:$0xff]
        %v488 = vld [vmem:[#allocation5 + $0xd0] sm:$0xff]
        %v489 = vld [vmem:[#allocation5 + $0xd8] sm:$0xff]
        %v490 = vld [vmem:[#allocation5 + $0xe0] sm:$0xff]
        %v491 = vld [vmem:[#allocation5 + $0xe8] sm:$0xff]
        %v492 = vld [vmem:[#allocation5 + $0xf0] sm:$0xff]
        %v493 = vld [vmem:[#allocation5 + $0xf8] sm:$0xff]
        %v494 = vld [vmem:[#allocation5 + $0x100] sm:$0xff]
        %v495 = vld [vmem:[#allocation5 + $0x108] sm:$0xff]
        %v496 = vld [vmem:[#allocation5 + $0x110] sm:$0xff]
        %v497 = vld [vmem:[#allocation5 + $0x118] sm:$0xff]
        %v498 = vld [vmem:[#allocation5 + $0x120] sm:$0xff]
        %v499 = vld [vmem:[#allocation5 + $0x128] sm:$0xff]
        %v500 = vld [vmem:[#allocation5 + $0x130] sm:$0xff]
        %v501 = vld [vmem:[#allocation5 + $0x138] sm:$0xff]
        %v502 = vld [vmem:[#allocation5 + $0x140] sm:$0xff]
        %v503 = vld [vmem:[#allocation5 + $0x148] sm:$0xff]
        %v504 = vld [vmem:[#allocation5 + $0x150] sm:$0xff]
        %v505 = vld [vmem:[#allocation5 + $0x158] sm:$0xff]
        %v506 = vld [vmem:[#allocation5 + $0x160] sm:$0xff]
        %v507 = vld [vmem:[#allocation5 + $0x168] sm:$0xff]
        %v508 = vld [vmem:[#allocation5 + $0x170] sm:$0xff]
        %v509 = vld [vmem:[#allocation5 + $0x178] sm:$0xff]
        %v510 = vld [vmem:[#allocation5 + $0x180] sm:$0xff]
        %v511 = vld [vmem:[#allocation5 + $0x188] sm:$0xff]
        %v512 = vld [vmem:[#allocation5 + $0x190] sm:$0xff]
        %v513 = vld [vmem:[#allocation5 + $0x198] sm:$0xff]
        %v514 = vld [vmem:[#allocation5 + $0x1a0] sm:$0xff]
        %v515 = vld [vmem:[#allocation5 + $0x1a8] sm:$0xff]
        %v516 = vld [vmem:[#allocation5 + $0x1b0] sm:$0xff]
        %v517 = vld [vmem:[#allocation5 + $0x1b8] sm:$0xff]
        %v518 = vld [vmem:[#allocation5 + $0x1c0] sm:$0xff]
        %v519 = vld [vmem:[#allocation5 + $0x1c8] sm:$0xff]
        %v520 = vld [vmem:[#allocation5 + $0x1d0] sm:$0xff]
        %v521 = vld [vmem:[#allocation5 + $0x1d8] sm:$0xff]
        %v522 = vld [vmem:[#allocation5 + $0x1e0] sm:$0xff]
        %v523 = vld [vmem:[#allocation5 + $0x1e8] sm:$0xff]
        %v524 = vld [vmem:[#allocation5 + $0x1f0] sm:$0xff]
        %v525 = vld [vmem:[#allocation5 + $0x1f8] sm:$0xff]
        %v526 = vld [vmem:[#allocation5 + $0x200] sm:$0xff]
        %v527 = vld [vmem:[#allocation5 + $0x208] sm:$0xff]
        %v528 = vld [vmem:[#allocation5 + $0x210] sm:$0xff]
        %v529 = vld [vmem:[#allocation5 + $0x218] sm:$0xff]
        %v530 = vld [vmem:[#allocation5 + $0x220] sm:$0xff]
        %v531 = vld [vmem:[#allocation5 + $0x228] sm:$0xff]
        %v532 = vld [vmem:[#allocation5 + $0x230] sm:$0xff]
        %v533 = vld [vmem:[#allocation5 + $0x238] sm:$0xff]
        %v534 = vld [vmem:[#allocation5 + $0x240] sm:$0xff]
        %v535 = vld [vmem:[#allocation5 + $0x248] sm:$0xff]
        %v536 = vld [vmem:[#allocation5 + $0x250] sm:$0xff]
        %v537 = vld [vmem:[#allocation5 + $0x258] sm:$0xff]
        %v538 = vld [vmem:[#allocation5 + $0x260] sm:$0xff]
        %v539 = vld [vmem:[#allocation5 + $0x268] sm:$0xff]
        %v540 = vld [vmem:[#allocation5 + $0x270] sm:$0xff]
        %v541 = vld [vmem:[#allocation5 + $0x278] sm:$0xff]
        %v542 = vld [vmem:[#allocation5 + $0x280] sm:$0xff]
        %v543 = vld [vmem:[#allocation5 + $0x288] sm:$0xff]
        %v544 = vld [vmem:[#allocation5 + $0x290] sm:$0xff]
        %v545 = vld [vmem:[#allocation5 + $0x298] sm:$0xff]
        %v546 = vld [vmem:[#allocation5 + $0x2a0] sm:$0xff]
        %v547 = vld [vmem:[#allocation5 + $0x2a8] sm:$0xff]
        %v548 = vld [vmem:[#allocation5 + $0x2b0] sm:$0xff]
        %v549 = vld [vmem:[#allocation5 + $0x2b8] sm:$0xff]
        %v550 = vld [vmem:[#allocation5 + $0x2c0] sm:$0xff]
        %v551 = vld [vmem:[#allocation5 + $0x2c8] sm:$0xff]
        %v552 = vld [vmem:[#allocation5 + $0x2d0] sm:$0xff]
        %v553 = vld [vmem:[#allocation5 + $0x2d8] sm:$0xff]
        %v554 = vld [vmem:[#allocation5 + $0x2e0] sm:$0xff]
        %v555 = vld [vmem:[#allocation5 + $0x2e8] sm:$0xff]
        %v556 = vld [vmem:[#allocation5 + $0x2f0] sm:$0xff]
        %v557 = vld [vmem:[#allocation5 + $0x2f8] sm:$0xff]
        %v558 = vld [vmem:[#allocation5 + $0x300] sm:$0xff]
        %v559 = vld [vmem:[#allocation5 + $0x308] sm:$0xff]
        %v560 = vld [vmem:[#allocation5 + $0x310] sm:$0xff]
        %v561 = vld [vmem:[#allocation5 + $0x318] sm:$0xff]
        %v562 = vld [vmem:[#allocation5 + $0x320] sm:$0xff]
        %v563 = vld [vmem:[#allocation5 + $0x328] sm:$0xff]
        %v564 = vld [vmem:[#allocation5 + $0x330] sm:$0xff]
        %v565 = vld [vmem:[#allocation5 + $0x338] sm:$0xff]
        %v566 = vld [vmem:[#allocation5 + $0x340] sm:$0xff]
        %v567 = vld [vmem:[#allocation5 + $0x348] sm:$0xff]
        %v568 = vld [vmem:[#allocation5 + $0x350] sm:$0xff]
        %v569 = vld [vmem:[#allocation5 + $0x358] sm:$0xff]
        %v570 = vld [vmem:[#allocation5 + $0x360] sm:$0xff]
        %v571 = vld [vmem:[#allocation5 + $0x368] sm:$0xff]
        %v572 = vld [vmem:[#allocation5 + $0x370] sm:$0xff]
        %v573 = vld [vmem:[#allocation5 + $0x378] sm:$0xff]
        %v574 = vld [vmem:[#allocation5 + $0x380] sm:$0xff]
        %v575 = vld [vmem:[#allocation5 + $0x388] sm:$0xff]
        %v576 = vld [vmem:[#allocation5 + $0x390] sm:$0xff]
        %v577 = vld [vmem:[#allocation5 + $0x398] sm:$0xff]
        %v578 = vld [vmem:[#allocation5 + $0x3a0] sm:$0xff]
        %v579 = vld [vmem:[#allocation5 + $0x3a8] sm:$0xff]
        %v580 = vld [vmem:[#allocation5 + $0x3b0] sm:$0xff]
        %v581 = vld [vmem:[#allocation5 + $0x3b8] sm:$0xff]
        %v582 = vld [vmem:[#allocation5 + $0x3c0] sm:$0xff]
        %v583 = vld [vmem:[#allocation5 + $0x3c8] sm:$0xff]
        %v584 = vld [vmem:[#allocation5 + $0x3d0] sm:$0xff]
        %v585 = vld [vmem:[#allocation5 + $0x3d8] sm:$0xff]
        %v586 = vld [vmem:[#allocation5 + $0x3e0] sm:$0xff]
        %v587 = vld [vmem:[#allocation5 + $0x3e8] sm:$0xff]
        %v588 = vld [vmem:[#allocation5 + $0x3f0] sm:$0xff]
        %v589 = vld [vmem:[#allocation5 + $0x3f8] sm:$0xff]
        %v590 = vld [vmem:[#allocation5 + $0x400] sm:$0xff]
        %v591 = vld [vmem:[#allocation5 + $0x408] sm:$0xff]
        %v592 = vld [vmem:[#allocation5 + $0x410] sm:$0xff]
        %v593 = vld [vmem:[#allocation5 + $0x418] sm:$0xff]
        %v594 = vld [vmem:[#allocation5 + $0x420] sm:$0xff]
        %v595 = vld [vmem:[#allocation5 + $0x428] sm:$0xff]
        %v596 = vld [vmem:[#allocation5 + $0x430] sm:$0xff]
        %v597 = vld [vmem:[#allocation5 + $0x438] sm:$0xff]
        %v598 = vld [vmem:[#allocation5 + $0x440] sm:$0xff]
        %v599 = vld [vmem:[#allocation5 + $0x448] sm:$0xff]
        %v600 = vld [vmem:[#allocation5 + $0x450] sm:$0xff]
        %v601 = vld [vmem:[#allocation5 + $0x458] sm:$0xff]
        %v602 = vld [vmem:[#allocation5 + $0x460] sm:$0xff]
        %v603 = vld [vmem:[#allocation5 + $0x468] sm:$0xff]
        %v604 = vld [vmem:[#allocation5 + $0x470] sm:$0xff]
        %v605 = vld [vmem:[#allocation5 + $0x478] sm:$0xff]
        %v606 = vld [vmem:[#allocation5 + $0x480] sm:$0xff]
        %v607 = vld [vmem:[#allocation5 + $0x488] sm:$0xff]
        %v608 = vld [vmem:[#allocation5 + $0x490] sm:$0xff]
        %v609 = vld [vmem:[#allocation5 + $0x498] sm:$0xff]
        %v610 = vld [vmem:[#allocation5 + $0x4a0] sm:$0xff]
        %v611 = vld [vmem:[#allocation5 + $0x4a8] sm:$0xff]
        %v612 = vld [vmem:[#allocation5 + $0x4b0] sm:$0xff]
        %v613 = vld [vmem:[#allocation5 + $0x4b8] sm:$0xff]
        %v614 = vld [vmem:[#allocation5 + $0x4c0] sm:$0xff]
        %v615 = vld [vmem:[#allocation5 + $0x4c8] sm:$0xff]
        %v616 = vld [vmem:[#allocation5 + $0x4d0] sm:$0xff]
        %v617 = vld [vmem:[#allocation5 + $0x4d8] sm:$0xff]
        %v618 = vld [vmem:[#allocation5 + $0x4e0] sm:$0xff]
        %v619 = vld [vmem:[#allocation5 + $0x4e8] sm:$0xff]
        %v620 = vld [vmem:[#allocation5 + $0x4f0] sm:$0xff]
        %v621 = vld [vmem:[#allocation5 + $0x4f8] sm:$0xff]
        %v622 = vld [vmem:[#allocation5 + $0x500] sm:$0xff]
        %v623 = vld [vmem:[#allocation5 + $0x508] sm:$0xff]
        %v624 = vld [vmem:[#allocation5 + $0x510] sm:$0xff]
        %v625 = vld [vmem:[#allocation5 + $0x518] sm:$0xff]
        %v626 = vld [vmem:[#allocation5 + $0x520] sm:$0xff]
        %v627 = vld [vmem:[#allocation5 + $0x528] sm:$0xff]
        %v628 = vld [vmem:[#allocation5 + $0x530] sm:$0xff]
        %v629 = vld [vmem:[#allocation5 + $0x538] sm:$0xff]
        %v630 = vld [vmem:[#allocation5 + $0x540] sm:$0xff]
        %v631 = vld [vmem:[#allocation5 + $0x548] sm:$0xff]
        %v632 = vld [vmem:[#allocation5 + $0x550] sm:$0xff]
        %v633 = vld [vmem:[#allocation5 + $0x558] sm:$0xff]
        %v634 = vld [vmem:[#allocation5 + $0x560] sm:$0xff]
        %v635 = vld [vmem:[#allocation5 + $0x568] sm:$0xff]
        %v636 = vld [vmem:[#allocation5 + $0x570] sm:$0xff]
        %v637 = vld [vmem:[#allocation5 + $0x578] sm:$0xff]
        %v638 = vld [vmem:[#allocation5 + $0x580] sm:$0xff]
        %v639 = vld [vmem:[#allocation5 + $0x588] sm:$0xff]
        %v640 = vld [vmem:[#allocation5 + $0x590] sm:$0xff]
        %v641 = vld [vmem:[#allocation5 + $0x598] sm:$0xff]
        %v642 = vld [vmem:[#allocation5 + $0x5a0] sm:$0xff]
        %v643 = vld [vmem:[#allocation5 + $0x5a8] sm:$0xff]
        %v644 = vld [vmem:[#allocation5 + $0x5b0] sm:$0xff]
        %v645 = vld [vmem:[#allocation5 + $0x5b8] sm:$0xff]
        %v646 = vld [vmem:[#allocation5 + $0x5c0] sm:$0xff]
        %v647 = vld [vmem:[#allocation5 + $0x5c8] sm:$0xff]
        %v648 = vld [vmem:[#allocation5 + $0x5d0] sm:$0xff]
        %v649 = vld [vmem:[#allocation5 + $0x5d8] sm:$0xff]
        %v650 = vld [vmem:[#allocation5 + $0x5e0] sm:$0xff]
        %v651 = vld [vmem:[#allocation5 + $0x5e8] sm:$0xff]
        %v652 = vld [vmem:[#allocation5 + $0x5f0] sm:$0xff]
        %v653 = vld [vmem:[#allocation5 + $0x5f8] sm:$0xff]
        %v654 = vld [vmem:[#allocation5 + $0x600] sm:$0xff]
        %v655 = vld [vmem:[#allocation5 + $0x608] sm:$0xff]
        %v656 = vld [vmem:[#allocation5 + $0x610] sm:$0xff]
        %v657 = vld [vmem:[#allocation5 + $0x618] sm:$0xff]
        %v658 = vld [vmem:[#allocation5 + $0x620] sm:$0xff]
        %v659 = vld [vmem:[#allocation5 + $0x628] sm:$0xff]
        %v660 = vld [vmem:[#allocation5 + $0x630] sm:$0xff]
        %v661 = vld [vmem:[#allocation5 + $0x638] sm:$0xff]
        %v662 = vld [vmem:[#allocation5 + $0x640] sm:$0xff]
        %v663 = vld [vmem:[#allocation5 + $0x648] sm:$0xff]
        %v664 = vld [vmem:[#allocation5 + $0x650] sm:$0xff]
        %v665 = vld [vmem:[#allocation5 + $0x658] sm:$0xff]
        %v666 = vld [vmem:[#allocation5 + $0x660] sm:$0xff]
        %v667 = vld [vmem:[#allocation5 + $0x668] sm:$0xff]
        %v668 = vld [vmem:[#allocation5 + $0x670] sm:$0xff]
        %v669 = vld [vmem:[#allocation5 + $0x678] sm:$0xff]
        %v670 = vld [vmem:[#allocation5 + $0x680] sm:$0xff]
        %v671 = vld [vmem:[#allocation5 + $0x688] sm:$0xff]
        %v672 = vld [vmem:[#allocation5 + $0x690] sm:$0xff]
        %v673 = vld [vmem:[#allocation5 + $0x698] sm:$0xff]
        %v674 = vld [vmem:[#allocation5 + $0x6a0] sm:$0xff]
        %v675 = vld [vmem:[#allocation5 + $0x6a8] sm:$0xff]
        %v676 = vld [vmem:[#allocation5 + $0x6b0] sm:$0xff]
        %v677 = vld [vmem:[#allocation5 + $0x6b8] sm:$0xff]
        %v678 = vld [vmem:[#allocation5 + $0x6c0] sm:$0xff]
        %v679 = vld [vmem:[#allocation5 + $0x6c8] sm:$0xff]
        %v680 = vld [vmem:[#allocation5 + $0x6d0] sm:$0xff]
        %v681 = vld [vmem:[#allocation5 + $0x6d8] sm:$0xff]
        %v682 = vld [vmem:[#allocation5 + $0x6e0] sm:$0xff]
        %v683 = vld [vmem:[#allocation5 + $0x6e8] sm:$0xff]
        %v684 = vld [vmem:[#allocation5 + $0x6f0] sm:$0xff]
        %v685 = vld [vmem:[#allocation5 + $0x6f8] sm:$0xff]
        %v686 = vld [vmem:[%s2] sm:$0xf]
        %v688 = vlaneseq
        %v689 = vshrl.u32 %v688, 7
        %v690 = vsub.s32 0, %v689
        %v691 = vrot.slane %v686, %v690
        %v692 = vlaneseq
        %v693 = vshrl.u32 %v692, 7
        %v694 = vsub.s32 1, %v693
        %v695 = vrot.slane %v686, %v694
        %v696 = vlaneseq
        %v697 = vshrl.u32 %v696, 7
        %v698 = vsub.s32 2, %v697
        %v699 = vrot.slane %v686, %v698
        %v700 = vlaneseq
        %v701 = vshrl.u32 %v700, 7
        %v702 = vsub.s32 3, %v701
        %v703 = vrot.slane %v686, %v702
        %v836 = vunpack.c.l.b16 %v334
        %v837 = vunpack.c.h.b16 %v334
        %v838 = vunpack.c.l.b16 %v335
        %v839 = vunpack.c.h.b16 %v335
        %v840 = vunpack.c.l.b16 %v336
        %v841 = vunpack.c.h.b16 %v336
        %v842 = vunpack.c.l.b16 %v337
        %v843 = vunpack.c.l.b16 %v338
        %v844 = vunpack.c.h.b16 %v338
        %v845 = vunpack.c.l.b16 %v339
        %v846 = vunpack.c.h.b16 %v339
        %v847 = vunpack.c.l.b16 %v340
        %v848 = vunpack.c.h.b16 %v340
        %v849 = vunpack.c.l.b16 %v341
        %v850 = vunpack.c.l.b16 %v342
        %v851 = vunpack.c.h.b16 %v342
        %v852 = vunpack.c.l.b16 %v343
        %v853 = vunpack.c.h.b16 %v343
        %v854 = vunpack.c.l.b16 %v344
        %v855 = vunpack.c.h.b16 %v344
        %v856 = vunpack.c.l.b16 %v345
        %v857 = vunpack.c.l.b16 %v346
        %v858 = vunpack.c.h.b16 %v346
        %v859 = vunpack.c.l.b16 %v347
        %v860 = vunpack.c.h.b16 %v347
        %v861 = vunpack.c.l.b16 %v348
        %v862 = vunpack.c.h.b16 %v348
        %v863 = vunpack.c.l.b16 %v349
        %v864 = vunpack.c.l.b16 %v350
        %v865 = vunpack.c.h.b16 %v350
        %v866 = vunpack.c.l.b16 %v351
        %v867 = vunpack.c.h.b16 %v351
        %v868 = vunpack.c.l.b16 %v352
        %v869 = vunpack.c.h.b16 %v352
        %v870 = vunpack.c.l.b16 %v353
        %v871 = vunpack.c.l.b16 %v354
        %v872 = vunpack.c.h.b16 %v354
        %v873 = vunpack.c.l.b16 %v355
        %v874 = vunpack.c.h.b16 %v355
        %v875 = vunpack.c.l.b16 %v356
        %v876 = vunpack.c.h.b16 %v356
        %v877 = vunpack.c.l.b16 %v357
        %v878 = vunpack.c.l.b16 %v358
        %v879 = vunpack.c.h.b16 %v358
        %v880 = vunpack.c.l.b16 %v359
        %v881 = vunpack.c.h.b16 %v359
        %v882 = vunpack.c.l.b16 %v360
        %v883 = vunpack.c.h.b16 %v360
        %v884 = vunpack.c.l.b16 %v361
        %v885 = vunpack.c.l.b16 %v362
        %v886 = vunpack.c.h.b16 %v362
        %v887 = vunpack.c.l.b16 %v363
        %v888 = vunpack.c.h.b16 %v363
        %v889 = vunpack.c.l.b16 %v364
        %v890 = vunpack.c.h.b16 %v364
        %v891 = vunpack.c.l.b16 %v365
        %v892 = vunpack.c.l.b16 %v366
        %v893 = vunpack.c.h.b16 %v366
        %v894 = vunpack.c.l.b16 %v367
        %v895 = vunpack.c.h.b16 %v367
        %v896 = vunpack.c.l.b16 %v368
        %v897 = vunpack.c.h.b16 %v368
        %v898 = vunpack.c.l.b16 %v369
        %v899 = vunpack.c.l.b16 %v370
        %v900 = vunpack.c.h.b16 %v370
        %v901 = vunpack.c.l.b16 %v371
        %v902 = vunpack.c.h.b16 %v371
        %v903 = vunpack.c.l.b16 %v372
        %v904 = vunpack.c.h.b16 %v372
        %v905 = vunpack.c.l.b16 %v373
        %v906 = vunpack.c.l.b16 %v374
        %v907 = vunpack.c.h.b16 %v374
        %v908 = vunpack.c.l.b16 %v375
        %v909 = vunpack.c.h.b16 %v375
        %v910 = vunpack.c.l.b16 %v376
        %v911 = vunpack.c.h.b16 %v376
        %v912 = vunpack.c.l.b16 %v377
        %v913 = vunpack.c.l.b16 %v378
        %v914 = vunpack.c.h.b16 %v378
        %v915 = vunpack.c.l.b16 %v379
        %v916 = vunpack.c.h.b16 %v379
        %v917 = vunpack.c.l.b16 %v380
        %v918 = vunpack.c.h.b16 %v380
        %v919 = vunpack.c.l.b16 %v381
        %v920 = vunpack.c.l.b16 %v382
        %v921 = vunpack.c.h.b16 %v382
        %v922 = vunpack.c.l.b16 %v383
        %v923 = vunpack.c.h.b16 %v383
        %v924 = vunpack.c.l.b16 %v384
        %v925 = vunpack.c.h.b16 %v384
        %v926 = vunpack.c.l.b16 %v385
        %v927 = vunpack.c.l.b16 %v386
        %v928 = vunpack.c.h.b16 %v386
        %v929 = vunpack.c.l.b16 %v387
        %v930 = vunpack.c.h.b16 %v387
        %v931 = vunpack.c.l.b16 %v388
        %v932 = vunpack.c.h.b16 %v388
        %v933 = vunpack.c.l.b16 %v389
        %v934 = vunpack.c.l.b16 %v390
        %v935 = vunpack.c.h.b16 %v390
        %v936 = vunpack.c.l.b16 %v391
        %v937 = vunpack.c.h.b16 %v391
        %v938 = vunpack.c.l.b16 %v392
        %v939 = vunpack.c.h.b16 %v392
        %v940 = vunpack.c.l.b16 %v393
        %v941 = vunpack.c.l.b16 %v394
        %v942 = vunpack.c.h.b16 %v394
        %v943 = vunpack.c.l.b16 %v395
        %v944 = vunpack.c.h.b16 %v395
        %v945 = vunpack.c.l.b16 %v396
        %v946 = vunpack.c.h.b16 %v396
        %v947 = vunpack.c.l.b16 %v397
        %v948 = vunpack.c.l.b16 %v398
        %v949 = vunpack.c.h.b16 %v398
        %v950 = vunpack.c.l.b16 %v399
        %v951 = vunpack.c.h.b16 %v399
        %v952 = vunpack.c.l.b16 %v400
        %v953 = vunpack.c.h.b16 %v400
        %v954 = vunpack.c.l.b16 %v401
        %v955 = vunpack.c.l.b16 %v402
        %v956 = vunpack.c.h.b16 %v402
        %v957 = vunpack.c.l.b16 %v403
        %v958 = vunpack.c.h.b16 %v403
        %v959 = vunpack.c.l.b16 %v404
        %v960 = vunpack.c.h.b16 %v404
        %v961 = vunpack.c.l.b16 %v405
        %v962 = vunpack.c.l.b16 %v406
        %v963 = vunpack.c.h.b16 %v406
        %v964 = vunpack.c.l.b16 %v407
        %v965 = vunpack.c.h.b16 %v407
        %v966 = vunpack.c.l.b16 %v408
        %v967 = vunpack.c.h.b16 %v408
        %v968 = vunpack.c.l.b16 %v409
        %v969 = vunpack.c.l.b16 %v410
        %v970 = vunpack.c.h.b16 %v410
        %v971 = vunpack.c.l.b16 %v411
        %v972 = vunpack.c.h.b16 %v411
        %v973 = vunpack.c.l.b16 %v412
        %v974 = vunpack.c.h.b16 %v412
        %v975 = vunpack.c.l.b16 %v413
        %v976 = vunpack.c.l.b16 %v414
        %v977 = vunpack.c.h.b16 %v414
        %v978 = vunpack.c.l.b16 %v415
        %v979 = vunpack.c.h.b16 %v415
        %v980 = vunpack.c.l.b16 %v416
        %v981 = vunpack.c.h.b16 %v416
        %v982 = vunpack.c.l.b16 %v417
        %v983 = vunpack.c.l.b16 %v418
        %v984 = vunpack.c.h.b16 %v418
        %v985 = vunpack.c.l.b16 %v419
        %v986 = vunpack.c.h.b16 %v419
        %v987 = vunpack.c.l.b16 %v420
        %v988 = vunpack.c.h.b16 %v420
        %v989 = vunpack.c.l.b16 %v421
        %v990 = vunpack.c.l.b16 %v422
        %v991 = vunpack.c.h.b16 %v422
        %v992 = vunpack.c.l.b16 %v423
        %v993 = vunpack.c.h.b16 %v423
        %v994 = vunpack.c.l.b16 %v424
        %v995 = vunpack.c.h.b16 %v424
        %v996 = vunpack.c.l.b16 %v425
        %v997 = vunpack.c.l.b16 %v426
        %v998 = vunpack.c.h.b16 %v426
        %v999 = vunpack.c.l.b16 %v427
        %v1000 = vunpack.c.h.b16 %v427
        %v1001 = vunpack.c.l.b16 %v428
        %v1002 = vunpack.c.h.b16 %v428
        %v1003 = vunpack.c.l.b16 %v429
        %v1004 = vunpack.c.l.b16 %v430
        %v1005 = vunpack.c.h.b16 %v430
        %v1006 = vunpack.c.l.b16 %v431
        %v1007 = vunpack.c.h.b16 %v431
        %v1008 = vunpack.c.l.b16 %v432
        %v1009 = vunpack.c.h.b16 %v432
        %v1010 = vunpack.c.l.b16 %v433
        %v1011 = vunpack.c.l.b16 %v434
        %v1012 = vunpack.c.h.b16 %v434
        %v1013 = vunpack.c.l.b16 %v435
        %v1014 = vunpack.c.h.b16 %v435
        %v1015 = vunpack.c.l.b16 %v436
        %v1016 = vunpack.c.h.b16 %v436
        %v1017 = vunpack.c.l.b16 %v437
        %v1018 = vunpack.c.l.b16 %v438
        %v1019 = vunpack.c.h.b16 %v438
        %v1020 = vunpack.c.l.b16 %v439
        %v1021 = vunpack.c.h.b16 %v439
        %v1022 = vunpack.c.l.b16 %v440
        %v1023 = vunpack.c.h.b16 %v440
        %v1024 = vunpack.c.l.b16 %v441
        %v1025 = vunpack.c.l.b16 %v442
        %v1026 = vunpack.c.h.b16 %v442
        %v1027 = vunpack.c.l.b16 %v443
        %v1028 = vunpack.c.h.b16 %v443
        %v1029 = vunpack.c.l.b16 %v444
        %v1030 = vunpack.c.h.b16 %v444
        %v1031 = vunpack.c.l.b16 %v445
        %v1032 = vunpack.c.l.b16 %v446
        %v1033 = vunpack.c.h.b16 %v446
        %v1034 = vunpack.c.l.b16 %v447
        %v1035 = vunpack.c.h.b16 %v447
        %v1036 = vunpack.c.l.b16 %v448
        %v1037 = vunpack.c.h.b16 %v448
        %v1038 = vunpack.c.l.b16 %v449
        %v1039 = vunpack.c.l.b16 %v450
        %v1040 = vunpack.c.h.b16 %v450
        %v1041 = vunpack.c.l.b16 %v451
        %v1042 = vunpack.c.h.b16 %v451
        %v1043 = vunpack.c.l.b16 %v452
        %v1044 = vunpack.c.h.b16 %v452
        %v1045 = vunpack.c.l.b16 %v453
        %v1046 = vunpack.c.l.b16 %v454
        %v1047 = vunpack.c.h.b16 %v454
        %v1048 = vunpack.c.l.b16 %v455
        %v1049 = vunpack.c.h.b16 %v455
        %v1050 = vunpack.c.l.b16 %v456
        %v1051 = vunpack.c.h.b16 %v456
        %v1052 = vunpack.c.l.b16 %v457
        %v1053 = vunpack.c.l.b16 %v458
        %v1054 = vunpack.c.h.b16 %v458
        %v1055 = vunpack.c.l.b16 %v459
        %v1056 = vunpack.c.h.b16 %v459
        %v1057 = vunpack.c.l.b16 %v460
        %v1058 = vunpack.c.h.b16 %v460
        %v1059 = vunpack.c.l.b16 %v461
        %v1060 = vpack.c.b16 %v843, %v836
        %v1061 = vpack.c.b16 %v844, %v837
        %v1062 = vpack.c.b16 %v845, %v838
        %v1063 = vpack.c.b16 %v846, %v839
        %v1064 = vpack.c.b16 %v847, %v840
        %v1065 = vpack.c.b16 %v848, %v841
        %v1066 = vpack.c.b16 %v849, %v842
        %v1067 = vpack.c.b16 %v857, %v850
        %v1068 = vpack.c.b16 %v858, %v851
        %v1069 = vpack.c.b16 %v859, %v852
        %v1070 = vpack.c.b16 %v860, %v853
        %v1071 = vpack.c.b16 %v861, %v854
        %v1072 = vpack.c.b16 %v862, %v855
        %v1073 = vpack.c.b16 %v863, %v856
        %v1074 = vpack.c.b16 %v871, %v864
        %v1075 = vpack.c.b16 %v872, %v865
        %v1076 = vpack.c.b16 %v873, %v866
        %v1077 = vpack.c.b16 %v874, %v867
        %v1078 = vpack.c.b16 %v875, %v868
        %v1079 = vpack.c.b16 %v876, %v869
        %v1080 = vpack.c.b16 %v877, %v870
        %v1081 = vpack.c.b16 %v885, %v878
        %v1082 = vpack.c.b16 %v886, %v879
        %v1083 = vpack.c.b16 %v887, %v880
        %v1084 = vpack.c.b16 %v888, %v881
        %v1085 = vpack.c.b16 %v889, %v882
        %v1086 = vpack.c.b16 %v890, %v883
        %v1087 = vpack.c.b16 %v891, %v884
        %v1088 = vpack.c.b16 %v899, %v892
        %v1089 = vpack.c.b16 %v900, %v893
        %v1090 = vpack.c.b16 %v901, %v894
        %v1091 = vpack.c.b16 %v902, %v895
        %v1092 = vpack.c.b16 %v903, %v896
        %v1093 = vpack.c.b16 %v904, %v897
        %v1094 = vpack.c.b16 %v905, %v898
        %v1095 = vpack.c.b16 %v913, %v906
        %v1096 = vpack.c.b16 %v914, %v907
        %v1097 = vpack.c.b16 %v915, %v908
        %v1098 = vpack.c.b16 %v916, %v909
        %v1099 = vpack.c.b16 %v917, %v910
        %v1100 = vpack.c.b16 %v918, %v911
        %v1101 = vpack.c.b16 %v919, %v912
        %v1102 = vpack.c.b16 %v927, %v920
        %v1103 = vpack.c.b16 %v928, %v921
        %v1104 = vpack.c.b16 %v929, %v922
        %v1105 = vpack.c.b16 %v930, %v923
        %v1106 = vpack.c.b16 %v931, %v924
        %v1107 = vpack.c.b16 %v932, %v925
        %v1108 = vpack.c.b16 %v933, %v926
        %v1109 = vpack.c.b16 %v941, %v934
        %v1110 = vpack.c.b16 %v942, %v935
        %v1111 = vpack.c.b16 %v943, %v936
        %v1112 = vpack.c.b16 %v944, %v937
        %v1113 = vpack.c.b16 %v945, %v938
        %v1114 = vpack.c.b16 %v946, %v939
        %v1115 = vpack.c.b16 %v947, %v940
        %v1116 = vpack.c.b16 %v955, %v948
        %v1117 = vpack.c.b16 %v956, %v949
        %v1118 = vpack.c.b16 %v957, %v950
        %v1119 = vpack.c.b16 %v958, %v951
        %v1120 = vpack.c.b16 %v959, %v952
        %v1121 = vpack.c.b16 %v960, %v953
        %v1122 = vpack.c.b16 %v961, %v954
        %v1123 = vpack.c.b16 %v969, %v962
        %v1124 = vpack.c.b16 %v970, %v963
        %v1125 = vpack.c.b16 %v971, %v964
        %v1126 = vpack.c.b16 %v972, %v965
        %v1127 = vpack.c.b16 %v973, %v966
        %v1128 = vpack.c.b16 %v974, %v967
        %v1129 = vpack.c.b16 %v975, %v968
        %v1130 = vpack.c.b16 %v983, %v976
        %v1131 = vpack.c.b16 %v984, %v977
        %v1132 = vpack.c.b16 %v985, %v978
        %v1133 = vpack.c.b16 %v986, %v979
        %v1134 = vpack.c.b16 %v987, %v980
        %v1135 = vpack.c.b16 %v988, %v981
        %v1136 = vpack.c.b16 %v989, %v982
        %v1137 = vpack.c.b16 %v997, %v990
        %v1138 = vpack.c.b16 %v998, %v991
        %v1139 = vpack.c.b16 %v999, %v992
        %v1140 = vpack.c.b16 %v1000, %v993
        %v1141 = vpack.c.b16 %v1001, %v994
        %v1142 = vpack.c.b16 %v1002, %v995
        %v1143 = vpack.c.b16 %v1003, %v996
        %v1144 = vpack.c.b16 %v1011, %v1004
        %v1145 = vpack.c.b16 %v1012, %v1005
        %v1146 = vpack.c.b16 %v1013, %v1006
        %v1147 = vpack.c.b16 %v1014, %v1007
        %v1148 = vpack.c.b16 %v1015, %v1008
        %v1149 = vpack.c.b16 %v1016, %v1009
        %v1150 = vpack.c.b16 %v1017, %v1010
        %v1151 = vpack.c.b16 %v1025, %v1018
        %v1152 = vpack.c.b16 %v1026, %v1019
        %v1153 = vpack.c.b16 %v1027, %v1020
        %v1154 = vpack.c.b16 %v1028, %v1021
        %v1155 = vpack.c.b16 %v1029, %v1022
        %v1156 = vpack.c.b16 %v1030, %v1023
        %v1157 = vpack.c.b16 %v1031, %v1024
        %v1158 = vpack.c.b16 %v1039, %v1032
        %v1159 = vpack.c.b16 %v1040, %v1033
        %v1160 = vpack.c.b16 %v1041, %v1034
        %v1161 = vpack.c.b16 %v1042, %v1035
        %v1162 = vpack.c.b16 %v1043, %v1036
        %v1163 = vpack.c.b16 %v1044, %v1037
        %v1164 = vpack.c.b16 %v1045, %v1038
        %v1165 = vpack.c.b16 %v1053, %v1046
        %v1166 = vpack.c.b16 %v1054, %v1047
        %v1167 = vpack.c.b16 %v1055, %v1048
        %v1168 = vpack.c.b16 %v1056, %v1049
        %v1169 = vpack.c.b16 %v1057, %v1050
        %v1170 = vpack.c.b16 %v1058, %v1051
        %v1171 = vpack.c.b16 %v1059, %v1052
        %v1508 = vunpack.c.l.b16 %v462
        %v1509 = vunpack.c.h.b16 %v462
        %v1510 = vunpack.c.l.b16 %v463
        %v1511 = vunpack.c.h.b16 %v463
        %v1512 = vunpack.c.l.b16 %v464
        %v1513 = vunpack.c.h.b16 %v464
        %v1514 = vunpack.c.l.b16 %v465
        %v1515 = vunpack.c.h.b16 %v465
        %v1516 = vunpack.c.l.b16 %v466
        %v1517 = vunpack.c.h.b16 %v466
        %v1518 = vunpack.c.l.b16 %v467
        %v1519 = vunpack.c.h.b16 %v467
        %v1520 = vunpack.c.l.b16 %v468
        %v1521 = vunpack.c.h.b16 %v468
        %v1522 = vunpack.c.l.b16 %v469
        %v1523 = vunpack.c.h.b16 %v469
        %v1524 = vunpack.c.l.b16 %v470
        %v1525 = vunpack.c.h.b16 %v470
        %v1526 = vunpack.c.l.b16 %v471
        %v1527 = vunpack.c.h.b16 %v471
        %v1528 = vunpack.c.l.b16 %v472
        %v1529 = vunpack.c.h.b16 %v472
        %v1530 = vunpack.c.l.b16 %v473
        %v1531 = vunpack.c.h.b16 %v473
        %v1532 = vunpack.c.l.b16 %v474
        %v1533 = vunpack.c.h.b16 %v474
        %v1534 = vunpack.c.l.b16 %v475
        %v1535 = vunpack.c.h.b16 %v475
        %v1536 = vunpack.c.l.b16 %v476
        %v1537 = vunpack.c.h.b16 %v476
        %v1538 = vunpack.c.l.b16 %v477
        %v1539 = vunpack.c.h.b16 %v477
        %v1540 = vunpack.c.l.b16 %v478
        %v1541 = vunpack.c.h.b16 %v478
        %v1542 = vunpack.c.l.b16 %v479
        %v1543 = vunpack.c.h.b16 %v479
        %v1544 = vunpack.c.l.b16 %v480
        %v1545 = vunpack.c.h.b16 %v480
        %v1546 = vunpack.c.l.b16 %v481
        %v1547 = vunpack.c.h.b16 %v481
        %v1548 = vunpack.c.l.b16 %v482
        %v1549 = vunpack.c.h.b16 %v482
        %v1550 = vunpack.c.l.b16 %v483
        %v1551 = vunpack.c.h.b16 %v483
        %v1552 = vunpack.c.l.b16 %v484
        %v1553 = vunpack.c.h.b16 %v484
        %v1554 = vunpack.c.l.b16 %v485
        %v1555 = vunpack.c.h.b16 %v485
        %v1556 = vunpack.c.l.b16 %v486
        %v1557 = vunpack.c.h.b16 %v486
        %v1558 = vunpack.c.l.b16 %v487
        %v1559 = vunpack.c.h.b16 %v487
        %v1560 = vunpack.c.l.b16 %v488
        %v1561 = vunpack.c.h.b16 %v488
        %v1562 = vunpack.c.l.b16 %v489
        %v1563 = vunpack.c.h.b16 %v489
        %v1564 = vunpack.c.l.b16 %v490
        %v1565 = vunpack.c.h.b16 %v490
        %v1566 = vunpack.c.l.b16 %v491
        %v1567 = vunpack.c.h.b16 %v491
        %v1568 = vunpack.c.l.b16 %v492
        %v1569 = vunpack.c.h.b16 %v492
        %v1570 = vunpack.c.l.b16 %v493
        %v1571 = vunpack.c.h.b16 %v493
        %v1572 = vunpack.c.l.b16 %v494
        %v1573 = vunpack.c.h.b16 %v494
        %v1574 = vunpack.c.l.b16 %v495
        %v1575 = vunpack.c.h.b16 %v495
        %v1576 = vunpack.c.l.b16 %v496
        %v1577 = vunpack.c.h.b16 %v496
        %v1578 = vunpack.c.l.b16 %v497
        %v1579 = vunpack.c.h.b16 %v497
        %v1580 = vunpack.c.l.b16 %v498
        %v1581 = vunpack.c.h.b16 %v498
        %v1582 = vunpack.c.l.b16 %v499
        %v1583 = vunpack.c.h.b16 %v499
        %v1584 = vunpack.c.l.b16 %v500
        %v1585 = vunpack.c.h.b16 %v500
        %v1586 = vunpack.c.l.b16 %v501
        %v1587 = vunpack.c.h.b16 %v501
        %v1588 = vunpack.c.l.b16 %v502
        %v1589 = vunpack.c.h.b16 %v502
        %v1590 = vunpack.c.l.b16 %v503
        %v1591 = vunpack.c.h.b16 %v503
        %v1592 = vunpack.c.l.b16 %v504
        %v1593 = vunpack.c.h.b16 %v504
        %v1594 = vunpack.c.l.b16 %v505
        %v1595 = vunpack.c.h.b16 %v505
        %v1596 = vunpack.c.l.b16 %v506
        %v1597 = vunpack.c.h.b16 %v506
        %v1598 = vunpack.c.l.b16 %v507
        %v1599 = vunpack.c.h.b16 %v507
        %v1600 = vunpack.c.l.b16 %v508
        %v1601 = vunpack.c.h.b16 %v508
        %v1602 = vunpack.c.l.b16 %v509
        %v1603 = vunpack.c.h.b16 %v509
        %v1604 = vunpack.c.l.b16 %v510
        %v1605 = vunpack.c.h.b16 %v510
        %v1606 = vunpack.c.l.b16 %v511
        %v1607 = vunpack.c.h.b16 %v511
        %v1608 = vunpack.c.l.b16 %v512
        %v1609 = vunpack.c.h.b16 %v512
        %v1610 = vunpack.c.l.b16 %v513
        %v1611 = vunpack.c.h.b16 %v513
        %v1612 = vunpack.c.l.b16 %v514
        %v1613 = vunpack.c.h.b16 %v514
        %v1614 = vunpack.c.l.b16 %v515
        %v1615 = vunpack.c.h.b16 %v515
        %v1616 = vunpack.c.l.b16 %v516
        %v1617 = vunpack.c.h.b16 %v516
        %v1618 = vunpack.c.l.b16 %v517
        %v1619 = vunpack.c.h.b16 %v517
        %v1620 = vunpack.c.l.b16 %v518
        %v1621 = vunpack.c.h.b16 %v518
        %v1622 = vunpack.c.l.b16 %v519
        %v1623 = vunpack.c.h.b16 %v519
        %v1624 = vunpack.c.l.b16 %v520
        %v1625 = vunpack.c.h.b16 %v520
        %v1626 = vunpack.c.l.b16 %v521
        %v1627 = vunpack.c.h.b16 %v521
        %v1628 = vunpack.c.l.b16 %v522
        %v1629 = vunpack.c.h.b16 %v522
        %v1630 = vunpack.c.l.b16 %v523
        %v1631 = vunpack.c.h.b16 %v523
        %v1632 = vunpack.c.l.b16 %v524
        %v1633 = vunpack.c.h.b16 %v524
        %v1634 = vunpack.c.l.b16 %v525
        %v1635 = vunpack.c.h.b16 %v525
        %v1636 = vunpack.c.l.b16 %v526
        %v1637 = vunpack.c.h.b16 %v526
        %v1638 = vunpack.c.l.b16 %v527
        %v1639 = vunpack.c.h.b16 %v527
        %v1640 = vunpack.c.l.b16 %v528
        %v1641 = vunpack.c.h.b16 %v528
        %v1642 = vunpack.c.l.b16 %v529
        %v1643 = vunpack.c.h.b16 %v529
        %v1644 = vunpack.c.l.b16 %v530
        %v1645 = vunpack.c.h.b16 %v530
        %v1646 = vunpack.c.l.b16 %v531
        %v1647 = vunpack.c.h.b16 %v531
        %v1648 = vunpack.c.l.b16 %v532
        %v1649 = vunpack.c.h.b16 %v532
        %v1650 = vunpack.c.l.b16 %v533
        %v1651 = vunpack.c.h.b16 %v533
        %v1652 = vunpack.c.l.b16 %v534
        %v1653 = vunpack.c.h.b16 %v534
        %v1654 = vunpack.c.l.b16 %v535
        %v1655 = vunpack.c.h.b16 %v535
        %v1656 = vunpack.c.l.b16 %v536
        %v1657 = vunpack.c.h.b16 %v536
        %v1658 = vunpack.c.l.b16 %v537
        %v1659 = vunpack.c.h.b16 %v537
        %v1660 = vunpack.c.l.b16 %v538
        %v1661 = vunpack.c.h.b16 %v538
        %v1662 = vunpack.c.l.b16 %v539
        %v1663 = vunpack.c.h.b16 %v539
        %v1664 = vunpack.c.l.b16 %v540
        %v1665 = vunpack.c.h.b16 %v540
        %v1666 = vunpack.c.l.b16 %v541
        %v1667 = vunpack.c.h.b16 %v541
        %v1668 = vunpack.c.l.b16 %v542
        %v1669 = vunpack.c.h.b16 %v542
        %v1670 = vunpack.c.l.b16 %v543
        %v1671 = vunpack.c.h.b16 %v543
        %v1672 = vunpack.c.l.b16 %v544
        %v1673 = vunpack.c.h.b16 %v544
        %v1674 = vunpack.c.l.b16 %v545
        %v1675 = vunpack.c.h.b16 %v545
        %v1676 = vunpack.c.l.b16 %v546
        %v1677 = vunpack.c.h.b16 %v546
        %v1678 = vunpack.c.l.b16 %v547
        %v1679 = vunpack.c.h.b16 %v547
        %v1680 = vunpack.c.l.b16 %v548
        %v1681 = vunpack.c.h.b16 %v548
        %v1682 = vunpack.c.l.b16 %v549
        %v1683 = vunpack.c.h.b16 %v549
        %v1684 = vunpack.c.l.b16 %v550
        %v1685 = vunpack.c.h.b16 %v550
        %v1686 = vunpack.c.l.b16 %v551
        %v1687 = vunpack.c.h.b16 %v551
        %v1688 = vunpack.c.l.b16 %v552
        %v1689 = vunpack.c.h.b16 %v552
        %v1690 = vunpack.c.l.b16 %v553
        %v1691 = vunpack.c.h.b16 %v553
        %v1692 = vunpack.c.l.b16 %v554
        %v1693 = vunpack.c.h.b16 %v554
        %v1694 = vunpack.c.l.b16 %v555
        %v1695 = vunpack.c.h.b16 %v555
        %v1696 = vunpack.c.l.b16 %v556
        %v1697 = vunpack.c.h.b16 %v556
        %v1698 = vunpack.c.l.b16 %v557
        %v1699 = vunpack.c.h.b16 %v557
        %v1700 = vunpack.c.l.b16 %v558
        %v1701 = vunpack.c.h.b16 %v558
        %v1702 = vunpack.c.l.b16 %v559
        %v1703 = vunpack.c.h.b16 %v559
        %v1704 = vunpack.c.l.b16 %v560
        %v1705 = vunpack.c.h.b16 %v560
        %v1706 = vunpack.c.l.b16 %v561
        %v1707 = vunpack.c.h.b16 %v561
        %v1708 = vunpack.c.l.b16 %v562
        %v1709 = vunpack.c.h.b16 %v562
        %v1710 = vunpack.c.l.b16 %v563
        %v1711 = vunpack.c.h.b16 %v563
        %v1712 = vunpack.c.l.b16 %v564
        %v1713 = vunpack.c.h.b16 %v564
        %v1714 = vunpack.c.l.b16 %v565
        %v1715 = vunpack.c.h.b16 %v565
        %v1716 = vunpack.c.l.b16 %v566
        %v1717 = vunpack.c.h.b16 %v566
        %v1718 = vunpack.c.l.b16 %v567
        %v1719 = vunpack.c.h.b16 %v567
        %v1720 = vunpack.c.l.b16 %v568
        %v1721 = vunpack.c.h.b16 %v568
        %v1722 = vunpack.c.l.b16 %v569
        %v1723 = vunpack.c.h.b16 %v569
        %v1724 = vunpack.c.l.b16 %v570
        %v1725 = vunpack.c.h.b16 %v570
        %v1726 = vunpack.c.l.b16 %v571
        %v1727 = vunpack.c.h.b16 %v571
        %v1728 = vunpack.c.l.b16 %v572
        %v1729 = vunpack.c.h.b16 %v572
        %v1730 = vunpack.c.l.b16 %v573
        %v1731 = vunpack.c.h.b16 %v573
        %v1732 = vunpack.c.l.b16 %v574
        %v1733 = vunpack.c.h.b16 %v574
        %v1734 = vunpack.c.l.b16 %v575
        %v1735 = vunpack.c.h.b16 %v575
        %v1736 = vunpack.c.l.b16 %v576
        %v1737 = vunpack.c.h.b16 %v576
        %v1738 = vunpack.c.l.b16 %v577
        %v1739 = vunpack.c.h.b16 %v577
        %v1740 = vunpack.c.l.b16 %v578
        %v1741 = vunpack.c.h.b16 %v578
        %v1742 = vunpack.c.l.b16 %v579
        %v1743 = vunpack.c.h.b16 %v579
        %v1744 = vunpack.c.l.b16 %v580
        %v1745 = vunpack.c.h.b16 %v580
        %v1746 = vunpack.c.l.b16 %v581
        %v1747 = vunpack.c.h.b16 %v581
        %v1748 = vunpack.c.l.b16 %v582
        %v1749 = vunpack.c.h.b16 %v582
        %v1750 = vunpack.c.l.b16 %v583
        %v1751 = vunpack.c.h.b16 %v583
        %v1752 = vunpack.c.l.b16 %v584
        %v1753 = vunpack.c.h.b16 %v584
        %v1754 = vunpack.c.l.b16 %v585
        %v1755 = vunpack.c.h.b16 %v585
        %v1756 = vunpack.c.l.b16 %v586
        %v1757 = vunpack.c.h.b16 %v586
        %v1758 = vunpack.c.l.b16 %v587
        %v1759 = vunpack.c.h.b16 %v587
        %v1760 = vunpack.c.l.b16 %v588
        %v1761 = vunpack.c.h.b16 %v588
        %v1762 = vunpack.c.l.b16 %v589
        %v1763 = vunpack.c.h.b16 %v589
        %v1764 = vunpack.c.l.b16 %v590
        %v1765 = vunpack.c.h.b16 %v590
        %v1766 = vunpack.c.l.b16 %v591
        %v1767 = vunpack.c.h.b16 %v591
        %v1768 = vunpack.c.l.b16 %v592
        %v1769 = vunpack.c.h.b16 %v592
        %v1770 = vunpack.c.l.b16 %v593
        %v1771 = vunpack.c.h.b16 %v593
        %v1772 = vunpack.c.l.b16 %v594
        %v1773 = vunpack.c.h.b16 %v594
        %v1774 = vunpack.c.l.b16 %v595
        %v1775 = vunpack.c.h.b16 %v595
        %v1776 = vunpack.c.l.b16 %v596
        %v1777 = vunpack.c.h.b16 %v596
        %v1778 = vunpack.c.l.b16 %v597
        %v1779 = vunpack.c.h.b16 %v597
        %v1780 = vunpack.c.l.b16 %v598
        %v1781 = vunpack.c.h.b16 %v598
        %v1782 = vunpack.c.l.b16 %v599
        %v1783 = vunpack.c.h.b16 %v599
        %v1784 = vunpack.c.l.b16 %v600
        %v1785 = vunpack.c.h.b16 %v600
        %v1786 = vunpack.c.l.b16 %v601
        %v1787 = vunpack.c.h.b16 %v601
        %v1788 = vunpack.c.l.b16 %v602
        %v1789 = vunpack.c.h.b16 %v602
        %v1790 = vunpack.c.l.b16 %v603
        %v1791 = vunpack.c.h.b16 %v603
        %v1792 = vunpack.c.l.b16 %v604
        %v1793 = vunpack.c.h.b16 %v604
        %v1794 = vunpack.c.l.b16 %v605
        %v1795 = vunpack.c.h.b16 %v605
        %v1796 = vunpack.c.l.b16 %v606
        %v1797 = vunpack.c.h.b16 %v606
        %v1798 = vunpack.c.l.b16 %v607
        %v1799 = vunpack.c.h.b16 %v607
        %v1800 = vunpack.c.l.b16 %v608
        %v1801 = vunpack.c.h.b16 %v608
        %v1802 = vunpack.c.l.b16 %v609
        %v1803 = vunpack.c.h.b16 %v609
        %v1804 = vunpack.c.l.b16 %v610
        %v1805 = vunpack.c.h.b16 %v610
        %v1806 = vunpack.c.l.b16 %v611
        %v1807 = vunpack.c.h.b16 %v611
        %v1808 = vunpack.c.l.b16 %v612
        %v1809 = vunpack.c.h.b16 %v612
        %v1810 = vunpack.c.l.b16 %v613
        %v1811 = vunpack.c.h.b16 %v613
        %v1812 = vunpack.c.l.b16 %v614
        %v1813 = vunpack.c.h.b16 %v614
        %v1814 = vunpack.c.l.b16 %v615
        %v1815 = vunpack.c.h.b16 %v615
        %v1816 = vunpack.c.l.b16 %v616
        %v1817 = vunpack.c.h.b16 %v616
        %v1818 = vunpack.c.l.b16 %v617
        %v1819 = vunpack.c.h.b16 %v617
        %v1820 = vunpack.c.l.b16 %v618
        %v1821 = vunpack.c.h.b16 %v618
        %v1822 = vunpack.c.l.b16 %v619
        %v1823 = vunpack.c.h.b16 %v619
        %v1824 = vunpack.c.l.b16 %v620
        %v1825 = vunpack.c.h.b16 %v620
        %v1826 = vunpack.c.l.b16 %v621
        %v1827 = vunpack.c.h.b16 %v621
        %v1828 = vunpack.c.l.b16 %v622
        %v1829 = vunpack.c.h.b16 %v622
        %v1830 = vunpack.c.l.b16 %v623
        %v1831 = vunpack.c.h.b16 %v623
        %v1832 = vunpack.c.l.b16 %v624
        %v1833 = vunpack.c.h.b16 %v624
        %v1834 = vunpack.c.l.b16 %v625
        %v1835 = vunpack.c.h.b16 %v625
        %v1836 = vunpack.c.l.b16 %v626
        %v1837 = vunpack.c.h.b16 %v626
        %v1838 = vunpack.c.l.b16 %v627
        %v1839 = vunpack.c.h.b16 %v627
        %v1840 = vunpack.c.l.b16 %v628
        %v1841 = vunpack.c.h.b16 %v628
        %v1842 = vunpack.c.l.b16 %v629
        %v1843 = vunpack.c.h.b16 %v629
        %v1844 = vunpack.c.l.b16 %v630
        %v1845 = vunpack.c.h.b16 %v630
        %v1846 = vunpack.c.l.b16 %v631
        %v1847 = vunpack.c.h.b16 %v631
        %v1848 = vunpack.c.l.b16 %v632
        %v1849 = vunpack.c.h.b16 %v632
        %v1850 = vunpack.c.l.b16 %v633
        %v1851 = vunpack.c.h.b16 %v633
        %v1852 = vunpack.c.l.b16 %v634
        %v1853 = vunpack.c.h.b16 %v634
        %v1854 = vunpack.c.l.b16 %v635
        %v1855 = vunpack.c.h.b16 %v635
        %v1856 = vunpack.c.l.b16 %v636
        %v1857 = vunpack.c.h.b16 %v636
        %v1858 = vunpack.c.l.b16 %v637
        %v1859 = vunpack.c.h.b16 %v637
        %v1860 = vunpack.c.l.b16 %v638
        %v1861 = vunpack.c.h.b16 %v638
        %v1862 = vunpack.c.l.b16 %v639
        %v1863 = vunpack.c.h.b16 %v639
        %v1864 = vunpack.c.l.b16 %v640
        %v1865 = vunpack.c.h.b16 %v640
        %v1866 = vunpack.c.l.b16 %v641
        %v1867 = vunpack.c.h.b16 %v641
        %v1868 = vunpack.c.l.b16 %v642
        %v1869 = vunpack.c.h.b16 %v642
        %v1870 = vunpack.c.l.b16 %v643
        %v1871 = vunpack.c.h.b16 %v643
        %v1872 = vunpack.c.l.b16 %v644
        %v1873 = vunpack.c.h.b16 %v644
        %v1874 = vunpack.c.l.b16 %v645
        %v1875 = vunpack.c.h.b16 %v645
        %v1876 = vunpack.c.l.b16 %v646
        %v1877 = vunpack.c.h.b16 %v646
        %v1878 = vunpack.c.l.b16 %v647
        %v1879 = vunpack.c.h.b16 %v647
        %v1880 = vunpack.c.l.b16 %v648
        %v1881 = vunpack.c.h.b16 %v648
        %v1882 = vunpack.c.l.b16 %v649
        %v1883 = vunpack.c.h.b16 %v649
        %v1884 = vunpack.c.l.b16 %v650
        %v1885 = vunpack.c.h.b16 %v650
        %v1886 = vunpack.c.l.b16 %v651
        %v1887 = vunpack.c.h.b16 %v651
        %v1888 = vunpack.c.l.b16 %v652
        %v1889 = vunpack.c.h.b16 %v652
        %v1890 = vunpack.c.l.b16 %v653
        %v1891 = vunpack.c.h.b16 %v653
        %v1892 = vunpack.c.l.b16 %v654
        %v1893 = vunpack.c.h.b16 %v654
        %v1894 = vunpack.c.l.b16 %v655
        %v1895 = vunpack.c.h.b16 %v655
        %v1896 = vunpack.c.l.b16 %v656
        %v1897 = vunpack.c.h.b16 %v656
        %v1898 = vunpack.c.l.b16 %v657
        %v1899 = vunpack.c.h.b16 %v657
        %v1900 = vunpack.c.l.b16 %v658
        %v1901 = vunpack.c.h.b16 %v658
        %v1902 = vunpack.c.l.b16 %v659
        %v1903 = vunpack.c.h.b16 %v659
        %v1904 = vunpack.c.l.b16 %v660
        %v1905 = vunpack.c.h.b16 %v660
        %v1906 = vunpack.c.l.b16 %v661
        %v1907 = vunpack.c.h.b16 %v661
        %v1908 = vunpack.c.l.b16 %v662
        %v1909 = vunpack.c.h.b16 %v662
        %v1910 = vunpack.c.l.b16 %v663
        %v1911 = vunpack.c.h.b16 %v663
        %v1912 = vunpack.c.l.b16 %v664
        %v1913 = vunpack.c.h.b16 %v664
        %v1914 = vunpack.c.l.b16 %v665
        %v1915 = vunpack.c.h.b16 %v665
        %v1916 = vunpack.c.l.b16 %v666
        %v1917 = vunpack.c.h.b16 %v666
        %v1918 = vunpack.c.l.b16 %v667
        %v1919 = vunpack.c.h.b16 %v667
        %v1920 = vunpack.c.l.b16 %v668
        %v1921 = vunpack.c.h.b16 %v668
        %v1922 = vunpack.c.l.b16 %v669
        %v1923 = vunpack.c.h.b16 %v669
        %v1924 = vunpack.c.l.b16 %v670
        %v1925 = vunpack.c.h.b16 %v670
        %v1926 = vunpack.c.l.b16 %v671
        %v1927 = vunpack.c.h.b16 %v671
        %v1928 = vunpack.c.l.b16 %v672
        %v1929 = vunpack.c.h.b16 %v672
        %v1930 = vunpack.c.l.b16 %v673
        %v1931 = vunpack.c.h.b16 %v673
        %v1932 = vunpack.c.l.b16 %v674
        %v1933 = vunpack.c.h.b16 %v674
        %v1934 = vunpack.c.l.b16 %v675
        %v1935 = vunpack.c.h.b16 %v675
        %v1936 = vunpack.c.l.b16 %v676
        %v1937 = vunpack.c.h.b16 %v676
        %v1938 = vunpack.c.l.b16 %v677
        %v1939 = vunpack.c.h.b16 %v677
        %v1940 = vunpack.c.l.b16 %v678
        %v1941 = vunpack.c.h.b16 %v678
        %v1942 = vunpack.c.l.b16 %v679
        %v1943 = vunpack.c.h.b16 %v679
        %v1944 = vunpack.c.l.b16 %v680
        %v1945 = vunpack.c.h.b16 %v680
        %v1946 = vunpack.c.l.b16 %v681
        %v1947 = vunpack.c.h.b16 %v681
        %v1948 = vunpack.c.l.b16 %v682
        %v1949 = vunpack.c.h.b16 %v682
        %v1950 = vunpack.c.l.b16 %v683
        %v1951 = vunpack.c.h.b16 %v683
        %v1952 = vunpack.c.l.b16 %v684
        %v1953 = vunpack.c.h.b16 %v684
        %v1954 = vunpack.c.l.b16 %v685
        %v1955 = vunpack.c.h.b16 %v685
        %v1956 = vpack.c.b16 %v1512, %v1508
        %v1957 = vpack.c.b16 %v1513, %v1509
        %v1958 = vpack.c.b16 %v1514, %v1510
        %v1959 = vpack.c.b16 %v1515, %v1511
        %v1960 = vpack.c.b16 %v1520, %v1516
        %v1961 = vpack.c.b16 %v1521, %v1517
        %v1962 = vpack.c.b16 %v1522, %v1518
        %v1963 = vpack.c.b16 %v1523, %v1519
        %v1964 = vpack.c.b16 %v1528, %v1524
        %v1965 = vpack.c.b16 %v1529, %v1525
        %v1966 = vpack.c.b16 %v1530, %v1526
        %v1967 = vpack.c.b16 %v1531, %v1527
        %v1968 = vpack.c.b16 %v1536, %v1532
        %v1969 = vpack.c.b16 %v1537, %v1533
        %v1970 = vpack.c.b16 %v1538, %v1534
        %v1971 = vpack.c.b16 %v1539, %v1535
        %v1972 = vpack.c.b16 %v1544, %v1540
        %v1973 = vpack.c.b16 %v1545, %v1541
        %v1974 = vpack.c.b16 %v1546, %v1542
        %v1975 = vpack.c.b16 %v1547, %v1543
        %v1976 = vpack.c.b16 %v1552, %v1548
        %v1977 = vpack.c.b16 %v1553, %v1549
        %v1978 = vpack.c.b16 %v1554, %v1550
        %v1979 = vpack.c.b16 %v1555, %v1551
        %v1980 = vpack.c.b16 %v1560, %v1556
        %v1981 = vpack.c.b16 %v1561, %v1557
        %v1982 = vpack.c.b16 %v1562, %v1558
        %v1983 = vpack.c.b16 %v1563, %v1559
        %v1984 = vpack.c.b16 %v1568, %v1564
        %v1985 = vpack.c.b16 %v1569, %v1565
        %v1986 = vpack.c.b16 %v1570, %v1566
        %v1987 = vpack.c.b16 %v1571, %v1567
        %v1988 = vpack.c.b16 %v1576, %v1572
        %v1989 = vpack.c.b16 %v1577, %v1573
        %v1990 = vpack.c.b16 %v1578, %v1574
        %v1991 = vpack.c.b16 %v1579, %v1575
        %v1992 = vpack.c.b16 %v1584, %v1580
        %v1993 = vpack.c.b16 %v1585, %v1581
        %v1994 = vpack.c.b16 %v1586, %v1582
        %v1995 = vpack.c.b16 %v1587, %v1583
        %v1996 = vpack.c.b16 %v1592, %v1588
        %v1997 = vpack.c.b16 %v1593, %v1589
        %v1998 = vpack.c.b16 %v1594, %v1590
        %v1999 = vpack.c.b16 %v1595, %v1591
        %v2000 = vpack.c.b16 %v1600, %v1596
        %v2001 = vpack.c.b16 %v1601, %v1597
        %v2002 = vpack.c.b16 %v1602, %v1598
        %v2003 = vpack.c.b16 %v1603, %v1599
        %v2004 = vpack.c.b16 %v1608, %v1604
        %v2005 = vpack.c.b16 %v1609, %v1605
        %v2006 = vpack.c.b16 %v1610, %v1606
        %v2007 = vpack.c.b16 %v1611, %v1607
        %v2008 = vpack.c.b16 %v1616, %v1612
        %v2009 = vpack.c.b16 %v1617, %v1613
        %v2010 = vpack.c.b16 %v1618, %v1614
        %v2011 = vpack.c.b16 %v1619, %v1615
        %v2012 = vpack.c.b16 %v1624, %v1620
        %v2013 = vpack.c.b16 %v1625, %v1621
        %v2014 = vpack.c.b16 %v1626, %v1622
        %v2015 = vpack.c.b16 %v1627, %v1623
        %v2016 = vpack.c.b16 %v1632, %v1628
        %v2017 = vpack.c.b16 %v1633, %v1629
        %v2018 = vpack.c.b16 %v1634, %v1630
        %v2019 = vpack.c.b16 %v1635, %v1631
        %v2020 = vpack.c.b16 %v1640, %v1636
        %v2021 = vpack.c.b16 %v1641, %v1637
        %v2022 = vpack.c.b16 %v1642, %v1638
        %v2023 = vpack.c.b16 %v1643, %v1639
        %v2024 = vpack.c.b16 %v1648, %v1644
        %v2025 = vpack.c.b16 %v1649, %v1645
        %v2026 = vpack.c.b16 %v1650, %v1646
        %v2027 = vpack.c.b16 %v1651, %v1647
        %v2028 = vpack.c.b16 %v1656, %v1652
        %v2029 = vpack.c.b16 %v1657, %v1653
        %v2030 = vpack.c.b16 %v1658, %v1654
        %v2031 = vpack.c.b16 %v1659, %v1655
        %v2032 = vpack.c.b16 %v1664, %v1660
        %v2033 = vpack.c.b16 %v1665, %v1661
        %v2034 = vpack.c.b16 %v1666, %v1662
        %v2035 = vpack.c.b16 %v1667, %v1663
        %v2036 = vpack.c.b16 %v1672, %v1668
        %v2037 = vpack.c.b16 %v1673, %v1669
        %v2038 = vpack.c.b16 %v1674, %v1670
        %v2039 = vpack.c.b16 %v1675, %v1671
        %v2040 = vpack.c.b16 %v1680, %v1676
        %v2041 = vpack.c.b16 %v1681, %v1677
        %v2042 = vpack.c.b16 %v1682, %v1678
        %v2043 = vpack.c.b16 %v1683, %v1679
        %v2044 = vpack.c.b16 %v1688, %v1684
        %v2045 = vpack.c.b16 %v1689, %v1685
        %v2046 = vpack.c.b16 %v1690, %v1686
        %v2047 = vpack.c.b16 %v1691, %v1687
        %v2048 = vpack.c.b16 %v1696, %v1692
        %v2049 = vpack.c.b16 %v1697, %v1693
        %v2050 = vpack.c.b16 %v1698, %v1694
        %v2051 = vpack.c.b16 %v1699, %v1695
        %v2052 = vpack.c.b16 %v1704, %v1700
        %v2053 = vpack.c.b16 %v1705, %v1701
        %v2054 = vpack.c.b16 %v1706, %v1702
        %v2055 = vpack.c.b16 %v1707, %v1703
        %v2056 = vpack.c.b16 %v1712, %v1708
        %v2057 = vpack.c.b16 %v1713, %v1709
        %v2058 = vpack.c.b16 %v1714, %v1710
        %v2059 = vpack.c.b16 %v1715, %v1711
        %v2060 = vpack.c.b16 %v1720, %v1716
        %v2061 = vpack.c.b16 %v1721, %v1717
        %v2062 = vpack.c.b16 %v1722, %v1718
        %v2063 = vpack.c.b16 %v1723, %v1719
        %v2064 = vpack.c.b16 %v1728, %v1724
        %v2065 = vpack.c.b16 %v1729, %v1725
        %v2066 = vpack.c.b16 %v1730, %v1726
        %v2067 = vpack.c.b16 %v1731, %v1727
        %v2068 = vpack.c.b16 %v1736, %v1732
        %v2069 = vpack.c.b16 %v1737, %v1733
        %v2070 = vpack.c.b16 %v1738, %v1734
        %v2071 = vpack.c.b16 %v1739, %v1735
        %v2072 = vpack.c.b16 %v1744, %v1740
        %v2073 = vpack.c.b16 %v1745, %v1741
        %v2074 = vpack.c.b16 %v1746, %v1742
        %v2075 = vpack.c.b16 %v1747, %v1743
        %v2076 = vpack.c.b16 %v1752, %v1748
        %v2077 = vpack.c.b16 %v1753, %v1749
        %v2078 = vpack.c.b16 %v1754, %v1750
        %v2079 = vpack.c.b16 %v1755, %v1751
        %v2080 = vpack.c.b16 %v1760, %v1756
        %v2081 = vpack.c.b16 %v1761, %v1757
        %v2082 = vpack.c.b16 %v1762, %v1758
        %v2083 = vpack.c.b16 %v1763, %v1759
        %v2084 = vpack.c.b16 %v1768, %v1764
        %v2085 = vpack.c.b16 %v1769, %v1765
        %v2086 = vpack.c.b16 %v1770, %v1766
        %v2087 = vpack.c.b16 %v1771, %v1767
        %v2088 = vpack.c.b16 %v1776, %v1772
        %v2089 = vpack.c.b16 %v1777, %v1773
        %v2090 = vpack.c.b16 %v1778, %v1774
        %v2091 = vpack.c.b16 %v1779, %v1775
        %v2092 = vpack.c.b16 %v1784, %v1780
        %v2093 = vpack.c.b16 %v1785, %v1781
        %v2094 = vpack.c.b16 %v1786, %v1782
        %v2095 = vpack.c.b16 %v1787, %v1783
        %v2096 = vpack.c.b16 %v1792, %v1788
        %v2097 = vpack.c.b16 %v1793, %v1789
        %v2098 = vpack.c.b16 %v1794, %v1790
        %v2099 = vpack.c.b16 %v1795, %v1791
        %v2100 = vpack.c.b16 %v1800, %v1796
        %v2101 = vpack.c.b16 %v1801, %v1797
        %v2102 = vpack.c.b16 %v1802, %v1798
        %v2103 = vpack.c.b16 %v1803, %v1799
        %v2104 = vpack.c.b16 %v1808, %v1804
        %v2105 = vpack.c.b16 %v1809, %v1805
        %v2106 = vpack.c.b16 %v1810, %v1806
        %v2107 = vpack.c.b16 %v1811, %v1807
        %v2108 = vpack.c.b16 %v1816, %v1812
        %v2109 = vpack.c.b16 %v1817, %v1813
        %v2110 = vpack.c.b16 %v1818, %v1814
        %v2111 = vpack.c.b16 %v1819, %v1815
        %v2112 = vpack.c.b16 %v1824, %v1820
        %v2113 = vpack.c.b16 %v1825, %v1821
        %v2114 = vpack.c.b16 %v1826, %v1822
        %v2115 = vpack.c.b16 %v1827, %v1823
        %v2116 = vpack.c.b16 %v1832, %v1828
        %v2117 = vpack.c.b16 %v1833, %v1829
        %v2118 = vpack.c.b16 %v1834, %v1830
        %v2119 = vpack.c.b16 %v1835, %v1831
        %v2120 = vpack.c.b16 %v1840, %v1836
        %v2121 = vpack.c.b16 %v1841, %v1837
        %v2122 = vpack.c.b16 %v1842, %v1838
        %v2123 = vpack.c.b16 %v1843, %v1839
        %v2124 = vpack.c.b16 %v1848, %v1844
        %v2125 = vpack.c.b16 %v1849, %v1845
        %v2126 = vpack.c.b16 %v1850, %v1846
        %v2127 = vpack.c.b16 %v1851, %v1847
        %v2128 = vpack.c.b16 %v1856, %v1852
        %v2129 = vpack.c.b16 %v1857, %v1853
        %v2130 = vpack.c.b16 %v1858, %v1854
        %v2131 = vpack.c.b16 %v1859, %v1855
        %v2132 = vpack.c.b16 %v1864, %v1860
        %v2133 = vpack.c.b16 %v1865, %v1861
        %v2134 = vpack.c.b16 %v1866, %v1862
        %v2135 = vpack.c.b16 %v1867, %v1863
        %v2136 = vpack.c.b16 %v1872, %v1868
        %v2137 = vpack.c.b16 %v1873, %v1869
        %v2138 = vpack.c.b16 %v1874, %v1870
        %v2139 = vpack.c.b16 %v1875, %v1871
        %v2140 = vpack.c.b16 %v1880, %v1876
        %v2141 = vpack.c.b16 %v1881, %v1877
        %v2142 = vpack.c.b16 %v1882, %v1878
        %v2143 = vpack.c.b16 %v1883, %v1879
        %v2144 = vpack.c.b16 %v1888, %v1884
        %v2145 = vpack.c.b16 %v1889, %v1885
        %v2146 = vpack.c.b16 %v1890, %v1886
        %v2147 = vpack.c.b16 %v1891, %v1887
        %v2148 = vpack.c.b16 %v1896, %v1892
        %v2149 = vpack.c.b16 %v1897, %v1893
        %v2150 = vpack.c.b16 %v1898, %v1894
        %v2151 = vpack.c.b16 %v1899, %v1895
        %v2152 = vpack.c.b16 %v1904, %v1900
        %v2153 = vpack.c.b16 %v1905, %v1901
        %v2154 = vpack.c.b16 %v1906, %v1902
        %v2155 = vpack.c.b16 %v1907, %v1903
        %v2156 = vpack.c.b16 %v1912, %v1908
        %v2157 = vpack.c.b16 %v1913, %v1909
        %v2158 = vpack.c.b16 %v1914, %v1910
        %v2159 = vpack.c.b16 %v1915, %v1911
        %v2160 = vpack.c.b16 %v1920, %v1916
        %v2161 = vpack.c.b16 %v1921, %v1917
        %v2162 = vpack.c.b16 %v1922, %v1918
        %v2163 = vpack.c.b16 %v1923, %v1919
        %v2164 = vpack.c.b16 %v1928, %v1924
        %v2165 = vpack.c.b16 %v1929, %v1925
        %v2166 = vpack.c.b16 %v1930, %v1926
        %v2167 = vpack.c.b16 %v1931, %v1927
        %v2168 = vpack.c.b16 %v1936, %v1932
        %v2169 = vpack.c.b16 %v1937, %v1933
        %v2170 = vpack.c.b16 %v1938, %v1934
        %v2171 = vpack.c.b16 %v1939, %v1935
        %v2172 = vpack.c.b16 %v1944, %v1940
        %v2173 = vpack.c.b16 %v1945, %v1941
        %v2174 = vpack.c.b16 %v1946, %v1942
        %v2175 = vpack.c.b16 %v1947, %v1943
        %v2176 = vpack.c.b16 %v1952, %v1948
        %v2177 = vpack.c.b16 %v1953, %v1949
        %v2178 = vpack.c.b16 %v1954, %v1950
        %v2179 = vpack.c.b16 %v1955, %v1951
        %2404 = vmatprep.subr.bf16.mxu0 %v1957
        %2405 = vmatpush1.bf16.msra.mxu0 %v1956
        %2406 = vmatprep.subr.bf16.mxu0 %v1961
        %2407 = vmatpush1.bf16.msra.mxu0 %v1960
        %2408 = vmatprep.subr.bf16.mxu0 %v1965
        %2409 = vmatpush1.bf16.msra.mxu0 %v1964
        %2410 = vmatprep.subr.bf16.mxu0 %v1969
        %2411 = vmatpush1.bf16.msra.mxu0 %v1968
        %2412 = vmatprep.subr.bf16.mxu0 %v1973
        %2413 = vmatpush1.bf16.msra.mxu0 %v1972
        %2414 = vmatprep.subr.bf16.mxu0 %v1977
        %2415 = vmatpush1.bf16.msra.mxu0 %v1976
        %2416 = vmatprep.subr.bf16.mxu0 %v1981
        %2417 = vmatpush1.bf16.msra.mxu0 %v1980
        %2418 = vmatprep.subr.bf16.mxu0 %v1985
        %2419 = vmatpush1.bf16.msra.mxu0 %v1984
        %2420 = vmatprep.subr.bf16.mxu0 %v1989
        %2421 = vmatpush1.bf16.msra.mxu0 %v1988
        %2422 = vmatprep.subr.bf16.mxu0 %v1993
        %2423 = vmatpush1.bf16.msra.mxu0 %v1992
        %2424 = vmatprep.subr.bf16.mxu0 %v1997
        %2425 = vmatpush1.bf16.msra.mxu0 %v1996
        %2426 = vmatprep.subr.bf16.mxu0 %v2001
        %2427 = vmatpush1.bf16.msra.mxu0 %v2000
        %2428 = vmatprep.subr.bf16.mxu0 %v2005
        %2429 = vmatpush1.bf16.msra.mxu0 %v2004
        %2430 = vmatprep.subr.bf16.mxu0 %v2009
        %2431 = vmatpush1.bf16.msra.mxu0 %v2008
        %2432 = vmatprep.subr.bf16.mxu0 %v2013
        %2433 = vmatpush1.bf16.msra.mxu0 %v2012
        %2434 = vmatprep.subr.bf16.mxu0 %v2017
        %2435 = vmatpush1.bf16.msra.mxu0 %v2016
        %2436 = vmatprep.mubr.bf16.mxu0 %v1061
        %2437 = vmatmul.mubr.bf16.gmra.mrb[0].mxu0 %v1060
        %v2438 = vpop.f32.mrb[0].mxu0
        %v2439 = vadd.f32 %v691, %v2438
        %v2440 = vpop.f32.mrb[0].mxu0
        %v2441 = vadd.f32 %v695, %v2440
        %v2442 = vpop.f32.mrb[0].mxu0
        %v2443 = vadd.f32 %v691, %v2442
        %v2444 = vpop.f32.mrb[0].mxu0
        %v2445 = vadd.f32 %v695, %v2444
        %2446 = vmatprep.mubr.bf16.mxu0 %v1068
        %2447 = vmatmul.mubr.bf16.gmra.mrb[0].mxu0 %v1067
        %v2448 = vpop.f32.mrb[0].mxu0
        %v2449 = vadd.f32 %v691, %v2448
        %v2450 = vpop.f32.mrb[0].mxu0
        %v2451 = vadd.f32 %v695, %v2450
        %v2452 = vpop.f32.mrb[0].mxu0
        %v2453 = vadd.f32 %v691, %v2452
        %v2454 = vpop.f32.mrb[0].mxu0
        %v2455 = vadd.f32 %v695, %v2454
        %2456 = vmatprep.mubr.bf16.mxu0 %v1075
        %2457 = vmatmul.mubr.bf16.gmra.mrb[0].mxu0 %v1074
        %v2458 = vpop.f32.mrb[0].mxu0
        %v2459 = vadd.f32 %v691, %v2458
        %v2460 = vpop.f32.mrb[0].mxu0
        %v2461 = vadd.f32 %v695, %v2460
        %v2462 = vpop.f32.mrb[0].mxu0
        %v2463 = vadd.f32 %v691, %v2462
        %v2464 = vpop.f32.mrb[0].mxu0
        %v2465 = vadd.f32 %v695, %v2464
        %2466 = vmatprep.mubr.bf16.mxu0 %v1082
        %2467 = vmatmul.mubr.bf16.gmra.mrb[0].mxu0 %v1081
        %v2468 = vpop.f32.mrb[0].mxu0
        %v2469 = vadd.f32 %v691, %v2468
        %v2470 = vpop.f32.mrb[0].mxu0
        %v2471 = vadd.f32 %v695, %v2470
        %v2472 = vpop.f32.mrb[0].mxu0
        %v2473 = vadd.f32 %v691, %v2472
        %v2474 = vpop.f32.mrb[0].mxu0
        %v2475 = vadd.f32 %v695, %v2474
        %2476 = vmatprep.mubr.bf16.mxu0 %v1089
        %2477 = vmatmul.mubr.bf16.gmra.mrb[0].mxu0 %v1088
        %v2478 = vpop.f32.mrb[0].mxu0
        %v2479 = vadd.f32 %v691, %v2478
        %v2480 = vpop.f32.mrb[0].mxu0
        %v2481 = vadd.f32 %v695, %v2480
        %v2482 = vpop.f32.mrb[0].mxu0
        %v2483 = vadd.f32 %v691, %v2482
        %v2484 = vpop.f32.mrb[0].mxu0
        %v2485 = vadd.f32 %v695, %v2484
        %2486 = vmatprep.mubr.bf16.mxu0 %v1096
        %2487 = vmatmul.mubr.bf16.gmra.mrb[0].mxu0 %v1095
        %v2488 = vpop.f32.mrb[0].mxu0
        %v2489 = vadd.f32 %v691, %v2488
        %v2490 = vpop.f32.mrb[0].mxu0
        %v2491 = vadd.f32 %v695, %v2490
        %v2492 = vpop.f32.mrb[0].mxu0
        %v2493 = vadd.f32 %v691, %v2492
        %v2494 = vpop.f32.mrb[0].mxu0
        %v2495 = vadd.f32 %v695, %v2494
        %2496 = vmatprep.mubr.bf16.mxu0 %v1103
        %2497 = vmatmul.mubr.bf16.gmra.mrb[0].mxu0 %v1102
        %v2498 = vpop.f32.mrb[0].mxu0
        %v2499 = vadd.f32 %v691, %v2498
        %v2500 = vpop.f32.mrb[0].mxu0
        %v2501 = vadd.f32 %v695, %v2500
        %v2502 = vpop.f32.mrb[0].mxu0
        %v2503 = vadd.f32 %v691, %v2502
        %v2504 = vpop.f32.mrb[0].mxu0
        %v2505 = vadd.f32 %v695, %v2504
        %2506 = vmatprep.mubr.bf16.mxu0 %v1110
        %2507 = vmatmul.mubr.bf16.gmra.mrb[0].mxu0 %v1109
        %v2508 = vpop.f32.mrb[0].mxu0
        %v2509 = vadd.f32 %v691, %v2508
        %v2510 = vpop.f32.mrb[0].mxu0
        %v2511 = vadd.f32 %v695, %v2510
        %v2512 = vpop.f32.mrb[0].mxu0
        %v2513 = vadd.f32 %v691, %v2512
        %v2514 = vpop.f32.mrb[0].mxu0
        %v2515 = vadd.f32 %v695, %v2514
        %2516 = vmatprep.mubr.bf16.mxu0 %v1117
        %2517 = vmatmul.mubr.bf16.gmra.mrb[0].mxu0 %v1116
        %v2518 = vpop.f32.mrb[0].mxu0
        %v2519 = vadd.f32 %v691, %v2518
        %v2520 = vpop.f32.mrb[0].mxu0
        %v2521 = vadd.f32 %v695, %v2520
        %v2522 = vpop.f32.mrb[0].mxu0
        %v2523 = vadd.f32 %v691, %v2522
        %v2524 = vpop.f32.mrb[0].mxu0
        %v2525 = vadd.f32 %v695, %v2524
        %2526 = vmatprep.mubr.bf16.mxu0 %v1124
        %2527 = vmatmul.mubr.bf16.gmra.mrb[0].mxu0 %v1123
        %v2528 = vpop.f32.mrb[0].mxu0
        %v2529 = vadd.f32 %v691, %v2528
        %v2530 = vpop.f32.mrb[0].mxu0
        %v2531 = vadd.f32 %v695, %v2530
        %v2532 = vpop.f32.mrb[0].mxu0
        %v2533 = vadd.f32 %v691, %v2532
        %v2534 = vpop.f32.mrb[0].mxu0
        %v2535 = vadd.f32 %v695, %v2534
        %2536 = vmatprep.mubr.bf16.mxu0 %v1131
        %2537 = vmatmul.mubr.bf16.gmra.mrb[0].mxu0 %v1130
        %v2538 = vpop.f32.mrb[0].mxu0
        %v2539 = vadd.f32 %v691, %v2538
        %v2540 = vpop.f32.mrb[0].mxu0
        %v2541 = vadd.f32 %v695, %v2540
        %v2542 = vpop.f32.mrb[0].mxu0
        %v2543 = vadd.f32 %v691, %v2542
        %v2544 = vpop.f32.mrb[0].mxu0
        %v2545 = vadd.f32 %v695, %v2544
        %2546 = vmatprep.mubr.bf16.mxu0 %v1138
        %2547 = vmatmul.mubr.bf16.gmra.mrb[0].mxu0 %v1137
        %v2548 = vpop.f32.mrb[0].mxu0
        %v2549 = vadd.f32 %v691, %v2548
        %v2550 = vpop.f32.mrb[0].mxu0
        %v2551 = vadd.f32 %v695, %v2550
        %v2552 = vpop.f32.mrb[0].mxu0
        %v2553 = vadd.f32 %v691, %v2552
        %v2554 = vpop.f32.mrb[0].mxu0
        %v2555 = vadd.f32 %v695, %v2554
        %2556 = vmatprep.mubr.bf16.mxu0 %v1145
        %2557 = vmatmul.mubr.bf16.gmra.mrb[0].mxu0 %v1144
        %v2558 = vpop.f32.mrb[0].mxu0
        %v2559 = vadd.f32 %v691, %v2558
        %v2560 = vpop.f32.mrb[0].mxu0
        %v2561 = vadd.f32 %v695, %v2560
        %v2562 = vpop.f32.mrb[0].mxu0
        %v2563 = vadd.f32 %v691, %v2562
        %v2564 = vpop.f32.mrb[0].mxu0
        %v2565 = vadd.f32 %v695, %v2564
        %2566 = vmatprep.mubr.bf16.mxu0 %v1152
        %2567 = vmatmul.mubr.bf16.gmra.mrb[0].mxu0 %v1151
        %v2568 = vpop.f32.mrb[0].mxu0
        %v2569 = vadd.f32 %v691, %v2568
        %v2570 = vpop.f32.mrb[0].mxu0
        %v2571 = vadd.f32 %v695, %v2570
        %v2572 = vpop.f32.mrb[0].mxu0
        %v2573 = vadd.f32 %v691, %v2572
        %v2574 = vpop.f32.mrb[0].mxu0
        %v2575 = vadd.f32 %v695, %v2574
        %2576 = vmatprep.mubr.bf16.mxu0 %v1159
        %2577 = vmatmul.mubr.bf16.gmra.mrb[0].mxu0 %v1158
        %v2578 = vpop.f32.mrb[0].mxu0
        %v2579 = vadd.f32 %v691, %v2578
        %v2580 = vpop.f32.mrb[0].mxu0
        %v2581 = vadd.f32 %v695, %v2580
        %v2582 = vpop.f32.mrb[0].mxu0
        %v2583 = vadd.f32 %v691, %v2582
        %v2584 = vpop.f32.mrb[0].mxu0
        %v2585 = vadd.f32 %v695, %v2584
        %2586 = vmatprep.mubr.bf16.mxu0 %v1166
        %2587 = vmatmul.mubr.bf16.gmra.mrb[0].mxu0 %v1165
        %v2588 = vpop.f32.mrb[0].mxu0
        %v2589 = vadd.f32 %v691, %v2588
        %v2590 = vpop.f32.mrb[0].mxu0
        %v2591 = vadd.f32 %v695, %v2590
        %v2592 = vpop.f32.mrb[0].mxu0
        %v2593 = vadd.f32 %v691, %v2592
        %v2594 = vpop.f32.mrb[0].mxu0
        %v2595 = vadd.f32 %v695, %v2594
        %2596 = vdwg.mxu0
        %2597 = vmatprep.subr.bf16.mxu0 %v2021
        %2598 = vmatpush1.bf16.msra.mxu0 %v2020
        %2599 = vmatprep.subr.bf16.mxu0 %v2025
        %2600 = vmatpush1.bf16.msra.mxu0 %v2024
        %2601 = vmatprep.subr.bf16.mxu0 %v2029
        %2602 = vmatpush1.bf16.msra.mxu0 %v2028
        %2603 = vmatprep.subr.bf16.mxu0 %v2033
        %2604 = vmatpush1.bf16.msra.mxu0 %v2032
        %2605 = vmatprep.subr.bf16.mxu0 %v2037
        %2606 = vmatpush1.bf16.msra.mxu0 %v2036
        %2607 = vmatprep.subr.bf16.mxu0 %v2041
        %2608 = vmatpush1.bf16.msra.mxu0 %v2040
        %2609 = vmatprep.subr.bf16.mxu0 %v2045
        %2610 = vmatpush1.bf16.msra.mxu0 %v2044
        %2611 = vmatprep.subr.bf16.mxu0 %v2049
        %2612 = vmatpush1.bf16.msra.mxu0 %v2048
        %2613 = vmatprep.subr.bf16.mxu0 %v2053
        %2614 = vmatpush1.bf16.msra.mxu0 %v2052
        %2615 = vmatprep.subr.bf16.mxu0 %v2057
        %2616 = vmatpush1.bf16.msra.mxu0 %v2056
        %2617 = vmatprep.subr.bf16.mxu0 %v2061
        %2618 = vmatpush1.bf16.msra.mxu0 %v2060
        %2619 = vmatprep.subr.bf16.mxu0 %v2065
        %2620 = vmatpush1.bf16.msra.mxu0 %v2064
        %2621 = vmatprep.subr.bf16.mxu0 %v2069
        %2622 = vmatpush1.bf16.msra.mxu0 %v2068
        %2623 = vmatprep.subr.bf16.mxu0 %v2073
        %2624 = vmatpush1.bf16.msra.mxu0 %v2072
        %2625 = vmatprep.subr.bf16.mxu0 %v2077
        %2626 = vmatpush1.bf16.msra.mxu0 %v2076
        %2627 = vmatprep.subr.bf16.mxu0 %v2081
        %2628 = vmatpush1.bf16.msra.mxu0 %v2080
        %2629 = vmatprep.mubr.bf16.mxu0 %v1063
        %2630 = vmatmul.mubr.bf16.gmra.mrb[0].mxu0 %v1062
        %v2631 = vpop.f32.mrb[0].mxu0
        %v2632 = vadd.f32 %v2439, %v2631
        %v2633 = vpop.f32.mrb[0].mxu0
        %v2634 = vadd.f32 %v2441, %v2633
        %v2635 = vpop.f32.mrb[0].mxu0
        %v2636 = vadd.f32 %v2443, %v2635
        %v2637 = vpop.f32.mrb[0].mxu0
        %v2638 = vadd.f32 %v2445, %v2637
        %2639 = vmatprep.mubr.bf16.mxu0 %v1070
        %2640 = vmatmul.mubr.bf16.gmra.mrb[0].mxu0 %v1069
        %v2641 = vpop.f32.mrb[0].mxu0
        %v2642 = vadd.f32 %v2449, %v2641
        %v2643 = vpop.f32.mrb[0].mxu0
        %v2644 = vadd.f32 %v2451, %v2643
        %v2645 = vpop.f32.mrb[0].mxu0
        %v2646 = vadd.f32 %v2453, %v2645
        %v2647 = vpop.f32.mrb[0].mxu0
        %v2648 = vadd.f32 %v2455, %v2647
        %2649 = vmatprep.mubr.bf16.mxu0 %v1077
        %2650 = vmatmul.mubr.bf16.gmra.mrb[0].mxu0 %v1076
        %v2651 = vpop.f32.mrb[0].mxu0
        %v2652 = vadd.f32 %v2459, %v2651
        %v2653 = vpop.f32.mrb[0].mxu0
        %v2654 = vadd.f32 %v2461, %v2653
        %v2655 = vpop.f32.mrb[0].mxu0
        %v2656 = vadd.f32 %v2463, %v2655
        %v2657 = vpop.f32.mrb[0].mxu0
        %v2658 = vadd.f32 %v2465, %v2657
        %2659 = vmatprep.mubr.bf16.mxu0 %v1084
        %2660 = vmatmul.mubr.bf16.gmra.mrb[0].mxu0 %v1083
        %v2661 = vpop.f32.mrb[0].mxu0
        %v2662 = vadd.f32 %v2469, %v2661
        %v2663 = vpop.f32.mrb[0].mxu0
        %v2664 = vadd.f32 %v2471, %v2663
        %v2665 = vpop.f32.mrb[0].mxu0
        %v2666 = vadd.f32 %v2473, %v2665
        %v2667 = vpop.f32.mrb[0].mxu0
        %v2668 = vadd.f32 %v2475, %v2667
        %2669 = vmatprep.mubr.bf16.mxu0 %v1091
        %2670 = vmatmul.mubr.bf16.gmra.mrb[0].mxu0 %v1090
        %v2671 = vpop.f32.mrb[0].mxu0
        %v2672 = vadd.f32 %v2479, %v2671
        %v2673 = vpop.f32.mrb[0].mxu0
        %v2674 = vadd.f32 %v2481, %v2673
        %v2675 = vpop.f32.mrb[0].mxu0
        %v2676 = vadd.f32 %v2483, %v2675
        %v2677 = vpop.f32.mrb[0].mxu0
        %v2678 = vadd.f32 %v2485, %v2677
        %2679 = vmatprep.mubr.bf16.mxu0 %v1098
        %2680 = vmatmul.mubr.bf16.gmra.mrb[0].mxu0 %v1097
        %v2681 = vpop.f32.mrb[0].mxu0
        %v2682 = vadd.f32 %v2489, %v2681
        %v2683 = vpop.f32.mrb[0].mxu0
        %v2684 = vadd.f32 %v2491, %v2683
        %v2685 = vpop.f32.mrb[0].mxu0
        %v2686 = vadd.f32 %v2493, %v2685
        %v2687 = vpop.f32.mrb[0].mxu0
        %v2688 = vadd.f32 %v2495, %v2687
        %2689 = vmatprep.mubr.bf16.mxu0 %v1105
        %2690 = vmatmul.mubr.bf16.gmra.mrb[0].mxu0 %v1104
        %v2691 = vpop.f32.mrb[0].mxu0
        %v2692 = vadd.f32 %v2499, %v2691
        %v2693 = vpop.f32.mrb[0].mxu0
        %v2694 = vadd.f32 %v2501, %v2693
        %v2695 = vpop.f32.mrb[0].mxu0
        %v2696 = vadd.f32 %v2503, %v2695
        %v2697 = vpop.f32.mrb[0].mxu0
        %v2698 = vadd.f32 %v2505, %v2697
        %2699 = vmatprep.mubr.bf16.mxu0 %v1112
        %2700 = vmatmul.mubr.bf16.gmra.mrb[0].mxu0 %v1111
        %v2701 = vpop.f32.mrb[0].mxu0
        %v2702 = vadd.f32 %v2509, %v2701
        %v2703 = vpop.f32.mrb[0].mxu0
        %v2704 = vadd.f32 %v2511, %v2703
        %v2705 = vpop.f32.mrb[0].mxu0
        %v2706 = vadd.f32 %v2513, %v2705
        %v2707 = vpop.f32.mrb[0].mxu0
        %v2708 = vadd.f32 %v2515, %v2707
        %2709 = vmatprep.mubr.bf16.mxu0 %v1119
        %2710 = vmatmul.mubr.bf16.gmra.mrb[0].mxu0 %v1118
        %v2711 = vpop.f32.mrb[0].mxu0
        %v2712 = vadd.f32 %v2519, %v2711
        %v2713 = vpop.f32.mrb[0].mxu0
        %v2714 = vadd.f32 %v2521, %v2713
        %v2715 = vpop.f32.mrb[0].mxu0
        %v2716 = vadd.f32 %v2523, %v2715
        %v2717 = vpop.f32.mrb[0].mxu0
        %v2718 = vadd.f32 %v2525, %v2717
        %2719 = vmatprep.mubr.bf16.mxu0 %v1126
        %2720 = vmatmul.mubr.bf16.gmra.mrb[0].mxu0 %v1125
        %v2721 = vpop.f32.mrb[0].mxu0
        %v2722 = vadd.f32 %v2529, %v2721
        %v2723 = vpop.f32.mrb[0].mxu0
        %v2724 = vadd.f32 %v2531, %v2723
        %v2725 = vpop.f32.mrb[0].mxu0
        %v2726 = vadd.f32 %v2533, %v2725
        %v2727 = vpop.f32.mrb[0].mxu0
        %v2728 = vadd.f32 %v2535, %v2727
        %2729 = vmatprep.mubr.bf16.mxu0 %v1133
        %2730 = vmatmul.mubr.bf16.gmra.mrb[0].mxu0 %v1132
        %v2731 = vpop.f32.mrb[0].mxu0
        %v2732 = vadd.f32 %v2539, %v2731
        %v2733 = vpop.f32.mrb[0].mxu0
        %v2734 = vadd.f32 %v2541, %v2733
        %v2735 = vpop.f32.mrb[0].mxu0
        %v2736 = vadd.f32 %v2543, %v2735
        %v2737 = vpop.f32.mrb[0].mxu0
        %v2738 = vadd.f32 %v2545, %v2737
        %2739 = vmatprep.mubr.bf16.mxu0 %v1140
        %2740 = vmatmul.mubr.bf16.gmra.mrb[0].mxu0 %v1139
        %v2741 = vpop.f32.mrb[0].mxu0
        %v2742 = vadd.f32 %v2549, %v2741
        %v2743 = vpop.f32.mrb[0].mxu0
        %v2744 = vadd.f32 %v2551, %v2743
        %v2745 = vpop.f32.mrb[0].mxu0
        %v2746 = vadd.f32 %v2553, %v2745
        %v2747 = vpop.f32.mrb[0].mxu0
        %v2748 = vadd.f32 %v2555, %v2747
        %2749 = vmatprep.mubr.bf16.mxu0 %v1147
        %2750 = vmatmul.mubr.bf16.gmra.mrb[0].mxu0 %v1146
        %v2751 = vpop.f32.mrb[0].mxu0
        %v2752 = vadd.f32 %v2559, %v2751
        %v2753 = vpop.f32.mrb[0].mxu0
        %v2754 = vadd.f32 %v2561, %v2753
        %v2755 = vpop.f32.mrb[0].mxu0
        %v2756 = vadd.f32 %v2563, %v2755
        %v2757 = vpop.f32.mrb[0].mxu0
        %v2758 = vadd.f32 %v2565, %v2757
        %2759 = vmatprep.mubr.bf16.mxu0 %v1154
        %2760 = vmatmul.mubr.bf16.gmra.mrb[0].mxu0 %v1153
        %v2761 = vpop.f32.mrb[0].mxu0
        %v2762 = vadd.f32 %v2569, %v2761
        %v2763 = vpop.f32.mrb[0].mxu0
        %v2764 = vadd.f32 %v2571, %v2763
        %v2765 = vpop.f32.mrb[0].mxu0
        %v2766 = vadd.f32 %v2573, %v2765
        %v2767 = vpop.f32.mrb[0].mxu0
        %v2768 = vadd.f32 %v2575, %v2767
        %2769 = vmatprep.mubr.bf16.mxu0 %v1161
        %2770 = vmatmul.mubr.bf16.gmra.mrb[0].mxu0 %v1160
        %v2771 = vpop.f32.mrb[0].mxu0
        %v2772 = vadd.f32 %v2579, %v2771
        %v2773 = vpop.f32.mrb[0].mxu0
        %v2774 = vadd.f32 %v2581, %v2773
        %v2775 = vpop.f32.mrb[0].mxu0
        %v2776 = vadd.f32 %v2583, %v2775
        %v2777 = vpop.f32.mrb[0].mxu0
        %v2778 = vadd.f32 %v2585, %v2777
        %2779 = vmatprep.mubr.bf16.mxu0 %v1168
        %2780 = vmatmul.mubr.bf16.gmra.mrb[0].mxu0 %v1167
        %v2781 = vpop.f32.mrb[0].mxu0
        %v2782 = vadd.f32 %v2589, %v2781
        %v2783 = vpop.f32.mrb[0].mxu0
        %v2784 = vadd.f32 %v2591, %v2783
        %v2785 = vpop.f32.mrb[0].mxu0
        %v2786 = vadd.f32 %v2593, %v2785
        %v2787 = vpop.f32.mrb[0].mxu0
        %v2788 = vadd.f32 %v2595, %v2787
        %2789 = vdwg.mxu0
        %2790 = vmatprep.subr.bf16.mxu0 %v2085
        %2791 = vmatpush1.bf16.msra.mxu0 %v2084
        %2792 = vmatprep.subr.bf16.mxu0 %v2089
        %2793 = vmatpush1.bf16.msra.mxu0 %v2088
        %2794 = vmatprep.subr.bf16.mxu0 %v2093
        %2795 = vmatpush1.bf16.msra.mxu0 %v2092
        %2796 = vmatprep.subr.bf16.mxu0 %v2097
        %2797 = vmatpush1.bf16.msra.mxu0 %v2096
        %2798 = vmatprep.subr.bf16.mxu0 %v2101
        %2799 = vmatpush1.bf16.msra.mxu0 %v2100
        %2800 = vmatprep.subr.bf16.mxu0 %v2105
        %2801 = vmatpush1.bf16.msra.mxu0 %v2104
        %2802 = vmatprep.subr.bf16.mxu0 %v2109
        %2803 = vmatpush1.bf16.msra.mxu0 %v2108
        %2804 = vmatprep.subr.bf16.mxu0 %v2113
        %2805 = vmatpush1.bf16.msra.mxu0 %v2112
        %2806 = vmatprep.subr.bf16.mxu0 %v2117
        %2807 = vmatpush1.bf16.msra.mxu0 %v2116
        %2808 = vmatprep.subr.bf16.mxu0 %v2121
        %2809 = vmatpush1.bf16.msra.mxu0 %v2120
        %2810 = vmatprep.subr.bf16.mxu0 %v2125
        %2811 = vmatpush1.bf16.msra.mxu0 %v2124
        %2812 = vmatprep.subr.bf16.mxu0 %v2129
        %2813 = vmatpush1.bf16.msra.mxu0 %v2128
        %2814 = vmatprep.subr.bf16.mxu0 %v2133
        %2815 = vmatpush1.bf16.msra.mxu0 %v2132
        %2816 = vmatprep.subr.bf16.mxu0 %v2137
        %2817 = vmatpush1.bf16.msra.mxu0 %v2136
        %2818 = vmatprep.subr.bf16.mxu0 %v2141
        %2819 = vmatpush1.bf16.msra.mxu0 %v2140
        %2820 = vmatprep.subr.bf16.mxu0 %v2145
        %2821 = vmatpush1.bf16.msra.mxu0 %v2144
        %2822 = vmatprep.mubr.bf16.mxu0 %v1065
        %2823 = vmatmul.mubr.bf16.gmra.mrb[0].mxu0 %v1064
        %v2824 = vpop.f32.mrb[0].mxu0
        %v2825 = vadd.f32 %v2632, %v2824
        %v2826 = vpop.f32.mrb[0].mxu0
        %v2827 = vadd.f32 %v2634, %v2826
        %v2828 = vpop.f32.mrb[0].mxu0
        %v2829 = vadd.f32 %v2636, %v2828
        %v2830 = vpop.f32.mrb[0].mxu0
        %v2831 = vadd.f32 %v2638, %v2830
        %2832 = vmatprep.mubr.bf16.mxu0 %v1072
        %2833 = vmatmul.mubr.bf16.gmra.mrb[0].mxu0 %v1071
        %v2834 = vpop.f32.mrb[0].mxu0
        %v2835 = vadd.f32 %v2642, %v2834
        %v2836 = vpop.f32.mrb[0].mxu0
        %v2837 = vadd.f32 %v2644, %v2836
        %v2838 = vpop.f32.mrb[0].mxu0
        %v2839 = vadd.f32 %v2646, %v2838
        %v2840 = vpop.f32.mrb[0].mxu0
        %v2841 = vadd.f32 %v2648, %v2840
        %2842 = vmatprep.mubr.bf16.mxu0 %v1079
        %2843 = vmatmul.mubr.bf16.gmra.mrb[0].mxu0 %v1078
        %v2844 = vpop.f32.mrb[0].mxu0
        %v2845 = vadd.f32 %v2652, %v2844
        %v2846 = vpop.f32.mrb[0].mxu0
        %v2847 = vadd.f32 %v2654, %v2846
        %v2848 = vpop.f32.mrb[0].mxu0
        %v2849 = vadd.f32 %v2656, %v2848
        %v2850 = vpop.f32.mrb[0].mxu0
        %v2851 = vadd.f32 %v2658, %v2850
        %2852 = vmatprep.mubr.bf16.mxu0 %v1086
        %2853 = vmatmul.mubr.bf16.gmra.mrb[0].mxu0 %v1085
        %v2854 = vpop.f32.mrb[0].mxu0
        %v2855 = vadd.f32 %v2662, %v2854
        %v2856 = vpop.f32.mrb[0].mxu0
        %v2857 = vadd.f32 %v2664, %v2856
        %v2858 = vpop.f32.mrb[0].mxu0
        %v2859 = vadd.f32 %v2666, %v2858
        %v2860 = vpop.f32.mrb[0].mxu0
        %v2861 = vadd.f32 %v2668, %v2860
        %2862 = vmatprep.mubr.bf16.mxu0 %v1093
        %2863 = vmatmul.mubr.bf16.gmra.mrb[0].mxu0 %v1092
        %v2864 = vpop.f32.mrb[0].mxu0
        %v2865 = vadd.f32 %v2672, %v2864
        %v2866 = vpop.f32.mrb[0].mxu0
        %v2867 = vadd.f32 %v2674, %v2866
        %v2868 = vpop.f32.mrb[0].mxu0
        %v2869 = vadd.f32 %v2676, %v2868
        %v2870 = vpop.f32.mrb[0].mxu0
        %v2871 = vadd.f32 %v2678, %v2870
        %2872 = vmatprep.mubr.bf16.mxu0 %v1100
        %2873 = vmatmul.mubr.bf16.gmra.mrb[0].mxu0 %v1099
        %v2874 = vpop.f32.mrb[0].mxu0
        %v2875 = vadd.f32 %v2682, %v2874
        %v2876 = vpop.f32.mrb[0].mxu0
        %v2877 = vadd.f32 %v2684, %v2876
        %v2878 = vpop.f32.mrb[0].mxu0
        %v2879 = vadd.f32 %v2686, %v2878
        %v2880 = vpop.f32.mrb[0].mxu0
        %v2881 = vadd.f32 %v2688, %v2880
        %2882 = vmatprep.mubr.bf16.mxu0 %v1107
        %2883 = vmatmul.mubr.bf16.gmra.mrb[0].mxu0 %v1106
        %v2884 = vpop.f32.mrb[0].mxu0
        %v2885 = vadd.f32 %v2692, %v2884
        %v2886 = vpop.f32.mrb[0].mxu0
        %v2887 = vadd.f32 %v2694, %v2886
        %v2888 = vpop.f32.mrb[0].mxu0
        %v2889 = vadd.f32 %v2696, %v2888
        %v2890 = vpop.f32.mrb[0].mxu0
        %v2891 = vadd.f32 %v2698, %v2890
        %2892 = vmatprep.mubr.bf16.mxu0 %v1114
        %2893 = vmatmul.mubr.bf16.gmra.mrb[0].mxu0 %v1113
        %v2894 = vpop.f32.mrb[0].mxu0
        %v2895 = vadd.f32 %v2702, %v2894
        %v2896 = vpop.f32.mrb[0].mxu0
        %v2897 = vadd.f32 %v2704, %v2896
        %v2898 = vpop.f32.mrb[0].mxu0
        %v2899 = vadd.f32 %v2706, %v2898
        %v2900 = vpop.f32.mrb[0].mxu0
        %v2901 = vadd.f32 %v2708, %v2900
        %2902 = vmatprep.mubr.bf16.mxu0 %v1121
        %2903 = vmatmul.mubr.bf16.gmra.mrb[0].mxu0 %v1120
        %v2904 = vpop.f32.mrb[0].mxu0
        %v2905 = vadd.f32 %v2712, %v2904
        %v2906 = vpop.f32.mrb[0].mxu0
        %v2907 = vadd.f32 %v2714, %v2906
        %v2908 = vpop.f32.mrb[0].mxu0
        %v2909 = vadd.f32 %v2716, %v2908
        %v2910 = vpop.f32.mrb[0].mxu0
        %v2911 = vadd.f32 %v2718, %v2910
        %2912 = vmatprep.mubr.bf16.mxu0 %v1128
        %2913 = vmatmul.mubr.bf16.gmra.mrb[0].mxu0 %v1127
        %v2914 = vpop.f32.mrb[0].mxu0
        %v2915 = vadd.f32 %v2722, %v2914
        %v2916 = vpop.f32.mrb[0].mxu0
        %v2917 = vadd.f32 %v2724, %v2916
        %v2918 = vpop.f32.mrb[0].mxu0
        %v2919 = vadd.f32 %v2726, %v2918
        %v2920 = vpop.f32.mrb[0].mxu0
        %v2921 = vadd.f32 %v2728, %v2920
        %2922 = vmatprep.mubr.bf16.mxu0 %v1135
        %2923 = vmatmul.mubr.bf16.gmra.mrb[0].mxu0 %v1134
        %v2924 = vpop.f32.mrb[0].mxu0
        %v2925 = vadd.f32 %v2732, %v2924
        %v2926 = vpop.f32.mrb[0].mxu0
        %v2927 = vadd.f32 %v2734, %v2926
        %v2928 = vpop.f32.mrb[0].mxu0
        %v2929 = vadd.f32 %v2736, %v2928
        %v2930 = vpop.f32.mrb[0].mxu0
        %v2931 = vadd.f32 %v2738, %v2930
        %2932 = vmatprep.mubr.bf16.mxu0 %v1142
        %2933 = vmatmul.mubr.bf16.gmra.mrb[0].mxu0 %v1141
        %v2934 = vpop.f32.mrb[0].mxu0
        %v2935 = vadd.f32 %v2742, %v2934
        %v2936 = vpop.f32.mrb[0].mxu0
        %v2937 = vadd.f32 %v2744, %v2936
        %v2938 = vpop.f32.mrb[0].mxu0
        %v2939 = vadd.f32 %v2746, %v2938
        %v2940 = vpop.f32.mrb[0].mxu0
        %v2941 = vadd.f32 %v2748, %v2940
        %2942 = vmatprep.mubr.bf16.mxu0 %v1149
        %2943 = vmatmul.mubr.bf16.gmra.mrb[0].mxu0 %v1148
        %v2944 = vpop.f32.mrb[0].mxu0
        %v2945 = vadd.f32 %v2752, %v2944
        %v2946 = vpop.f32.mrb[0].mxu0
        %v2947 = vadd.f32 %v2754, %v2946
        %v2948 = vpop.f32.mrb[0].mxu0
        %v2949 = vadd.f32 %v2756, %v2948
        %v2950 = vpop.f32.mrb[0].mxu0
        %v2951 = vadd.f32 %v2758, %v2950
        %2952 = vmatprep.mubr.bf16.mxu0 %v1156
        %2953 = vmatmul.mubr.bf16.gmra.mrb[0].mxu0 %v1155
        %v2954 = vpop.f32.mrb[0].mxu0
        %v2955 = vadd.f32 %v2762, %v2954
        %v2956 = vpop.f32.mrb[0].mxu0
        %v2957 = vadd.f32 %v2764, %v2956
        %v2958 = vpop.f32.mrb[0].mxu0
        %v2959 = vadd.f32 %v2766, %v2958
        %v2960 = vpop.f32.mrb[0].mxu0
        %v2961 = vadd.f32 %v2768, %v2960
        %2962 = vmatprep.mubr.bf16.mxu0 %v1163
        %2963 = vmatmul.mubr.bf16.gmra.mrb[0].mxu0 %v1162
        %v2964 = vpop.f32.mrb[0].mxu0
        %v2965 = vadd.f32 %v2772, %v2964
        %v2966 = vpop.f32.mrb[0].mxu0
        %v2967 = vadd.f32 %v2774, %v2966
        %v2968 = vpop.f32.mrb[0].mxu0
        %v2969 = vadd.f32 %v2776, %v2968
        %v2970 = vpop.f32.mrb[0].mxu0
        %v2971 = vadd.f32 %v2778, %v2970
        %2972 = vmatprep.mubr.bf16.mxu0 %v1170
        %2973 = vmatmul.mubr.bf16.gmra.mrb[0].mxu0 %v1169
        %v2974 = vpop.f32.mrb[0].mxu0
        %v2975 = vadd.f32 %v2782, %v2974
        %v2976 = vpop.f32.mrb[0].mxu0
        %v2977 = vadd.f32 %v2784, %v2976
        %v2978 = vpop.f32.mrb[0].mxu0
        %v2979 = vadd.f32 %v2786, %v2978
        %v2980 = vpop.f32.mrb[0].mxu0
        %v2981 = vadd.f32 %v2788, %v2980
        %2982 = vdwg.mxu0
        %2983 = vmatprep.subr.bf16.mxu0 %v2149
        %2984 = vmatpush1.bf16.msra.mxu0 %v2148
        %2985 = vmatprep.subr.bf16.mxu0 %v2153
        %2986 = vmatpush1.bf16.msra.mxu0 %v2152
        %2987 = vmatprep.subr.bf16.mxu0 %v2157
        %2988 = vmatpush1.bf16.msra.mxu0 %v2156
        %2989 = vmatprep.subr.bf16.mxu0 %v2161
        %2990 = vmatpush1.bf16.msra.mxu0 %v2160
        %2991 = vmatprep.subr.bf16.mxu0 %v2165
        %2992 = vmatpush1.bf16.msra.mxu0 %v2164
        %2993 = vmatprep.subr.bf16.mxu0 %v2169
        %2994 = vmatpush1.bf16.msra.mxu0 %v2168
        %2995 = vmatprep.subr.bf16.mxu0 %v2173
        %2996 = vmatpush1.bf16.msra.mxu0 %v2172
        %2997 = vmatprep.subr.bf16.mxu0 %v2177
        %2998 = vmatpush1.bf16.msra.mxu0 %v2176
        %2999 = vmatprep.subr.bf16.mxu0 0
        %3000 = vmatpush1.bf16.msra.mxu0 0
        %3001 = vmatprep.subr.bf16.mxu0 0
        %3002 = vmatpush1.bf16.msra.mxu0 0
        %3003 = vmatprep.subr.bf16.mxu0 0
        %3004 = vmatpush1.bf16.msra.mxu0 0
        %3005 = vmatprep.subr.bf16.mxu0 0
        %3006 = vmatpush1.bf16.msra.mxu0 0
        %3007 = vmatprep.subr.bf16.mxu0 0
        %3008 = vmatpush1.bf16.msra.mxu0 0
        %3009 = vmatprep.subr.bf16.mxu0 0
        %3010 = vmatpush1.bf16.msra.mxu0 0
        %3011 = vmatprep.subr.bf16.mxu0 0
        %3012 = vmatpush1.bf16.msra.mxu0 0
        %3013 = vmatprep.subr.bf16.mxu0 0
        %3014 = vmatpush1.bf16.msra.mxu0 0
        %3015 = vmatprep.mubr.bf16.mxu0 0
        %3016 = vmatmul.mubr.bf16.gmra.mrb[0].mxu0 %v1066
        %v3017 = vpop.f32.mrb[0].mxu0
        %v3018 = vadd.f32 %v2825, %v3017
        %v3019 = vpop.f32.mrb[0].mxu0
        %v3020 = vadd.f32 %v2827, %v3019
        %v3021 = vpop.f32.mrb[0].mxu0
        %v3022 = vadd.f32 %v2829, %v3021
        %v3023 = vpop.f32.mrb[0].mxu0
        %v3024 = vadd.f32 %v2831, %v3023
        %3025 = vmatprep.mubr.bf16.mxu0 0
        %3026 = vmatmul.mubr.bf16.gmra.mrb[0].mxu0 %v1073
        %v3027 = vpop.f32.mrb[0].mxu0
        %v3028 = vadd.f32 %v2835, %v3027
        %v3029 = vpop.f32.mrb[0].mxu0
        %v3030 = vadd.f32 %v2837, %v3029
        %v3031 = vpop.f32.mrb[0].mxu0
        %v3032 = vadd.f32 %v2839, %v3031
        %v3033 = vpop.f32.mrb[0].mxu0
        %v3034 = vadd.f32 %v2841, %v3033
        %3035 = vmatprep.mubr.bf16.mxu0 0
        %3036 = vmatmul.mubr.bf16.gmra.mrb[0].mxu0 %v1080
        %v3037 = vpop.f32.mrb[0].mxu0
        %v3038 = vadd.f32 %v2845, %v3037
        %v3039 = vpop.f32.mrb[0].mxu0
        %v3040 = vadd.f32 %v2847, %v3039
        %v3041 = vpop.f32.mrb[0].mxu0
        %v3042 = vadd.f32 %v2849, %v3041
        %v3043 = vpop.f32.mrb[0].mxu0
        %v3044 = vadd.f32 %v2851, %v3043
        %3045 = vmatprep.mubr.bf16.mxu0 0
        %3046 = vmatmul.mubr.bf16.gmra.mrb[0].mxu0 %v1087
        %v3047 = vpop.f32.mrb[0].mxu0
        %v3048 = vadd.f32 %v2855, %v3047
        %v3049 = vpop.f32.mrb[0].mxu0
        %v3050 = vadd.f32 %v2857, %v3049
        %v3051 = vpop.f32.mrb[0].mxu0
        %v3052 = vadd.f32 %v2859, %v3051
        %v3053 = vpop.f32.mrb[0].mxu0
        %v3054 = vadd.f32 %v2861, %v3053
        %3055 = vmatprep.mubr.bf16.mxu0 0
        %3056 = vmatmul.mubr.bf16.gmra.mrb[0].mxu0 %v1094
        %v3057 = vpop.f32.mrb[0].mxu0
        %v3058 = vadd.f32 %v2865, %v3057
        %v3059 = vpop.f32.mrb[0].mxu0
        %v3060 = vadd.f32 %v2867, %v3059
        %v3061 = vpop.f32.mrb[0].mxu0
        %v3062 = vadd.f32 %v2869, %v3061
        %v3063 = vpop.f32.mrb[0].mxu0
        %v3064 = vadd.f32 %v2871, %v3063
        %3065 = vmatprep.mubr.bf16.mxu0 0
        %3066 = vmatmul.mubr.bf16.gmra.mrb[0].mxu0 %v1101
        %v3067 = vpop.f32.mrb[0].mxu0
        %v3068 = vadd.f32 %v2875, %v3067
        %v3069 = vpop.f32.mrb[0].mxu0
        %v3070 = vadd.f32 %v2877, %v3069
        %v3071 = vpop.f32.mrb[0].mxu0
        %v3072 = vadd.f32 %v2879, %v3071
        %v3073 = vpop.f32.mrb[0].mxu0
        %v3074 = vadd.f32 %v2881, %v3073
        %3075 = vmatprep.mubr.bf16.mxu0 0
        %3076 = vmatmul.mubr.bf16.gmra.mrb[0].mxu0 %v1108
        %v3077 = vpop.f32.mrb[0].mxu0
        %v3078 = vadd.f32 %v2885, %v3077
        %v3079 = vpop.f32.mrb[0].mxu0
        %v3080 = vadd.f32 %v2887, %v3079
        %v3081 = vpop.f32.mrb[0].mxu0
        %v3082 = vadd.f32 %v2889, %v3081
        %v3083 = vpop.f32.mrb[0].mxu0
        %v3084 = vadd.f32 %v2891, %v3083
        %3085 = vmatprep.mubr.bf16.mxu0 0
        %3086 = vmatmul.mubr.bf16.gmra.mrb[0].mxu0 %v1115
        %v3087 = vpop.f32.mrb[0].mxu0
        %v3088 = vadd.f32 %v2895, %v3087
        %v3089 = vpop.f32.mrb[0].mxu0
        %v3090 = vadd.f32 %v2897, %v3089
        %v3091 = vpop.f32.mrb[0].mxu0
        %v3092 = vadd.f32 %v2899, %v3091
        %v3093 = vpop.f32.mrb[0].mxu0
        %v3094 = vadd.f32 %v2901, %v3093
        %3095 = vmatprep.mubr.bf16.mxu0 0
        %3096 = vmatmul.mubr.bf16.gmra.mrb[0].mxu0 %v1122
        %v3097 = vpop.f32.mrb[0].mxu0
        %v3098 = vadd.f32 %v2905, %v3097
        %v3099 = vpop.f32.mrb[0].mxu0
        %v3100 = vadd.f32 %v2907, %v3099
        %v3101 = vpop.f32.mrb[0].mxu0
        %v3102 = vadd.f32 %v2909, %v3101
        %v3103 = vpop.f32.mrb[0].mxu0
        %v3104 = vadd.f32 %v2911, %v3103
        %3105 = vmatprep.mubr.bf16.mxu0 0
        %3106 = vmatmul.mubr.bf16.gmra.mrb[0].mxu0 %v1129
        %v3107 = vpop.f32.mrb[0].mxu0
        %v3108 = vadd.f32 %v2915, %v3107
        %v3109 = vpop.f32.mrb[0].mxu0
        %v3110 = vadd.f32 %v2917, %v3109
        %v3111 = vpop.f32.mrb[0].mxu0
        %v3112 = vadd.f32 %v2919, %v3111
        %v3113 = vpop.f32.mrb[0].mxu0
        %v3114 = vadd.f32 %v2921, %v3113
        %3115 = vmatprep.mubr.bf16.mxu0 0
        %3116 = vmatmul.mubr.bf16.gmra.mrb[0].mxu0 %v1136
        %v3117 = vpop.f32.mrb[0].mxu0
        %v3118 = vadd.f32 %v2925, %v3117
        %v3119 = vpop.f32.mrb[0].mxu0
        %v3120 = vadd.f32 %v2927, %v3119
        %v3121 = vpop.f32.mrb[0].mxu0
        %v3122 = vadd.f32 %v2929, %v3121
        %v3123 = vpop.f32.mrb[0].mxu0
        %v3124 = vadd.f32 %v2931, %v3123
        %3125 = vmatprep.mubr.bf16.mxu0 0
        %3126 = vmatmul.mubr.bf16.gmra.mrb[0].mxu0 %v1143
        %v3127 = vpop.f32.mrb[0].mxu0
        %v3128 = vadd.f32 %v2935, %v3127
        %v3129 = vpop.f32.mrb[0].mxu0
        %v3130 = vadd.f32 %v2937, %v3129
        %v3131 = vpop.f32.mrb[0].mxu0
        %v3132 = vadd.f32 %v2939, %v3131
        %v3133 = vpop.f32.mrb[0].mxu0
        %v3134 = vadd.f32 %v2941, %v3133
        %3135 = vmatprep.mubr.bf16.mxu0 0
        %3136 = vmatmul.mubr.bf16.gmra.mrb[0].mxu0 %v1150
        %v3137 = vpop.f32.mrb[0].mxu0
        %v3138 = vadd.f32 %v2945, %v3137
        %v3139 = vpop.f32.mrb[0].mxu0
        %v3140 = vadd.f32 %v2947, %v3139
        %v3141 = vpop.f32.mrb[0].mxu0
        %v3142 = vadd.f32 %v2949, %v3141
        %v3143 = vpop.f32.mrb[0].mxu0
        %v3144 = vadd.f32 %v2951, %v3143
        %3145 = vmatprep.mubr.bf16.mxu0 0
        %3146 = vmatmul.mubr.bf16.gmra.mrb[0].mxu0 %v1157
        %v3147 = vpop.f32.mrb[0].mxu0
        %v3148 = vadd.f32 %v2955, %v3147
        %v3149 = vpop.f32.mrb[0].mxu0
        %v3150 = vadd.f32 %v2957, %v3149
        %v3151 = vpop.f32.mrb[0].mxu0
        %v3152 = vadd.f32 %v2959, %v3151
        %v3153 = vpop.f32.mrb[0].mxu0
        %v3154 = vadd.f32 %v2961, %v3153
        %3155 = vmatprep.mubr.bf16.mxu0 0
        %3156 = vmatmul.mubr.bf16.gmra.mrb[0].mxu0 %v1164
        %v3157 = vpop.f32.mrb[0].mxu0
        %v3158 = vadd.f32 %v2965, %v3157
        %v3159 = vpop.f32.mrb[0].mxu0
        %v3160 = vadd.f32 %v2967, %v3159
        %v3161 = vpop.f32.mrb[0].mxu0
        %v3162 = vadd.f32 %v2969, %v3161
        %v3163 = vpop.f32.mrb[0].mxu0
        %v3164 = vadd.f32 %v2971, %v3163
        %3165 = vmatprep.mubr.bf16.mxu0 0
        %3166 = vmatmul.mubr.bf16.gmra.mrb[0].mxu0 %v1171
        %v3167 = vpop.f32.mrb[0].mxu0
        %v3168 = vadd.f32 %v2975, %v3167
        %v3169 = vpop.f32.mrb[0].mxu0
        %v3170 = vadd.f32 %v2977, %v3169
        %v3171 = vpop.f32.mrb[0].mxu0
        %v3172 = vadd.f32 %v2979, %v3171
        %v3173 = vpop.f32.mrb[0].mxu0
        %v3174 = vadd.f32 %v2981, %v3173
        %3175 = vdwg.mxu0
        %3176 = vmatprep.subr.bf16.mxu0 %v1959
        %3177 = vmatpush1.bf16.msra.mxu0 %v1958
        %3178 = vmatprep.subr.bf16.mxu0 %v1963
        %3179 = vmatpush1.bf16.msra.mxu0 %v1962
        %3180 = vmatprep.subr.bf16.mxu0 %v1967
        %3181 = vmatpush1.bf16.msra.mxu0 %v1966
        %3182 = vmatprep.subr.bf16.mxu0 %v1971
        %3183 = vmatpush1.bf16.msra.mxu0 %v1970
        %3184 = vmatprep.subr.bf16.mxu0 %v1975
        %3185 = vmatpush1.bf16.msra.mxu0 %v1974
        %3186 = vmatprep.subr.bf16.mxu0 %v1979
        %3187 = vmatpush1.bf16.msra.mxu0 %v1978
        %3188 = vmatprep.subr.bf16.mxu0 %v1983
        %3189 = vmatpush1.bf16.msra.mxu0 %v1982
        %3190 = vmatprep.subr.bf16.mxu0 %v1987
        %3191 = vmatpush1.bf16.msra.mxu0 %v1986
        %3192 = vmatprep.subr.bf16.mxu0 %v1991
        %3193 = vmatpush1.bf16.msra.mxu0 %v1990
        %3194 = vmatprep.subr.bf16.mxu0 %v1995
        %3195 = vmatpush1.bf16.msra.mxu0 %v1994
        %3196 = vmatprep.subr.bf16.mxu0 %v1999
        %3197 = vmatpush1.bf16.msra.mxu0 %v1998
        %3198 = vmatprep.subr.bf16.mxu0 %v2003
        %3199 = vmatpush1.bf16.msra.mxu0 %v2002
        %3200 = vmatprep.subr.bf16.mxu0 %v2007
        %3201 = vmatpush1.bf16.msra.mxu0 %v2006
        %3202 = vmatprep.subr.bf16.mxu0 %v2011
        %3203 = vmatpush1.bf16.msra.mxu0 %v2010
        %3204 = vmatprep.subr.bf16.mxu0 %v2015
        %3205 = vmatpush1.bf16.msra.mxu0 %v2014
        %3206 = vmatprep.subr.bf16.mxu0 %v2019
        %3207 = vmatpush1.bf16.msra.mxu0 %v2018
        %3208 = vmatprep.mubr.bf16.mxu0 %v1061
        %3209 = vmatmul.mubr.bf16.gmra.mrb[0].mxu0 %v1060
        %v3210 = vpop.f32.mrb[0].mxu0
        %v3211 = vadd.f32 %v699, %v3210
        %v3212 = vpop.f32.mrb[0].mxu0
        %v3213 = vadd.f32 %v703, %v3212
        %v3214 = vpop.f32.mrb[0].mxu0
        %v3215 = vadd.f32 %v699, %v3214
        %v3216 = vpop.f32.mrb[0].mxu0
        %v3217 = vadd.f32 %v703, %v3216
        %3218 = vmatprep.mubr.bf16.mxu0 %v1068
        %3219 = vmatmul.mubr.bf16.gmra.mrb[0].mxu0 %v1067
        %v3220 = vpop.f32.mrb[0].mxu0
        %v3221 = vadd.f32 %v699, %v3220
        %v3222 = vpop.f32.mrb[0].mxu0
        %v3223 = vadd.f32 %v703, %v3222
        %v3224 = vpop.f32.mrb[0].mxu0
        %v3225 = vadd.f32 %v699, %v3224
        %v3226 = vpop.f32.mrb[0].mxu0
        %v3227 = vadd.f32 %v703, %v3226
        %3228 = vmatprep.mubr.bf16.mxu0 %v1075
        %3229 = vmatmul.mubr.bf16.gmra.mrb[0].mxu0 %v1074
        %v3230 = vpop.f32.mrb[0].mxu0
        %v3231 = vadd.f32 %v699, %v3230
        %v3232 = vpop.f32.mrb[0].mxu0
        %v3233 = vadd.f32 %v703, %v3232
        %v3234 = vpop.f32.mrb[0].mxu0
        %v3235 = vadd.f32 %v699, %v3234
        %v3236 = vpop.f32.mrb[0].mxu0
        %v3237 = vadd.f32 %v703, %v3236
        %3238 = vmatprep.mubr.bf16.mxu0 %v1082
        %3239 = vmatmul.mubr.bf16.gmra.mrb[0].mxu0 %v1081
        %v3240 = vpop.f32.mrb[0].mxu0
        %v3241 = vadd.f32 %v699, %v3240
        %v3242 = vpop.f32.mrb[0].mxu0
        %v3243 = vadd.f32 %v703, %v3242
        %v3244 = vpop.f32.mrb[0].mxu0
        %v3245 = vadd.f32 %v699, %v3244
        %v3246 = vpop.f32.mrb[0].mxu0
        %v3247 = vadd.f32 %v703, %v3246
        %3248 = vmatprep.mubr.bf16.mxu0 %v1089
        %3249 = vmatmul.mubr.bf16.gmra.mrb[0].mxu0 %v1088
        %v3250 = vpop.f32.mrb[0].mxu0
        %v3251 = vadd.f32 %v699, %v3250
        %v3252 = vpop.f32.mrb[0].mxu0
        %v3253 = vadd.f32 %v703, %v3252
        %v3254 = vpop.f32.mrb[0].mxu0
        %v3255 = vadd.f32 %v699, %v3254
        %v3256 = vpop.f32.mrb[0].mxu0
        %v3257 = vadd.f32 %v703, %v3256
        %3258 = vmatprep.mubr.bf16.mxu0 %v1096
        %3259 = vmatmul.mubr.bf16.gmra.mrb[0].mxu0 %v1095
        %v3260 = vpop.f32.mrb[0].mxu0
        %v3261 = vadd.f32 %v699, %v3260
        %v3262 = vpop.f32.mrb[0].mxu0
        %v3263 = vadd.f32 %v703, %v3262
        %v3264 = vpop.f32.mrb[0].mxu0
        %v3265 = vadd.f32 %v699, %v3264
        %v3266 = vpop.f32.mrb[0].mxu0
        %v3267 = vadd.f32 %v703, %v3266
        %3268 = vmatprep.mubr.bf16.mxu0 %v1103
        %3269 = vmatmul.mubr.bf16.gmra.mrb[0].mxu0 %v1102
        %v3270 = vpop.f32.mrb[0].mxu0
        %v3271 = vadd.f32 %v699, %v3270
        %v3272 = vpop.f32.mrb[0].mxu0
        %v3273 = vadd.f32 %v703, %v3272
        %v3274 = vpop.f32.mrb[0].mxu0
        %v3275 = vadd.f32 %v699, %v3274
        %v3276 = vpop.f32.mrb[0].mxu0
        %v3277 = vadd.f32 %v703, %v3276
        %3278 = vmatprep.mubr.bf16.mxu0 %v1110
        %3279 = vmatmul.mubr.bf16.gmra.mrb[0].mxu0 %v1109
        %v3280 = vpop.f32.mrb[0].mxu0
        %v3281 = vadd.f32 %v699, %v3280
        %v3282 = vpop.f32.mrb[0].mxu0
        %v3283 = vadd.f32 %v703, %v3282
        %v3284 = vpop.f32.mrb[0].mxu0
        %v3285 = vadd.f32 %v699, %v3284
        %v3286 = vpop.f32.mrb[0].mxu0
        %v3287 = vadd.f32 %v703, %v3286
        %3288 = vmatprep.mubr.bf16.mxu0 %v1117
        %3289 = vmatmul.mubr.bf16.gmra.mrb[0].mxu0 %v1116
        %v3290 = vpop.f32.mrb[0].mxu0
        %v3291 = vadd.f32 %v699, %v3290
        %v3292 = vpop.f32.mrb[0].mxu0
        %v3293 = vadd.f32 %v703, %v3292
        %v3294 = vpop.f32.mrb[0].mxu0
        %v3295 = vadd.f32 %v699, %v3294
        %v3296 = vpop.f32.mrb[0].mxu0
        %v3297 = vadd.f32 %v703, %v3296
        %3298 = vmatprep.mubr.bf16.mxu0 %v1124
        %3299 = vmatmul.mubr.bf16.gmra.mrb[0].mxu0 %v1123
        %v3300 = vpop.f32.mrb[0].mxu0
        %v3301 = vadd.f32 %v699, %v3300
        %v3302 = vpop.f32.mrb[0].mxu0
        %v3303 = vadd.f32 %v703, %v3302
        %v3304 = vpop.f32.mrb[0].mxu0
        %v3305 = vadd.f32 %v699, %v3304
        %v3306 = vpop.f32.mrb[0].mxu0
        %v3307 = vadd.f32 %v703, %v3306
        %3308 = vmatprep.mubr.bf16.mxu0 %v1131
        %3309 = vmatmul.mubr.bf16.gmra.mrb[0].mxu0 %v1130
        %v3310 = vpop.f32.mrb[0].mxu0
        %v3311 = vadd.f32 %v699, %v3310
        %v3312 = vpop.f32.mrb[0].mxu0
        %v3313 = vadd.f32 %v703, %v3312
        %v3314 = vpop.f32.mrb[0].mxu0
        %v3315 = vadd.f32 %v699, %v3314
        %v3316 = vpop.f32.mrb[0].mxu0
        %v3317 = vadd.f32 %v703, %v3316
        %3318 = vmatprep.mubr.bf16.mxu0 %v1138
        %3319 = vmatmul.mubr.bf16.gmra.mrb[0].mxu0 %v1137
        %v3320 = vpop.f32.mrb[0].mxu0
        %v3321 = vadd.f32 %v699, %v3320
        %v3322 = vpop.f32.mrb[0].mxu0
        %v3323 = vadd.f32 %v703, %v3322
        %v3324 = vpop.f32.mrb[0].mxu0
        %v3325 = vadd.f32 %v699, %v3324
        %v3326 = vpop.f32.mrb[0].mxu0
        %v3327 = vadd.f32 %v703, %v3326
        %3328 = vmatprep.mubr.bf16.mxu0 %v1145
        %3329 = vmatmul.mubr.bf16.gmra.mrb[0].mxu0 %v1144
        %v3330 = vpop.f32.mrb[0].mxu0
        %v3331 = vadd.f32 %v699, %v3330
        %v3332 = vpop.f32.mrb[0].mxu0
        %v3333 = vadd.f32 %v703, %v3332
        %v3334 = vpop.f32.mrb[0].mxu0
        %v3335 = vadd.f32 %v699, %v3334
        %v3336 = vpop.f32.mrb[0].mxu0
        %v3337 = vadd.f32 %v703, %v3336
        %3338 = vmatprep.mubr.bf16.mxu0 %v1152
        %3339 = vmatmul.mubr.bf16.gmra.mrb[0].mxu0 %v1151
        %v3340 = vpop.f32.mrb[0].mxu0
        %v3341 = vadd.f32 %v699, %v3340
        %v3342 = vpop.f32.mrb[0].mxu0
        %v3343 = vadd.f32 %v703, %v3342
        %v3344 = vpop.f32.mrb[0].mxu0
        %v3345 = vadd.f32 %v699, %v3344
        %v3346 = vpop.f32.mrb[0].mxu0
        %v3347 = vadd.f32 %v703, %v3346
        %3348 = vmatprep.mubr.bf16.mxu0 %v1159
        %3349 = vmatmul.mubr.bf16.gmra.mrb[0].mxu0 %v1158
        %v3350 = vpop.f32.mrb[0].mxu0
        %v3351 = vadd.f32 %v699, %v3350
        %v3352 = vpop.f32.mrb[0].mxu0
        %v3353 = vadd.f32 %v703, %v3352
        %v3354 = vpop.f32.mrb[0].mxu0
        %v3355 = vadd.f32 %v699, %v3354
        %v3356 = vpop.f32.mrb[0].mxu0
        %v3357 = vadd.f32 %v703, %v3356
        %3358 = vmatprep.mubr.bf16.mxu0 %v1166
        %3359 = vmatmul.mubr.bf16.gmra.mrb[0].mxu0 %v1165
        %v3360 = vpop.f32.mrb[0].mxu0
        %v3361 = vadd.f32 %v699, %v3360
        %v3362 = vpop.f32.mrb[0].mxu0
        %v3363 = vadd.f32 %v703, %v3362
        %v3364 = vpop.f32.mrb[0].mxu0
        %v3365 = vadd.f32 %v699, %v3364
        %v3366 = vpop.f32.mrb[0].mxu0
        %v3367 = vadd.f32 %v703, %v3366
        %3368 = vdwg.mxu0
        %3369 = vmatprep.subr.bf16.mxu0 %v2023
        %3370 = vmatpush1.bf16.msra.mxu0 %v2022
        %3371 = vmatprep.subr.bf16.mxu0 %v2027
        %3372 = vmatpush1.bf16.msra.mxu0 %v2026
        %3373 = vmatprep.subr.bf16.mxu0 %v2031
        %3374 = vmatpush1.bf16.msra.mxu0 %v2030
        %3375 = vmatprep.subr.bf16.mxu0 %v2035
        %3376 = vmatpush1.bf16.msra.mxu0 %v2034
        %3377 = vmatprep.subr.bf16.mxu0 %v2039
        %3378 = vmatpush1.bf16.msra.mxu0 %v2038
        %3379 = vmatprep.subr.bf16.mxu0 %v2043
        %3380 = vmatpush1.bf16.msra.mxu0 %v2042
        %3381 = vmatprep.subr.bf16.mxu0 %v2047
        %3382 = vmatpush1.bf16.msra.mxu0 %v2046
        %3383 = vmatprep.subr.bf16.mxu0 %v2051
        %3384 = vmatpush1.bf16.msra.mxu0 %v2050
        %3385 = vmatprep.subr.bf16.mxu0 %v2055
        %3386 = vmatpush1.bf16.msra.mxu0 %v2054
        %3387 = vmatprep.subr.bf16.mxu0 %v2059
        %3388 = vmatpush1.bf16.msra.mxu0 %v2058
        %3389 = vmatprep.subr.bf16.mxu0 %v2063
        %3390 = vmatpush1.bf16.msra.mxu0 %v2062
        %3391 = vmatprep.subr.bf16.mxu0 %v2067
        %3392 = vmatpush1.bf16.msra.mxu0 %v2066
        %3393 = vmatprep.subr.bf16.mxu0 %v2071
        %3394 = vmatpush1.bf16.msra.mxu0 %v2070
        %3395 = vmatprep.subr.bf16.mxu0 %v2075
        %3396 = vmatpush1.bf16.msra.mxu0 %v2074
        %3397 = vmatprep.subr.bf16.mxu0 %v2079
        %3398 = vmatpush1.bf16.msra.mxu0 %v2078
        %3399 = vmatprep.subr.bf16.mxu0 %v2083
        %3400 = vmatpush1.bf16.msra.mxu0 %v2082
        %3401 = vmatprep.mubr.bf16.mxu0 %v1063
        %3402 = vmatmul.mubr.bf16.gmra.mrb[0].mxu0 %v1062
        %v3403 = vpop.f32.mrb[0].mxu0
        %v3404 = vadd.f32 %v3211, %v3403
        %v3405 = vpop.f32.mrb[0].mxu0
        %v3406 = vadd.f32 %v3213, %v3405
        %v3407 = vpop.f32.mrb[0].mxu0
        %v3408 = vadd.f32 %v3215, %v3407
        %v3409 = vpop.f32.mrb[0].mxu0
        %v3410 = vadd.f32 %v3217, %v3409
        %3411 = vmatprep.mubr.bf16.mxu0 %v1070
        %3412 = vmatmul.mubr.bf16.gmra.mrb[0].mxu0 %v1069
        %v3413 = vpop.f32.mrb[0].mxu0
        %v3414 = vadd.f32 %v3221, %v3413
        %v3415 = vpop.f32.mrb[0].mxu0
        %v3416 = vadd.f32 %v3223, %v3415
        %v3417 = vpop.f32.mrb[0].mxu0
        %v3418 = vadd.f32 %v3225, %v3417
        %v3419 = vpop.f32.mrb[0].mxu0
        %v3420 = vadd.f32 %v3227, %v3419
        %3421 = vmatprep.mubr.bf16.mxu0 %v1077
        %3422 = vmatmul.mubr.bf16.gmra.mrb[0].mxu0 %v1076
        %v3423 = vpop.f32.mrb[0].mxu0
        %v3424 = vadd.f32 %v3231, %v3423
        %v3425 = vpop.f32.mrb[0].mxu0
        %v3426 = vadd.f32 %v3233, %v3425
        %v3427 = vpop.f32.mrb[0].mxu0
        %v3428 = vadd.f32 %v3235, %v3427
        %v3429 = vpop.f32.mrb[0].mxu0
        %v3430 = vadd.f32 %v3237, %v3429
        %3431 = vmatprep.mubr.bf16.mxu0 %v1084
        %3432 = vmatmul.mubr.bf16.gmra.mrb[0].mxu0 %v1083
        %v3433 = vpop.f32.mrb[0].mxu0
        %v3434 = vadd.f32 %v3241, %v3433
        %v3435 = vpop.f32.mrb[0].mxu0
        %v3436 = vadd.f32 %v3243, %v3435
        %v3437 = vpop.f32.mrb[0].mxu0
        %v3438 = vadd.f32 %v3245, %v3437
        %v3439 = vpop.f32.mrb[0].mxu0
        %v3440 = vadd.f32 %v3247, %v3439
        %3441 = vmatprep.mubr.bf16.mxu0 %v1091
        %3442 = vmatmul.mubr.bf16.gmra.mrb[0].mxu0 %v1090
        %v3443 = vpop.f32.mrb[0].mxu0
        %v3444 = vadd.f32 %v3251, %v3443
        %v3445 = vpop.f32.mrb[0].mxu0
        %v3446 = vadd.f32 %v3253, %v3445
        %v3447 = vpop.f32.mrb[0].mxu0
        %v3448 = vadd.f32 %v3255, %v3447
        %v3449 = vpop.f32.mrb[0].mxu0
        %v3450 = vadd.f32 %v3257, %v3449
        %3451 = vmatprep.mubr.bf16.mxu0 %v1098
        %3452 = vmatmul.mubr.bf16.gmra.mrb[0].mxu0 %v1097
        %v3453 = vpop.f32.mrb[0].mxu0
        %v3454 = vadd.f32 %v3261, %v3453
        %v3455 = vpop.f32.mrb[0].mxu0
        %v3456 = vadd.f32 %v3263, %v3455
        %v3457 = vpop.f32.mrb[0].mxu0
        %v3458 = vadd.f32 %v3265, %v3457
        %v3459 = vpop.f32.mrb[0].mxu0
        %v3460 = vadd.f32 %v3267, %v3459
        %3461 = vmatprep.mubr.bf16.mxu0 %v1105
        %3462 = vmatmul.mubr.bf16.gmra.mrb[0].mxu0 %v1104
        %v3463 = vpop.f32.mrb[0].mxu0
        %v3464 = vadd.f32 %v3271, %v3463
        %v3465 = vpop.f32.mrb[0].mxu0
        %v3466 = vadd.f32 %v3273, %v3465
        %v3467 = vpop.f32.mrb[0].mxu0
        %v3468 = vadd.f32 %v3275, %v3467
        %v3469 = vpop.f32.mrb[0].mxu0
        %v3470 = vadd.f32 %v3277, %v3469
        %3471 = vmatprep.mubr.bf16.mxu0 %v1112
        %3472 = vmatmul.mubr.bf16.gmra.mrb[0].mxu0 %v1111
        %v3473 = vpop.f32.mrb[0].mxu0
        %v3474 = vadd.f32 %v3281, %v3473
        %v3475 = vpop.f32.mrb[0].mxu0
        %v3476 = vadd.f32 %v3283, %v3475
        %v3477 = vpop.f32.mrb[0].mxu0
        %v3478 = vadd.f32 %v3285, %v3477
        %v3479 = vpop.f32.mrb[0].mxu0
        %v3480 = vadd.f32 %v3287, %v3479
        %3481 = vmatprep.mubr.bf16.mxu0 %v1119
        %3482 = vmatmul.mubr.bf16.gmra.mrb[0].mxu0 %v1118
        %v3483 = vpop.f32.mrb[0].mxu0
        %v3484 = vadd.f32 %v3291, %v3483
        %v3485 = vpop.f32.mrb[0].mxu0
        %v3486 = vadd.f32 %v3293, %v3485
        %v3487 = vpop.f32.mrb[0].mxu0
        %v3488 = vadd.f32 %v3295, %v3487
        %v3489 = vpop.f32.mrb[0].mxu0
        %v3490 = vadd.f32 %v3297, %v3489
        %3491 = vmatprep.mubr.bf16.mxu0 %v1126
        %3492 = vmatmul.mubr.bf16.gmra.mrb[0].mxu0 %v1125
        %v3493 = vpop.f32.mrb[0].mxu0
        %v3494 = vadd.f32 %v3301, %v3493
        %v3495 = vpop.f32.mrb[0].mxu0
        %v3496 = vadd.f32 %v3303, %v3495
        %v3497 = vpop.f32.mrb[0].mxu0
        %v3498 = vadd.f32 %v3305, %v3497
        %v3499 = vpop.f32.mrb[0].mxu0
        %v3500 = vadd.f32 %v3307, %v3499
        %3501 = vmatprep.mubr.bf16.mxu0 %v1133
        %3502 = vmatmul.mubr.bf16.gmra.mrb[0].mxu0 %v1132
        %v3503 = vpop.f32.mrb[0].mxu0
        %v3504 = vadd.f32 %v3311, %v3503
        %v3505 = vpop.f32.mrb[0].mxu0
        %v3506 = vadd.f32 %v3313, %v3505
        %v3507 = vpop.f32.mrb[0].mxu0
        %v3508 = vadd.f32 %v3315, %v3507
        %v3509 = vpop.f32.mrb[0].mxu0
        %v3510 = vadd.f32 %v3317, %v3509
        %3511 = vmatprep.mubr.bf16.mxu0 %v1140
        %3512 = vmatmul.mubr.bf16.gmra.mrb[0].mxu0 %v1139
        %v3513 = vpop.f32.mrb[0].mxu0
        %v3514 = vadd.f32 %v3321, %v3513
        %v3515 = vpop.f32.mrb[0].mxu0
        %v3516 = vadd.f32 %v3323, %v3515
        %v3517 = vpop.f32.mrb[0].mxu0
        %v3518 = vadd.f32 %v3325, %v3517
        %v3519 = vpop.f32.mrb[0].mxu0
        %v3520 = vadd.f32 %v3327, %v3519
        %3521 = vmatprep.mubr.bf16.mxu0 %v1147
        %3522 = vmatmul.mubr.bf16.gmra.mrb[0].mxu0 %v1146
        %v3523 = vpop.f32.mrb[0].mxu0
        %v3524 = vadd.f32 %v3331, %v3523
        %v3525 = vpop.f32.mrb[0].mxu0
        %v3526 = vadd.f32 %v3333, %v3525
        %v3527 = vpop.f32.mrb[0].mxu0
        %v3528 = vadd.f32 %v3335, %v3527
        %v3529 = vpop.f32.mrb[0].mxu0
        %v3530 = vadd.f32 %v3337, %v3529
        %3531 = vmatprep.mubr.bf16.mxu0 %v1154
        %3532 = vmatmul.mubr.bf16.gmra.mrb[0].mxu0 %v1153
        %v3533 = vpop.f32.mrb[0].mxu0
        %v3534 = vadd.f32 %v3341, %v3533
        %v3535 = vpop.f32.mrb[0].mxu0
        %v3536 = vadd.f32 %v3343, %v3535
        %v3537 = vpop.f32.mrb[0].mxu0
        %v3538 = vadd.f32 %v3345, %v3537
        %v3539 = vpop.f32.mrb[0].mxu0
        %v3540 = vadd.f32 %v3347, %v3539
        %3541 = vmatprep.mubr.bf16.mxu0 %v1161
        %3542 = vmatmul.mubr.bf16.gmra.mrb[0].mxu0 %v1160
        %v3543 = vpop.f32.mrb[0].mxu0
        %v3544 = vadd.f32 %v3351, %v3543
        %v3545 = vpop.f32.mrb[0].mxu0
        %v3546 = vadd.f32 %v3353, %v3545
        %v3547 = vpop.f32.mrb[0].mxu0
        %v3548 = vadd.f32 %v3355, %v3547
        %v3549 = vpop.f32.mrb[0].mxu0
        %v3550 = vadd.f32 %v3357, %v3549
        %3551 = vmatprep.mubr.bf16.mxu0 %v1168
        %3552 = vmatmul.mubr.bf16.gmra.mrb[0].mxu0 %v1167
        %v3553 = vpop.f32.mrb[0].mxu0
        %v3554 = vadd.f32 %v3361, %v3553
        %v3555 = vpop.f32.mrb[0].mxu0
        %v3556 = vadd.f32 %v3363, %v3555
        %v3557 = vpop.f32.mrb[0].mxu0
        %v3558 = vadd.f32 %v3365, %v3557
        %v3559 = vpop.f32.mrb[0].mxu0
        %v3560 = vadd.f32 %v3367, %v3559
        %3561 = vdwg.mxu0
        %3562 = vmatprep.subr.bf16.mxu0 %v2087
        %3563 = vmatpush1.bf16.msra.mxu0 %v2086
        %3564 = vmatprep.subr.bf16.mxu0 %v2091
        %3565 = vmatpush1.bf16.msra.mxu0 %v2090
        %3566 = vmatprep.subr.bf16.mxu0 %v2095
        %3567 = vmatpush1.bf16.msra.mxu0 %v2094
        %3568 = vmatprep.subr.bf16.mxu0 %v2099
        %3569 = vmatpush1.bf16.msra.mxu0 %v2098
        %3570 = vmatprep.subr.bf16.mxu0 %v2103
        %3571 = vmatpush1.bf16.msra.mxu0 %v2102
        %3572 = vmatprep.subr.bf16.mxu0 %v2107
        %3573 = vmatpush1.bf16.msra.mxu0 %v2106
        %3574 = vmatprep.subr.bf16.mxu0 %v2111
        %3575 = vmatpush1.bf16.msra.mxu0 %v2110
        %3576 = vmatprep.subr.bf16.mxu0 %v2115
        %3577 = vmatpush1.bf16.msra.mxu0 %v2114
        %3578 = vmatprep.subr.bf16.mxu0 %v2119
        %3579 = vmatpush1.bf16.msra.mxu0 %v2118
        %3580 = vmatprep.subr.bf16.mxu0 %v2123
        %3581 = vmatpush1.bf16.msra.mxu0 %v2122
        %3582 = vmatprep.subr.bf16.mxu0 %v2127
        %3583 = vmatpush1.bf16.msra.mxu0 %v2126
        %3584 = vmatprep.subr.bf16.mxu0 %v2131
        %3585 = vmatpush1.bf16.msra.mxu0 %v2130
        %3586 = vmatprep.subr.bf16.mxu0 %v2135
        %3587 = vmatpush1.bf16.msra.mxu0 %v2134
        %3588 = vmatprep.subr.bf16.mxu0 %v2139
        %3589 = vmatpush1.bf16.msra.mxu0 %v2138
        %3590 = vmatprep.subr.bf16.mxu0 %v2143
        %3591 = vmatpush1.bf16.msra.mxu0 %v2142
        %3592 = vmatprep.subr.bf16.mxu0 %v2147
        %3593 = vmatpush1.bf16.msra.mxu0 %v2146
        %3594 = vmatprep.mubr.bf16.mxu0 %v1065
        %3595 = vmatmul.mubr.bf16.gmra.mrb[0].mxu0 %v1064
        %v3596 = vpop.f32.mrb[0].mxu0
        %v3597 = vadd.f32 %v3404, %v3596
        %v3598 = vpop.f32.mrb[0].mxu0
        %v3599 = vadd.f32 %v3406, %v3598
        %v3600 = vpop.f32.mrb[0].mxu0
        %v3601 = vadd.f32 %v3408, %v3600
        %v3602 = vpop.f32.mrb[0].mxu0
        %v3603 = vadd.f32 %v3410, %v3602
        %3604 = vmatprep.mubr.bf16.mxu0 %v1072
        %3605 = vmatmul.mubr.bf16.gmra.mrb[0].mxu0 %v1071
        %v3606 = vpop.f32.mrb[0].mxu0
        %v3607 = vadd.f32 %v3414, %v3606
        %v3608 = vpop.f32.mrb[0].mxu0
        %v3609 = vadd.f32 %v3416, %v3608
        %v3610 = vpop.f32.mrb[0].mxu0
        %v3611 = vadd.f32 %v3418, %v3610
        %v3612 = vpop.f32.mrb[0].mxu0
        %v3613 = vadd.f32 %v3420, %v3612
        %3614 = vmatprep.mubr.bf16.mxu0 %v1079
        %3615 = vmatmul.mubr.bf16.gmra.mrb[0].mxu0 %v1078
        %v3616 = vpop.f32.mrb[0].mxu0
        %v3617 = vadd.f32 %v3424, %v3616
        %v3618 = vpop.f32.mrb[0].mxu0
        %v3619 = vadd.f32 %v3426, %v3618
        %v3620 = vpop.f32.mrb[0].mxu0
        %v3621 = vadd.f32 %v3428, %v3620
        %v3622 = vpop.f32.mrb[0].mxu0
        %v3623 = vadd.f32 %v3430, %v3622
        %3624 = vmatprep.mubr.bf16.mxu0 %v1086
        %3625 = vmatmul.mubr.bf16.gmra.mrb[0].mxu0 %v1085
        %v3626 = vpop.f32.mrb[0].mxu0
        %v3627 = vadd.f32 %v3434, %v3626
        %v3628 = vpop.f32.mrb[0].mxu0
        %v3629 = vadd.f32 %v3436, %v3628
        %v3630 = vpop.f32.mrb[0].mxu0
        %v3631 = vadd.f32 %v3438, %v3630
        %v3632 = vpop.f32.mrb[0].mxu0
        %v3633 = vadd.f32 %v3440, %v3632
        %3634 = vmatprep.mubr.bf16.mxu0 %v1093
        %3635 = vmatmul.mubr.bf16.gmra.mrb[0].mxu0 %v1092
        %v3636 = vpop.f32.mrb[0].mxu0
        %v3637 = vadd.f32 %v3444, %v3636
        %v3638 = vpop.f32.mrb[0].mxu0
        %v3639 = vadd.f32 %v3446, %v3638
        %v3640 = vpop.f32.mrb[0].mxu0
        %v3641 = vadd.f32 %v3448, %v3640
        %v3642 = vpop.f32.mrb[0].mxu0
        %v3643 = vadd.f32 %v3450, %v3642
        %3644 = vmatprep.mubr.bf16.mxu0 %v1100
        %3645 = vmatmul.mubr.bf16.gmra.mrb[0].mxu0 %v1099
        %v3646 = vpop.f32.mrb[0].mxu0
        %v3647 = vadd.f32 %v3454, %v3646
        %v3648 = vpop.f32.mrb[0].mxu0
        %v3649 = vadd.f32 %v3456, %v3648
        %v3650 = vpop.f32.mrb[0].mxu0
        %v3651 = vadd.f32 %v3458, %v3650
        %v3652 = vpop.f32.mrb[0].mxu0
        %v3653 = vadd.f32 %v3460, %v3652
        %3654 = vmatprep.mubr.bf16.mxu0 %v1107
        %3655 = vmatmul.mubr.bf16.gmra.mrb[0].mxu0 %v1106
        %v3656 = vpop.f32.mrb[0].mxu0
        %v3657 = vadd.f32 %v3464, %v3656
        %v3658 = vpop.f32.mrb[0].mxu0
        %v3659 = vadd.f32 %v3466, %v3658
        %v3660 = vpop.f32.mrb[0].mxu0
        %v3661 = vadd.f32 %v3468, %v3660
        %v3662 = vpop.f32.mrb[0].mxu0
        %v3663 = vadd.f32 %v3470, %v3662
        %3664 = vmatprep.mubr.bf16.mxu0 %v1114
        %3665 = vmatmul.mubr.bf16.gmra.mrb[0].mxu0 %v1113
        %v3666 = vpop.f32.mrb[0].mxu0
        %v3667 = vadd.f32 %v3474, %v3666
        %v3668 = vpop.f32.mrb[0].mxu0
        %v3669 = vadd.f32 %v3476, %v3668
        %v3670 = vpop.f32.mrb[0].mxu0
        %v3671 = vadd.f32 %v3478, %v3670
        %v3672 = vpop.f32.mrb[0].mxu0
        %v3673 = vadd.f32 %v3480, %v3672
        %3674 = vmatprep.mubr.bf16.mxu0 %v1121
        %3675 = vmatmul.mubr.bf16.gmra.mrb[0].mxu0 %v1120
        %v3676 = vpop.f32.mrb[0].mxu0
        %v3677 = vadd.f32 %v3484, %v3676
        %v3678 = vpop.f32.mrb[0].mxu0
        %v3679 = vadd.f32 %v3486, %v3678
        %v3680 = vpop.f32.mrb[0].mxu0
        %v3681 = vadd.f32 %v3488, %v3680
        %v3682 = vpop.f32.mrb[0].mxu0
        %v3683 = vadd.f32 %v3490, %v3682
        %3684 = vmatprep.mubr.bf16.mxu0 %v1128
        %3685 = vmatmul.mubr.bf16.gmra.mrb[0].mxu0 %v1127
        %v3686 = vpop.f32.mrb[0].mxu0
        %v3687 = vadd.f32 %v3494, %v3686
        %v3688 = vpop.f32.mrb[0].mxu0
        %v3689 = vadd.f32 %v3496, %v3688
        %v3690 = vpop.f32.mrb[0].mxu0
        %v3691 = vadd.f32 %v3498, %v3690
        %v3692 = vpop.f32.mrb[0].mxu0
        %v3693 = vadd.f32 %v3500, %v3692
        %3694 = vmatprep.mubr.bf16.mxu0 %v1135
        %3695 = vmatmul.mubr.bf16.gmra.mrb[0].mxu0 %v1134
        %v3696 = vpop.f32.mrb[0].mxu0
        %v3697 = vadd.f32 %v3504, %v3696
        %v3698 = vpop.f32.mrb[0].mxu0
        %v3699 = vadd.f32 %v3506, %v3698
        %v3700 = vpop.f32.mrb[0].mxu0
        %v3701 = vadd.f32 %v3508, %v3700
        %v3702 = vpop.f32.mrb[0].mxu0
        %v3703 = vadd.f32 %v3510, %v3702
        %3704 = vmatprep.mubr.bf16.mxu0 %v1142
        %3705 = vmatmul.mubr.bf16.gmra.mrb[0].mxu0 %v1141
        %v3706 = vpop.f32.mrb[0].mxu0
        %v3707 = vadd.f32 %v3514, %v3706
        %v3708 = vpop.f32.mrb[0].mxu0
        %v3709 = vadd.f32 %v3516, %v3708
        %v3710 = vpop.f32.mrb[0].mxu0
        %v3711 = vadd.f32 %v3518, %v3710
        %v3712 = vpop.f32.mrb[0].mxu0
        %v3713 = vadd.f32 %v3520, %v3712
        %3714 = vmatprep.mubr.bf16.mxu0 %v1149
        %3715 = vmatmul.mubr.bf16.gmra.mrb[0].mxu0 %v1148
        %v3716 = vpop.f32.mrb[0].mxu0
        %v3717 = vadd.f32 %v3524, %v3716
        %v3718 = vpop.f32.mrb[0].mxu0
        %v3719 = vadd.f32 %v3526, %v3718
        %v3720 = vpop.f32.mrb[0].mxu0
        %v3721 = vadd.f32 %v3528, %v3720
        %v3722 = vpop.f32.mrb[0].mxu0
        %v3723 = vadd.f32 %v3530, %v3722
        %3724 = vmatprep.mubr.bf16.mxu0 %v1156
        %3725 = vmatmul.mubr.bf16.gmra.mrb[0].mxu0 %v1155
        %v3726 = vpop.f32.mrb[0].mxu0
        %v3727 = vadd.f32 %v3534, %v3726
        %v3728 = vpop.f32.mrb[0].mxu0
        %v3729 = vadd.f32 %v3536, %v3728
        %v3730 = vpop.f32.mrb[0].mxu0
        %v3731 = vadd.f32 %v3538, %v3730
        %v3732 = vpop.f32.mrb[0].mxu0
        %v3733 = vadd.f32 %v3540, %v3732
        %3734 = vmatprep.mubr.bf16.mxu0 %v1163
        %3735 = vmatmul.mubr.bf16.gmra.mrb[0].mxu0 %v1162
        %v3736 = vpop.f32.mrb[0].mxu0
        %v3737 = vadd.f32 %v3544, %v3736
        %v3738 = vpop.f32.mrb[0].mxu0
        %v3739 = vadd.f32 %v3546, %v3738
        %v3740 = vpop.f32.mrb[0].mxu0
        %v3741 = vadd.f32 %v3548, %v3740
        %v3742 = vpop.f32.mrb[0].mxu0
        %v3743 = vadd.f32 %v3550, %v3742
        %3744 = vmatprep.mubr.bf16.mxu0 %v1170
        %3745 = vmatmul.mubr.bf16.gmra.mrb[0].mxu0 %v1169
        %v3746 = vpop.f32.mrb[0].mxu0
        %v3747 = vadd.f32 %v3554, %v3746
        %v3748 = vpop.f32.mrb[0].mxu0
        %v3749 = vadd.f32 %v3556, %v3748
        %v3750 = vpop.f32.mrb[0].mxu0
        %v3751 = vadd.f32 %v3558, %v3750
        %v3752 = vpop.f32.mrb[0].mxu0
        %v3753 = vadd.f32 %v3560, %v3752
        %3754 = vdwg.mxu0
        %3755 = vmatprep.subr.bf16.mxu0 %v2151
        %3756 = vmatpush1.bf16.msra.mxu0 %v2150
        %3757 = vmatprep.subr.bf16.mxu0 %v2155
        %3758 = vmatpush1.bf16.msra.mxu0 %v2154
        %3759 = vmatprep.subr.bf16.mxu0 %v2159
        %3760 = vmatpush1.bf16.msra.mxu0 %v2158
        %3761 = vmatprep.subr.bf16.mxu0 %v2163
        %3762 = vmatpush1.bf16.msra.mxu0 %v2162
        %3763 = vmatprep.subr.bf16.mxu0 %v2167
        %3764 = vmatpush1.bf16.msra.mxu0 %v2166
        %3765 = vmatprep.subr.bf16.mxu0 %v2171
        %3766 = vmatpush1.bf16.msra.mxu0 %v2170
        %3767 = vmatprep.subr.bf16.mxu0 %v2175
        %3768 = vmatpush1.bf16.msra.mxu0 %v2174
        %3769 = vmatprep.subr.bf16.mxu0 %v2179
        %3770 = vmatpush1.bf16.msra.mxu0 %v2178
        %3771 = vmatprep.subr.bf16.mxu0 0
        %3772 = vmatpush1.bf16.msra.mxu0 0
        %3773 = vmatprep.subr.bf16.mxu0 0
        %3774 = vmatpush1.bf16.msra.mxu0 0
        %3775 = vmatprep.subr.bf16.mxu0 0
        %3776 = vmatpush1.bf16.msra.mxu0 0
        %3777 = vmatprep.subr.bf16.mxu0 0
        %3778 = vmatpush1.bf16.msra.mxu0 0
        %3779 = vmatprep.subr.bf16.mxu0 0
        %3780 = vmatpush1.bf16.msra.mxu0 0
        %3781 = vmatprep.subr.bf16.mxu0 0
        %3782 = vmatpush1.bf16.msra.mxu0 0
        %3783 = vmatprep.subr.bf16.mxu0 0
        %3784 = vmatpush1.bf16.msra.mxu0 0
        %3785 = vmatprep.subr.bf16.mxu0 0
        %3786 = vmatpush1.bf16.msra.mxu0 0
        %3787 = vmatprep.mubr.bf16.mxu0 0
        %3788 = vmatmul.mubr.bf16.gmra.mrb[0].mxu0 %v1066
        %v3789 = vpop.f32.mrb[0].mxu0
        %v3790 = vadd.f32 %v3597, %v3789
        %v3791 = vpop.f32.mrb[0].mxu0
        %v3792 = vadd.f32 %v3599, %v3791
        %v3793 = vpop.f32.mrb[0].mxu0
        %v3794 = vadd.f32 %v3601, %v3793
        %v3795 = vpop.f32.mrb[0].mxu0
        %v3796 = vadd.f32 %v3603, %v3795
        %3797 = vmatprep.mubr.bf16.mxu0 0
        %3798 = vmatmul.mubr.bf16.gmra.mrb[0].mxu0 %v1073
        %v3799 = vpop.f32.mrb[0].mxu0
        %v3800 = vadd.f32 %v3607, %v3799
        %v3801 = vpop.f32.mrb[0].mxu0
        %v3802 = vadd.f32 %v3609, %v3801
        %v3803 = vpop.f32.mrb[0].mxu0
        %v3804 = vadd.f32 %v3611, %v3803
        %v3805 = vpop.f32.mrb[0].mxu0
        %v3806 = vadd.f32 %v3613, %v3805
        %3807 = vmatprep.mubr.bf16.mxu0 0
        %3808 = vmatmul.mubr.bf16.gmra.mrb[0].mxu0 %v1080
        %v3809 = vpop.f32.mrb[0].mxu0
        %v3810 = vadd.f32 %v3617, %v3809
        %v3811 = vpop.f32.mrb[0].mxu0
        %v3812 = vadd.f32 %v3619, %v3811
        %v3813 = vpop.f32.mrb[0].mxu0
        %v3814 = vadd.f32 %v3621, %v3813
        %v3815 = vpop.f32.mrb[0].mxu0
        %v3816 = vadd.f32 %v3623, %v3815
        %3817 = vmatprep.mubr.bf16.mxu0 0
        %3818 = vmatmul.mubr.bf16.gmra.mrb[0].mxu0 %v1087
        %v3819 = vpop.f32.mrb[0].mxu0
        %v3820 = vadd.f32 %v3627, %v3819
        %v3821 = vpop.f32.mrb[0].mxu0
        %v3822 = vadd.f32 %v3629, %v3821
        %v3823 = vpop.f32.mrb[0].mxu0
        %v3824 = vadd.f32 %v3631, %v3823
        %v3825 = vpop.f32.mrb[0].mxu0
        %v3826 = vadd.f32 %v3633, %v3825
        %3827 = vmatprep.mubr.bf16.mxu0 0
        %3828 = vmatmul.mubr.bf16.gmra.mrb[0].mxu0 %v1094
        %v3829 = vpop.f32.mrb[0].mxu0
        %v3830 = vadd.f32 %v3637, %v3829
        %v3831 = vpop.f32.mrb[0].mxu0
        %v3832 = vadd.f32 %v3639, %v3831
        %v3833 = vpop.f32.mrb[0].mxu0
        %v3834 = vadd.f32 %v3641, %v3833
        %v3835 = vpop.f32.mrb[0].mxu0
        %v3836 = vadd.f32 %v3643, %v3835
        %3837 = vmatprep.mubr.bf16.mxu0 0
        %3838 = vmatmul.mubr.bf16.gmra.mrb[0].mxu0 %v1101
        %v3839 = vpop.f32.mrb[0].mxu0
        %v3840 = vadd.f32 %v3647, %v3839
        %v3841 = vpop.f32.mrb[0].mxu0
        %v3842 = vadd.f32 %v3649, %v3841
        %v3843 = vpop.f32.mrb[0].mxu0
        %v3844 = vadd.f32 %v3651, %v3843
        %v3845 = vpop.f32.mrb[0].mxu0
        %v3846 = vadd.f32 %v3653, %v3845
        %3847 = vmatprep.mubr.bf16.mxu0 0
        %3848 = vmatmul.mubr.bf16.gmra.mrb[0].mxu0 %v1108
        %v3849 = vpop.f32.mrb[0].mxu0
        %v3850 = vadd.f32 %v3657, %v3849
        %v3851 = vpop.f32.mrb[0].mxu0
        %v3852 = vadd.f32 %v3659, %v3851
        %v3853 = vpop.f32.mrb[0].mxu0
        %v3854 = vadd.f32 %v3661, %v3853
        %v3855 = vpop.f32.mrb[0].mxu0
        %v3856 = vadd.f32 %v3663, %v3855
        %3857 = vmatprep.mubr.bf16.mxu0 0
        %3858 = vmatmul.mubr.bf16.gmra.mrb[0].mxu0 %v1115
        %v3859 = vpop.f32.mrb[0].mxu0
        %v3860 = vadd.f32 %v3667, %v3859
        %v3861 = vpop.f32.mrb[0].mxu0
        %v3862 = vadd.f32 %v3669, %v3861
        %v3863 = vpop.f32.mrb[0].mxu0
        %v3864 = vadd.f32 %v3671, %v3863
        %v3865 = vpop.f32.mrb[0].mxu0
        %v3866 = vadd.f32 %v3673, %v3865
        %3867 = vmatprep.mubr.bf16.mxu0 0
        %3868 = vmatmul.mubr.bf16.gmra.mrb[0].mxu0 %v1122
        %v3869 = vpop.f32.mrb[0].mxu0
        %v3870 = vadd.f32 %v3677, %v3869
        %v3871 = vpop.f32.mrb[0].mxu0
        %v3872 = vadd.f32 %v3679, %v3871
        %v3873 = vpop.f32.mrb[0].mxu0
        %v3874 = vadd.f32 %v3681, %v3873
        %v3875 = vpop.f32.mrb[0].mxu0
        %v3876 = vadd.f32 %v3683, %v3875
        %3877 = vmatprep.mubr.bf16.mxu0 0
        %3878 = vmatmul.mubr.bf16.gmra.mrb[0].mxu0 %v1129
        %v3879 = vpop.f32.mrb[0].mxu0
        %v3880 = vadd.f32 %v3687, %v3879
        %v3881 = vpop.f32.mrb[0].mxu0
        %v3882 = vadd.f32 %v3689, %v3881
        %v3883 = vpop.f32.mrb[0].mxu0
        %v3884 = vadd.f32 %v3691, %v3883
        %v3885 = vpop.f32.mrb[0].mxu0
        %v3886 = vadd.f32 %v3693, %v3885
        %3887 = vmatprep.mubr.bf16.mxu0 0
        %3888 = vmatmul.mubr.bf16.gmra.mrb[0].mxu0 %v1136
        %v3889 = vpop.f32.mrb[0].mxu0
        %v3890 = vadd.f32 %v3697, %v3889
        %v3891 = vpop.f32.mrb[0].mxu0
        %v3892 = vadd.f32 %v3699, %v3891
        %v3893 = vpop.f32.mrb[0].mxu0
        %v3894 = vadd.f32 %v3701, %v3893
        %v3895 = vpop.f32.mrb[0].mxu0
        %v3896 = vadd.f32 %v3703, %v3895
        %3897 = vmatprep.mubr.bf16.mxu0 0
        %3898 = vmatmul.mubr.bf16.gmra.mrb[0].mxu0 %v1143
        %v3899 = vpop.f32.mrb[0].mxu0
        %v3900 = vadd.f32 %v3707, %v3899
        %v3901 = vpop.f32.mrb[0].mxu0
        %v3902 = vadd.f32 %v3709, %v3901
        %v3903 = vpop.f32.mrb[0].mxu0
        %v3904 = vadd.f32 %v3711, %v3903
        %v3905 = vpop.f32.mrb[0].mxu0
        %v3906 = vadd.f32 %v3713, %v3905
        %3907 = vmatprep.mubr.bf16.mxu0 0
        %3908 = vmatmul.mubr.bf16.gmra.mrb[0].mxu0 %v1150
        %v3909 = vpop.f32.mrb[0].mxu0
        %v3910 = vadd.f32 %v3717, %v3909
        %v3911 = vpop.f32.mrb[0].mxu0
        %v3912 = vadd.f32 %v3719, %v3911
        %v3913 = vpop.f32.mrb[0].mxu0
        %v3914 = vadd.f32 %v3721, %v3913
        %v3915 = vpop.f32.mrb[0].mxu0
        %v3916 = vadd.f32 %v3723, %v3915
        %3917 = vmatprep.mubr.bf16.mxu0 0
        %3918 = vmatmul.mubr.bf16.gmra.mrb[0].mxu0 %v1157
        %v3919 = vpop.f32.mrb[0].mxu0
        %v3920 = vadd.f32 %v3727, %v3919
        %v3921 = vpop.f32.mrb[0].mxu0
        %v3922 = vadd.f32 %v3729, %v3921
        %v3923 = vpop.f32.mrb[0].mxu0
        %v3924 = vadd.f32 %v3731, %v3923
        %v3925 = vpop.f32.mrb[0].mxu0
        %v3926 = vadd.f32 %v3733, %v3925
        %3927 = vmatprep.mubr.bf16.mxu0 0
        %3928 = vmatmul.mubr.bf16.gmra.mrb[0].mxu0 %v1164
        %v3929 = vpop.f32.mrb[0].mxu0
        %v3930 = vadd.f32 %v3737, %v3929
        %v3931 = vpop.f32.mrb[0].mxu0
        %v3932 = vadd.f32 %v3739, %v3931
        %v3933 = vpop.f32.mrb[0].mxu0
        %v3934 = vadd.f32 %v3741, %v3933
        %v3935 = vpop.f32.mrb[0].mxu0
        %v3936 = vadd.f32 %v3743, %v3935
        %3937 = vmatprep.mubr.bf16.mxu0 0
        %3938 = vmatmul.mubr.bf16.gmra.mrb[0].mxu0 %v1171
        %v3939 = vpop.f32.mrb[0].mxu0
        %v3940 = vadd.f32 %v3747, %v3939
        %v3941 = vpop.f32.mrb[0].mxu0
        %v3942 = vadd.f32 %v3749, %v3941
        %v3943 = vpop.f32.mrb[0].mxu0
        %v3944 = vadd.f32 %v3751, %v3943
        %v3945 = vpop.f32.mrb[0].mxu0
        %v3946 = vadd.f32 %v3753, %v3945
        %3947 = vdwg.mxu0
        %v3948 = vmul.f32 %v3018, 0.2
        %v3949 = vmul.f32 %v3020, 0.2
        %v3950 = vmul.f32 %v3790, 0.2
        %v3951 = vmul.f32 %v3792, 0.2
        %v3952 = vmul.f32 %v3022, 0.2
        %v3953 = vmul.f32 %v3024, 0.2
        %v3954 = vmul.f32 %v3794, 0.2
        %v3955 = vmul.f32 %v3796, 0.2
        %v3956 = vmul.f32 %v3028, 0.2
        %v3957 = vmul.f32 %v3030, 0.2
        %v3958 = vmul.f32 %v3800, 0.2
        %v3959 = vmul.f32 %v3802, 0.2
        %v3960 = vmul.f32 %v3032, 0.2
        %v3961 = vmul.f32 %v3034, 0.2
        %v3962 = vmul.f32 %v3804, 0.2
        %v3963 = vmul.f32 %v3806, 0.2
        %v3964 = vmul.f32 %v3038, 0.2
        %v3965 = vmul.f32 %v3040, 0.2
        %v3966 = vmul.f32 %v3810, 0.2
        %v3967 = vmul.f32 %v3812, 0.2
        %v3968 = vmul.f32 %v3042, 0.2
        %v3969 = vmul.f32 %v3044, 0.2
        %v3970 = vmul.f32 %v3814, 0.2
        %v3971 = vmul.f32 %v3816, 0.2
        %v3972 = vmul.f32 %v3048, 0.2
        %v3973 = vmul.f32 %v3050, 0.2
        %v3974 = vmul.f32 %v3820, 0.2
        %v3975 = vmul.f32 %v3822, 0.2
        %v3976 = vmul.f32 %v3052, 0.2
        %v3977 = vmul.f32 %v3054, 0.2
        %v3978 = vmul.f32 %v3824, 0.2
        %v3979 = vmul.f32 %v3826, 0.2
        %v3980 = vmul.f32 %v3058, 0.2
        %v3981 = vmul.f32 %v3060, 0.2
        %v3982 = vmul.f32 %v3830, 0.2
        %v3983 = vmul.f32 %v3832, 0.2
        %v3984 = vmul.f32 %v3062, 0.2
        %v3985 = vmul.f32 %v3064, 0.2
        %v3986 = vmul.f32 %v3834, 0.2
        %v3987 = vmul.f32 %v3836, 0.2
        %v3988 = vmul.f32 %v3068, 0.2
        %v3989 = vmul.f32 %v3070, 0.2
        %v3990 = vmul.f32 %v3840, 0.2
        %v3991 = vmul.f32 %v3842, 0.2
        %v3992 = vmul.f32 %v3072, 0.2
        %v3993 = vmul.f32 %v3074, 0.2
        %v3994 = vmul.f32 %v3844, 0.2
        %v3995 = vmul.f32 %v3846, 0.2
        %v3996 = vmul.f32 %v3078, 0.2
        %v3997 = vmul.f32 %v3080, 0.2
        %v3998 = vmul.f32 %v3850, 0.2
        %v3999 = vmul.f32 %v3852, 0.2
        %v4000 = vmul.f32 %v3082, 0.2
        %v4001 = vmul.f32 %v3084, 0.2
        %v4002 = vmul.f32 %v3854, 0.2
        %v4003 = vmul.f32 %v3856, 0.2
        %v4004 = vmul.f32 %v3088, 0.2
        %v4005 = vmul.f32 %v3090, 0.2
        %v4006 = vmul.f32 %v3860, 0.2
        %v4007 = vmul.f32 %v3862, 0.2
        %v4008 = vmul.f32 %v3092, 0.2
        %v4009 = vmul.f32 %v3094, 0.2
        %v4010 = vmul.f32 %v3864, 0.2
        %v4011 = vmul.f32 %v3866, 0.2
        %v4012 = vmul.f32 %v3098, 0.2
        %v4013 = vmul.f32 %v3100, 0.2
        %v4014 = vmul.f32 %v3870, 0.2
        %v4015 = vmul.f32 %v3872, 0.2
        %v4016 = vmul.f32 %v3102, 0.2
        %v4017 = vmul.f32 %v3104, 0.2
        %v4018 = vmul.f32 %v3874, 0.2
        %v4019 = vmul.f32 %v3876, 0.2
        %v4020 = vmul.f32 %v3108, 0.2
        %v4021 = vmul.f32 %v3110, 0.2
        %v4022 = vmul.f32 %v3880, 0.2
        %v4023 = vmul.f32 %v3882, 0.2
        %v4024 = vmul.f32 %v3112, 0.2
        %v4025 = vmul.f32 %v3114, 0.2
        %v4026 = vmul.f32 %v3884, 0.2
        %v4027 = vmul.f32 %v3886, 0.2
        %v4028 = vmul.f32 %v3118, 0.2
        %v4029 = vmul.f32 %v3120, 0.2
        %v4030 = vmul.f32 %v3890, 0.2
        %v4031 = vmul.f32 %v3892, 0.2
        %v4032 = vmul.f32 %v3122, 0.2
        %v4033 = vmul.f32 %v3124, 0.2
        %v4034 = vmul.f32 %v3894, 0.2
        %v4035 = vmul.f32 %v3896, 0.2
        %v4036 = vmul.f32 %v3128, 0.2
        %v4037 = vmul.f32 %v3130, 0.2
        %v4038 = vmul.f32 %v3900, 0.2
        %v4039 = vmul.f32 %v3902, 0.2
        %v4040 = vmul.f32 %v3132, 0.2
        %v4041 = vmul.f32 %v3134, 0.2
        %v4042 = vmul.f32 %v3904, 0.2
        %v4043 = vmul.f32 %v3906, 0.2
        %v4044 = vmul.f32 %v3138, 0.2
        %v4045 = vmul.f32 %v3140, 0.2
        %v4046 = vmul.f32 %v3910, 0.2
        %v4047 = vmul.f32 %v3912, 0.2
        %v4048 = vmul.f32 %v3142, 0.2
        %v4049 = vmul.f32 %v3144, 0.2
        %v4050 = vmul.f32 %v3914, 0.2
        %v4051 = vmul.f32 %v3916, 0.2
        %v4052 = vmul.f32 %v3148, 0.2
        %v4053 = vmul.f32 %v3150, 0.2
        %v4054 = vmul.f32 %v3920, 0.2
        %v4055 = vmul.f32 %v3922, 0.2
        %v4056 = vmul.f32 %v3152, 0.2
        %v4057 = vmul.f32 %v3154, 0.2
        %v4058 = vmul.f32 %v3924, 0.2
        %v4059 = vmul.f32 %v3926, 0.2
        %v4060 = vmul.f32 %v3158, 0.2
        %v4061 = vmul.f32 %v3160, 0.2
        %v4062 = vmul.f32 %v3930, 0.2
        %v4063 = vmul.f32 %v3932, 0.2
        %v4064 = vmul.f32 %v3162, 0.2
        %v4065 = vmul.f32 %v3164, 0.2
        %v4066 = vmul.f32 %v3934, 0.2
        %v4067 = vmul.f32 %v3936, 0.2
        %v4068 = vmul.f32 %v3168, 0.2
        %v4069 = vmul.f32 %v3170, 0.2
        %v4070 = vmul.f32 %v3940, 0.2
        %v4071 = vmul.f32 %v3942, 0.2
        %v4072 = vmul.f32 %v3172, 0.2
        %v4073 = vmul.f32 %v3174, 0.2
        %v4074 = vmul.f32 %v3944, 0.2
        %v4075 = vmul.f32 %v3946, 0.2
        %v4076 = vmax.f32 %v3018, %v3948
        %v4077 = vmax.f32 %v3020, %v3949
        %v4078 = vmax.f32 %v3790, %v3950
        %v4079 = vmax.f32 %v3792, %v3951
        %v4080 = vmax.f32 %v3022, %v3952
        %v4081 = vmax.f32 %v3024, %v3953
        %v4082 = vmax.f32 %v3794, %v3954
        %v4083 = vmax.f32 %v3796, %v3955
        %v4084 = vmax.f32 %v3028, %v3956
        %v4085 = vmax.f32 %v3030, %v3957
        %v4086 = vmax.f32 %v3800, %v3958
        %v4087 = vmax.f32 %v3802, %v3959
        %v4088 = vmax.f32 %v3032, %v3960
        %v4089 = vmax.f32 %v3034, %v3961
        %v4090 = vmax.f32 %v3804, %v3962
        %v4091 = vmax.f32 %v3806, %v3963
        %v4092 = vmax.f32 %v3038, %v3964
        %v4093 = vmax.f32 %v3040, %v3965
        %v4094 = vmax.f32 %v3810, %v3966
        %v4095 = vmax.f32 %v3812, %v3967
        %v4096 = vmax.f32 %v3042, %v3968
        %v4097 = vmax.f32 %v3044, %v3969
        %v4098 = vmax.f32 %v3814, %v3970
        %v4099 = vmax.f32 %v3816, %v3971
        %v4100 = vmax.f32 %v3048, %v3972
        %v4101 = vmax.f32 %v3050, %v3973
        %v4102 = vmax.f32 %v3820, %v3974
        %v4103 = vmax.f32 %v3822, %v3975
        %v4104 = vmax.f32 %v3052, %v3976
        %v4105 = vmax.f32 %v3054, %v3977
        %v4106 = vmax.f32 %v3824, %v3978
        %v4107 = vmax.f32 %v3826, %v3979
        %v4108 = vmax.f32 %v3058, %v3980
        %v4109 = vmax.f32 %v3060, %v3981
        %v4110 = vmax.f32 %v3830, %v3982
        %v4111 = vmax.f32 %v3832, %v3983
        %v4112 = vmax.f32 %v3062, %v3984
        %v4113 = vmax.f32 %v3064, %v3985
        %v4114 = vmax.f32 %v3834, %v3986
        %v4115 = vmax.f32 %v3836, %v3987
        %v4116 = vmax.f32 %v3068, %v3988
        %v4117 = vmax.f32 %v3070, %v3989
        %v4118 = vmax.f32 %v3840, %v3990
        %v4119 = vmax.f32 %v3842, %v3991
        %v4120 = vmax.f32 %v3072, %v3992
        %v4121 = vmax.f32 %v3074, %v3993
        %v4122 = vmax.f32 %v3844, %v3994
        %v4123 = vmax.f32 %v3846, %v3995
        %v4124 = vmax.f32 %v3078, %v3996
        %v4125 = vmax.f32 %v3080, %v3997
        %v4126 = vmax.f32 %v3850, %v3998
        %v4127 = vmax.f32 %v3852, %v3999
        %v4128 = vmax.f32 %v3082, %v4000
        %v4129 = vmax.f32 %v3084, %v4001
        %v4130 = vmax.f32 %v3854, %v4002
        %v4131 = vmax.f32 %v3856, %v4003
        %v4132 = vmax.f32 %v3088, %v4004
        %v4133 = vmax.f32 %v3090, %v4005
        %v4134 = vmax.f32 %v3860, %v4006
        %v4135 = vmax.f32 %v3862, %v4007
        %v4136 = vmax.f32 %v3092, %v4008
        %v4137 = vmax.f32 %v3094, %v4009
        %v4138 = vmax.f32 %v3864, %v4010
        %v4139 = vmax.f32 %v3866, %v4011
        %v4140 = vmax.f32 %v3098, %v4012
        %v4141 = vmax.f32 %v3100, %v4013
        %v4142 = vmax.f32 %v3870, %v4014
        %v4143 = vmax.f32 %v3872, %v4015
        %v4144 = vmax.f32 %v3102, %v4016
        %v4145 = vmax.f32 %v3104, %v4017
        %v4146 = vmax.f32 %v3874, %v4018
        %v4147 = vmax.f32 %v3876, %v4019
        %v4148 = vmax.f32 %v3108, %v4020
        %v4149 = vmax.f32 %v3110, %v4021
        %v4150 = vmax.f32 %v3880, %v4022
        %v4151 = vmax.f32 %v3882, %v4023
        %v4152 = vmax.f32 %v3112, %v4024
        %v4153 = vmax.f32 %v3114, %v4025
        %v4154 = vmax.f32 %v3884, %v4026
        %v4155 = vmax.f32 %v3886, %v4027
        %v4156 = vmax.f32 %v3118, %v4028
        %v4157 = vmax.f32 %v3120, %v4029
        %v4158 = vmax.f32 %v3890, %v4030
        %v4159 = vmax.f32 %v3892, %v4031
        %v4160 = vmax.f32 %v3122, %v4032
        %v4161 = vmax.f32 %v3124, %v4033
        %v4162 = vmax.f32 %v3894, %v4034
        %v4163 = vmax.f32 %v3896, %v4035
        %v4164 = vmax.f32 %v3128, %v4036
        %v4165 = vmax.f32 %v3130, %v4037
        %v4166 = vmax.f32 %v3900, %v4038
        %v4167 = vmax.f32 %v3902, %v4039
        %v4168 = vmax.f32 %v3132, %v4040
        %v4169 = vmax.f32 %v3134, %v4041
        %v4170 = vmax.f32 %v3904, %v4042
        %v4171 = vmax.f32 %v3906, %v4043
        %v4172 = vmax.f32 %v3138, %v4044
        %v4173 = vmax.f32 %v3140, %v4045
        %v4174 = vmax.f32 %v3910, %v4046
        %v4175 = vmax.f32 %v3912, %v4047
        %v4176 = vmax.f32 %v3142, %v4048
        %v4177 = vmax.f32 %v3144, %v4049
        %v4178 = vmax.f32 %v3914, %v4050
        %v4179 = vmax.f32 %v3916, %v4051
        %v4180 = vmax.f32 %v3148, %v4052
        %v4181 = vmax.f32 %v3150, %v4053
        %v4182 = vmax.f32 %v3920, %v4054
        %v4183 = vmax.f32 %v3922, %v4055
        %v4184 = vmax.f32 %v3152, %v4056
        %v4185 = vmax.f32 %v3154, %v4057
        %v4186 = vmax.f32 %v3924, %v4058
        %v4187 = vmax.f32 %v3926, %v4059
        %v4188 = vmax.f32 %v3158, %v4060
        %v4189 = vmax.f32 %v3160, %v4061
        %v4190 = vmax.f32 %v3930, %v4062
        %v4191 = vmax.f32 %v3932, %v4063
        %v4192 = vmax.f32 %v3162, %v4064
        %v4193 = vmax.f32 %v3164, %v4065
        %v4194 = vmax.f32 %v3934, %v4066
        %v4195 = vmax.f32 %v3936, %v4067
        %v4196 = vmax.f32 %v3168, %v4068
        %v4197 = vmax.f32 %v3170, %v4069
        %v4198 = vmax.f32 %v3940, %v4070
        %v4199 = vmax.f32 %v3942, %v4071
        %v4200 = vmax.f32 %v3172, %v4072
        %v4201 = vmax.f32 %v3174, %v4073
        %v4202 = vmax.f32 %v3944, %v4074
        %v4203 = vmax.f32 %v3946, %v4075
        %v4204 = vpack.c.bf16 %v4080, %v4076
        %v4205 = vpack.c.bf16 %v4081, %v4077
        %v4206 = vpack.c.bf16 %v4082, %v4078
        %v4207 = vpack.c.bf16 %v4083, %v4079
        %v4208 = vpack.c.bf16 %v4088, %v4084
        %v4209 = vpack.c.bf16 %v4089, %v4085
        %v4210 = vpack.c.bf16 %v4090, %v4086
        %v4211 = vpack.c.bf16 %v4091, %v4087
        %v4212 = vpack.c.bf16 %v4096, %v4092
        %v4213 = vpack.c.bf16 %v4097, %v4093
        %v4214 = vpack.c.bf16 %v4098, %v4094
        %v4215 = vpack.c.bf16 %v4099, %v4095
        %v4216 = vpack.c.bf16 %v4104, %v4100
        %v4217 = vpack.c.bf16 %v4105, %v4101
        %v4218 = vpack.c.bf16 %v4106, %v4102
        %v4219 = vpack.c.bf16 %v4107, %v4103
        %v4220 = vpack.c.bf16 %v4112, %v4108
        %v4221 = vpack.c.bf16 %v4113, %v4109
        %v4222 = vpack.c.bf16 %v4114, %v4110
        %v4223 = vpack.c.bf16 %v4115, %v4111
        %v4224 = vpack.c.bf16 %v4120, %v4116
        %v4225 = vpack.c.bf16 %v4121, %v4117
        %v4226 = vpack.c.bf16 %v4122, %v4118
        %v4227 = vpack.c.bf16 %v4123, %v4119
        %v4228 = vpack.c.bf16 %v4128, %v4124
        %v4229 = vpack.c.bf16 %v4129, %v4125
        %v4230 = vpack.c.bf16 %v4130, %v4126
        %v4231 = vpack.c.bf16 %v4131, %v4127
        %v4232 = vpack.c.bf16 %v4136, %v4132
        %v4233 = vpack.c.bf16 %v4137, %v4133
        %v4234 = vpack.c.bf16 %v4138, %v4134
        %v4235 = vpack.c.bf16 %v4139, %v4135
        %v4236 = vpack.c.bf16 %v4144, %v4140
        %v4237 = vpack.c.bf16 %v4145, %v4141
        %v4238 = vpack.c.bf16 %v4146, %v4142
        %v4239 = vpack.c.bf16 %v4147, %v4143
        %v4240 = vpack.c.bf16 %v4152, %v4148
        %v4241 = vpack.c.bf16 %v4153, %v4149
        %v4242 = vpack.c.bf16 %v4154, %v4150
        %v4243 = vpack.c.bf16 %v4155, %v4151
        %v4244 = vpack.c.bf16 %v4160, %v4156
        %v4245 = vpack.c.bf16 %v4161, %v4157
        %v4246 = vpack.c.bf16 %v4162, %v4158
        %v4247 = vpack.c.bf16 %v4163, %v4159
        %v4248 = vpack.c.bf16 %v4168, %v4164
        %v4249 = vpack.c.bf16 %v4169, %v4165
        %v4250 = vpack.c.bf16 %v4170, %v4166
        %v4251 = vpack.c.bf16 %v4171, %v4167
        %v4252 = vpack.c.bf16 %v4176, %v4172
        %v4253 = vpack.c.bf16 %v4177, %v4173
        %v4254 = vpack.c.bf16 %v4178, %v4174
        %v4255 = vpack.c.bf16 %v4179, %v4175
        %v4256 = vpack.c.bf16 %v4184, %v4180
        %v4257 = vpack.c.bf16 %v4185, %v4181
        %v4258 = vpack.c.bf16 %v4186, %v4182
        %v4259 = vpack.c.bf16 %v4187, %v4183
        %v4260 = vpack.c.bf16 %v4192, %v4188
        %v4261 = vpack.c.bf16 %v4193, %v4189
        %v4262 = vpack.c.bf16 %v4194, %v4190
        %v4263 = vpack.c.bf16 %v4195, %v4191
        %v4264 = vpack.c.bf16 %v4200, %v4196
        %v4265 = vpack.c.bf16 %v4201, %v4197
        %v4266 = vpack.c.bf16 %v4202, %v4198
        %v4267 = vpack.c.bf16 %v4203, %v4199
        %v4268 = vld [vmem:[#allocation7] sm:$0xff]
        %v4269 = vld [vmem:[#allocation7 + $0x8] sm:$0xff]
        %v4270 = vld [vmem:[#allocation7 + $0x10] sm:$0xff]
        %v4271 = vld [vmem:[#allocation7 + $0x18] sm:$0xff]
        %v4272 = vld [vmem:[#allocation7 + $0x20] sm:$0xff]
        %v4273 = vld [vmem:[#allocation7 + $0x28] sm:$0xff]
        %v4274 = vld [vmem:[#allocation7 + $0x30] sm:$0xff]
        %v4275 = vld [vmem:[#allocation7 + $0x38] sm:$0xff]
        %v4276 = vld [vmem:[#allocation7 + $0x40] sm:$0xff]
        %v4277 = vld [vmem:[#allocation7 + $0x48] sm:$0xff]
        %v4278 = vld [vmem:[#allocation7 + $0x50] sm:$0xff]
        %v4279 = vld [vmem:[#allocation7 + $0x58] sm:$0xff]
        %v4280 = vld [vmem:[#allocation7 + $0x60] sm:$0xff]
        %v4281 = vld [vmem:[#allocation7 + $0x68] sm:$0xff]
        %v4282 = vld [vmem:[#allocation7 + $0x70] sm:$0xff]
        %v4283 = vld [vmem:[#allocation7 + $0x78] sm:$0xff]
        %v4284 = vld [vmem:[#allocation7 + $0x80] sm:$0xff]
        %v4285 = vld [vmem:[#allocation7 + $0x88] sm:$0xff]
        %v4286 = vld [vmem:[#allocation7 + $0x90] sm:$0xff]
        %v4287 = vld [vmem:[#allocation7 + $0x98] sm:$0xff]
        %v4288 = vld [vmem:[#allocation7 + $0xa0] sm:$0xff]
        %v4289 = vld [vmem:[#allocation7 + $0xa8] sm:$0xff]
        %v4290 = vld [vmem:[#allocation7 + $0xb0] sm:$0xff]
        %v4291 = vld [vmem:[#allocation7 + $0xb8] sm:$0xff]
        %v4292 = vld [vmem:[#allocation7 + $0xc0] sm:$0xff]
        %v4293 = vld [vmem:[#allocation7 + $0xc8] sm:$0xff]
        %v4294 = vld [vmem:[#allocation7 + $0xd0] sm:$0xff]
        %v4295 = vld [vmem:[#allocation7 + $0xd8] sm:$0xff]
        %v4296 = vld [vmem:[#allocation7 + $0xe0] sm:$0xff]
        %v4297 = vld [vmem:[#allocation7 + $0xe8] sm:$0xff]
        %v4298 = vld [vmem:[#allocation7 + $0xf0] sm:$0xff]
        %v4299 = vld [vmem:[#allocation7 + $0xf8] sm:$0xff]
        %v4300 = vld [vmem:[#allocation7 + $0x100] sm:$0xff]
        %v4301 = vld [vmem:[#allocation7 + $0x108] sm:$0xff]
        %v4302 = vld [vmem:[#allocation7 + $0x110] sm:$0xff]
        %v4303 = vld [vmem:[#allocation7 + $0x118] sm:$0xff]
        %v4304 = vld [vmem:[#allocation7 + $0x120] sm:$0xff]
        %v4305 = vld [vmem:[#allocation7 + $0x128] sm:$0xff]
        %v4306 = vld [vmem:[#allocation7 + $0x130] sm:$0xff]
        %v4307 = vld [vmem:[#allocation7 + $0x138] sm:$0xff]
        %v4308 = vld [vmem:[#allocation7 + $0x140] sm:$0xff]
        %v4309 = vld [vmem:[#allocation7 + $0x148] sm:$0xff]
        %v4310 = vld [vmem:[#allocation7 + $0x150] sm:$0xff]
        %v4311 = vld [vmem:[#allocation7 + $0x158] sm:$0xff]
        %v4312 = vld [vmem:[#allocation7 + $0x160] sm:$0xff]
        %v4313 = vld [vmem:[#allocation7 + $0x168] sm:$0xff]
        %v4314 = vld [vmem:[#allocation7 + $0x170] sm:$0xff]
        %v4315 = vld [vmem:[#allocation7 + $0x178] sm:$0xff]
        %v4316 = vld [vmem:[#allocation7 + $0x180] sm:$0xff]
        %v4317 = vld [vmem:[#allocation7 + $0x188] sm:$0xff]
        %v4318 = vld [vmem:[#allocation7 + $0x190] sm:$0xff]
        %v4319 = vld [vmem:[#allocation7 + $0x198] sm:$0xff]
        %v4320 = vld [vmem:[#allocation7 + $0x1a0] sm:$0xff]
        %v4321 = vld [vmem:[#allocation7 + $0x1a8] sm:$0xff]
        %v4322 = vld [vmem:[#allocation7 + $0x1b0] sm:$0xff]
        %v4323 = vld [vmem:[#allocation7 + $0x1b8] sm:$0xff]
        %v4324 = vld [vmem:[#allocation7 + $0x1c0] sm:$0xff]
        %v4325 = vld [vmem:[#allocation7 + $0x1c8] sm:$0xff]
        %v4326 = vld [vmem:[#allocation7 + $0x1d0] sm:$0xff]
        %v4327 = vld [vmem:[#allocation7 + $0x1d8] sm:$0xff]
        %v4328 = vld [vmem:[#allocation7 + $0x1e0] sm:$0xff]
        %v4329 = vld [vmem:[#allocation7 + $0x1e8] sm:$0xff]
        %v4330 = vld [vmem:[#allocation7 + $0x1f0] sm:$0xff]
        %v4331 = vld [vmem:[#allocation7 + $0x1f8] sm:$0xff]
        %v4332 = vld [vmem:[%s4] sm:$0x3]
        %v4334 = vlaneseq
        %v4335 = vshrl.u32 %v4334, 7
        %v4336 = vsub.s32 0, %v4335
        %v4337 = vrot.slane %v4332, %v4336
        %v4338 = vlaneseq
        %v4339 = vshrl.u32 %v4338, 7
        %v4340 = vsub.s32 1, %v4339
        %v4341 = vrot.slane %v4332, %v4340
        %v4408 = vunpack.c.l.b16 %v4268
        %v4409 = vunpack.c.h.b16 %v4268
        %v4410 = vunpack.c.l.b16 %v4269
        %v4411 = vunpack.c.h.b16 %v4269
        %v4412 = vunpack.c.l.b16 %v4270
        %v4413 = vunpack.c.h.b16 %v4270
        %v4414 = vunpack.c.l.b16 %v4271
        %v4415 = vunpack.c.h.b16 %v4271
        %v4416 = vunpack.c.l.b16 %v4272
        %v4417 = vunpack.c.h.b16 %v4272
        %v4418 = vunpack.c.l.b16 %v4273
        %v4419 = vunpack.c.h.b16 %v4273
        %v4420 = vunpack.c.l.b16 %v4274
        %v4421 = vunpack.c.h.b16 %v4274
        %v4422 = vunpack.c.l.b16 %v4275
        %v4423 = vunpack.c.h.b16 %v4275
        %v4424 = vunpack.c.l.b16 %v4276
        %v4425 = vunpack.c.h.b16 %v4276
        %v4426 = vunpack.c.l.b16 %v4277
        %v4427 = vunpack.c.h.b16 %v4277
        %v4428 = vunpack.c.l.b16 %v4278
        %v4429 = vunpack.c.h.b16 %v4278
        %v4430 = vunpack.c.l.b16 %v4279
        %v4431 = vunpack.c.h.b16 %v4279
        %v4432 = vunpack.c.l.b16 %v4280
        %v4433 = vunpack.c.h.b16 %v4280
        %v4434 = vunpack.c.l.b16 %v4281
        %v4435 = vunpack.c.h.b16 %v4281
        %v4436 = vunpack.c.l.b16 %v4282
        %v4437 = vunpack.c.h.b16 %v4282
        %v4438 = vunpack.c.l.b16 %v4283
        %v4439 = vunpack.c.h.b16 %v4283
        %v4440 = vunpack.c.l.b16 %v4284
        %v4441 = vunpack.c.h.b16 %v4284
        %v4442 = vunpack.c.l.b16 %v4285
        %v4443 = vunpack.c.h.b16 %v4285
        %v4444 = vunpack.c.l.b16 %v4286
        %v4445 = vunpack.c.h.b16 %v4286
        %v4446 = vunpack.c.l.b16 %v4287
        %v4447 = vunpack.c.h.b16 %v4287
        %v4448 = vunpack.c.l.b16 %v4288
        %v4449 = vunpack.c.h.b16 %v4288
        %v4450 = vunpack.c.l.b16 %v4289
        %v4451 = vunpack.c.h.b16 %v4289
        %v4452 = vunpack.c.l.b16 %v4290
        %v4453 = vunpack.c.h.b16 %v4290
        %v4454 = vunpack.c.l.b16 %v4291
        %v4455 = vunpack.c.h.b16 %v4291
        %v4456 = vunpack.c.l.b16 %v4292
        %v4457 = vunpack.c.h.b16 %v4292
        %v4458 = vunpack.c.l.b16 %v4293
        %v4459 = vunpack.c.h.b16 %v4293
        %v4460 = vunpack.c.l.b16 %v4294
        %v4461 = vunpack.c.h.b16 %v4294
        %v4462 = vunpack.c.l.b16 %v4295
        %v4463 = vunpack.c.h.b16 %v4295
        %v4464 = vunpack.c.l.b16 %v4296
        %v4465 = vunpack.c.h.b16 %v4296
        %v4466 = vunpack.c.l.b16 %v4297
        %v4467 = vunpack.c.h.b16 %v4297
        %v4468 = vunpack.c.l.b16 %v4298
        %v4469 = vunpack.c.h.b16 %v4298
        %v4470 = vunpack.c.l.b16 %v4299
        %v4471 = vunpack.c.h.b16 %v4299
        %v4472 = vunpack.c.l.b16 %v4300
        %v4473 = vunpack.c.h.b16 %v4300
        %v4474 = vunpack.c.l.b16 %v4301
        %v4475 = vunpack.c.h.b16 %v4301
        %v4476 = vunpack.c.l.b16 %v4302
        %v4477 = vunpack.c.h.b16 %v4302
        %v4478 = vunpack.c.l.b16 %v4303
        %v4479 = vunpack.c.h.b16 %v4303
        %v4480 = vunpack.c.l.b16 %v4304
        %v4481 = vunpack.c.h.b16 %v4304
        %v4482 = vunpack.c.l.b16 %v4305
        %v4483 = vunpack.c.h.b16 %v4305
        %v4484 = vunpack.c.l.b16 %v4306
        %v4485 = vunpack.c.h.b16 %v4306
        %v4486 = vunpack.c.l.b16 %v4307
        %v4487 = vunpack.c.h.b16 %v4307
        %v4488 = vunpack.c.l.b16 %v4308
        %v4489 = vunpack.c.h.b16 %v4308
        %v4490 = vunpack.c.l.b16 %v4309
        %v4491 = vunpack.c.h.b16 %v4309
        %v4492 = vunpack.c.l.b16 %v4310
        %v4493 = vunpack.c.h.b16 %v4310
        %v4494 = vunpack.c.l.b16 %v4311
        %v4495 = vunpack.c.h.b16 %v4311
        %v4496 = vunpack.c.l.b16 %v4312
        %v4497 = vunpack.c.h.b16 %v4312
        %v4498 = vunpack.c.l.b16 %v4313
        %v4499 = vunpack.c.h.b16 %v4313
        %v4500 = vunpack.c.l.b16 %v4314
        %v4501 = vunpack.c.h.b16 %v4314
        %v4502 = vunpack.c.l.b16 %v4315
        %v4503 = vunpack.c.h.b16 %v4315
        %v4504 = vunpack.c.l.b16 %v4316
        %v4505 = vunpack.c.h.b16 %v4316
        %v4506 = vunpack.c.l.b16 %v4317
        %v4507 = vunpack.c.h.b16 %v4317
        %v4508 = vunpack.c.l.b16 %v4318
        %v4509 = vunpack.c.h.b16 %v4318
        %v4510 = vunpack.c.l.b16 %v4319
        %v4511 = vunpack.c.h.b16 %v4319
        %v4512 = vunpack.c.l.b16 %v4320
        %v4513 = vunpack.c.h.b16 %v4320
        %v4514 = vunpack.c.l.b16 %v4321
        %v4515 = vunpack.c.h.b16 %v4321
        %v4516 = vunpack.c.l.b16 %v4322
        %v4517 = vunpack.c.h.b16 %v4322
        %v4518 = vunpack.c.l.b16 %v4323
        %v4519 = vunpack.c.h.b16 %v4323
        %v4520 = vunpack.c.l.b16 %v4324
        %v4521 = vunpack.c.h.b16 %v4324
        %v4522 = vunpack.c.l.b16 %v4325
        %v4523 = vunpack.c.h.b16 %v4325
        %v4524 = vunpack.c.l.b16 %v4326
        %v4525 = vunpack.c.h.b16 %v4326
        %v4526 = vunpack.c.l.b16 %v4327
        %v4527 = vunpack.c.h.b16 %v4327
        %v4528 = vunpack.c.l.b16 %v4328
        %v4529 = vunpack.c.h.b16 %v4328
        %v4530 = vunpack.c.l.b16 %v4329
        %v4531 = vunpack.c.h.b16 %v4329
        %v4532 = vunpack.c.l.b16 %v4330
        %v4533 = vunpack.c.h.b16 %v4330
        %v4534 = vunpack.c.l.b16 %v4331
        %v4535 = vunpack.c.h.b16 %v4331
        %v4536 = vpack.c.b16 %v4410, %v4408
        %v4537 = vpack.c.b16 %v4411, %v4409
        %v4538 = vpack.c.b16 %v4414, %v4412
        %v4539 = vpack.c.b16 %v4415, %v4413
        %v4540 = vpack.c.b16 %v4418, %v4416
        %v4541 = vpack.c.b16 %v4419, %v4417
        %v4542 = vpack.c.b16 %v4422, %v4420
        %v4543 = vpack.c.b16 %v4423, %v4421
        %v4544 = vpack.c.b16 %v4426, %v4424
        %v4545 = vpack.c.b16 %v4427, %v4425
        %v4546 = vpack.c.b16 %v4430, %v4428
        %v4547 = vpack.c.b16 %v4431, %v4429
        %v4548 = vpack.c.b16 %v4434, %v4432
        %v4549 = vpack.c.b16 %v4435, %v4433
        %v4550 = vpack.c.b16 %v4438, %v4436
        %v4551 = vpack.c.b16 %v4439, %v4437
        %v4552 = vpack.c.b16 %v4442, %v4440
        %v4553 = vpack.c.b16 %v4443, %v4441
        %v4554 = vpack.c.b16 %v4446, %v4444
        %v4555 = vpack.c.b16 %v4447, %v4445
        %v4556 = vpack.c.b16 %v4450, %v4448
        %v4557 = vpack.c.b16 %v4451, %v4449
        %v4558 = vpack.c.b16 %v4454, %v4452
        %v4559 = vpack.c.b16 %v4455, %v4453
        %v4560 = vpack.c.b16 %v4458, %v4456
        %v4561 = vpack.c.b16 %v4459, %v4457
        %v4562 = vpack.c.b16 %v4462, %v4460
        %v4563 = vpack.c.b16 %v4463, %v4461
        %v4564 = vpack.c.b16 %v4466, %v4464
        %v4565 = vpack.c.b16 %v4467, %v4465
        %v4566 = vpack.c.b16 %v4470, %v4468
        %v4567 = vpack.c.b16 %v4471, %v4469
        %v4568 = vpack.c.b16 %v4474, %v4472
        %v4569 = vpack.c.b16 %v4475, %v4473
        %v4570 = vpack.c.b16 %v4478, %v4476
        %v4571 = vpack.c.b16 %v4479, %v4477
        %v4572 = vpack.c.b16 %v4482, %v4480
        %v4573 = vpack.c.b16 %v4483, %v4481
        %v4574 = vpack.c.b16 %v4486, %v4484
        %v4575 = vpack.c.b16 %v4487, %v4485
        %v4576 = vpack.c.b16 %v4490, %v4488
        %v4577 = vpack.c.b16 %v4491, %v4489
        %v4578 = vpack.c.b16 %v4494, %v4492
        %v4579 = vpack.c.b16 %v4495, %v4493
        %v4580 = vpack.c.b16 %v4498, %v4496
        %v4581 = vpack.c.b16 %v4499, %v4497
        %v4582 = vpack.c.b16 %v4502, %v4500
        %v4583 = vpack.c.b16 %v4503, %v4501
        %v4584 = vpack.c.b16 %v4506, %v4504
        %v4585 = vpack.c.b16 %v4507, %v4505
        %v4586 = vpack.c.b16 %v4510, %v4508
        %v4587 = vpack.c.b16 %v4511, %v4509
        %v4588 = vpack.c.b16 %v4514, %v4512
        %v4589 = vpack.c.b16 %v4515, %v4513
        %v4590 = vpack.c.b16 %v4518, %v4516
        %v4591 = vpack.c.b16 %v4519, %v4517
        %v4592 = vpack.c.b16 %v4522, %v4520
        %v4593 = vpack.c.b16 %v4523, %v4521
        %v4594 = vpack.c.b16 %v4526, %v4524
        %v4595 = vpack.c.b16 %v4527, %v4525
        %v4596 = vpack.c.b16 %v4530, %v4528
        %v4597 = vpack.c.b16 %v4531, %v4529
        %v4598 = vpack.c.b16 %v4534, %v4532
        %v4599 = vpack.c.b16 %v4535, %v4533
        %4664 = vmatprep.subr.bf16.mxu0 %v4537
        %4665 = vmatpush1.bf16.msra.mxu0 %v4536
        %4666 = vmatprep.subr.bf16.mxu0 %v4539
        %4667 = vmatpush1.bf16.msra.mxu0 %v4538
        %4668 = vmatprep.subr.bf16.mxu0 %v4541
        %4669 = vmatpush1.bf16.msra.mxu0 %v4540
        %4670 = vmatprep.subr.bf16.mxu0 %v4543
        %4671 = vmatpush1.bf16.msra.mxu0 %v4542
        %4672 = vmatprep.subr.bf16.mxu0 %v4545
        %4673 = vmatpush1.bf16.msra.mxu0 %v4544
        %4674 = vmatprep.subr.bf16.mxu0 %v4547
        %4675 = vmatpush1.bf16.msra.mxu0 %v4546
        %4676 = vmatprep.subr.bf16.mxu0 %v4549
        %4677 = vmatpush1.bf16.msra.mxu0 %v4548
        %4678 = vmatprep.subr.bf16.mxu0 %v4551
        %4679 = vmatpush1.bf16.msra.mxu0 %v4550
        %4680 = vmatprep.subr.bf16.mxu0 %v4553
        %4681 = vmatpush1.bf16.msra.mxu0 %v4552
        %4682 = vmatprep.subr.bf16.mxu0 %v4555
        %4683 = vmatpush1.bf16.msra.mxu0 %v4554
        %4684 = vmatprep.subr.bf16.mxu0 %v4557
        %4685 = vmatpush1.bf16.msra.mxu0 %v4556
        %4686 = vmatprep.subr.bf16.mxu0 %v4559
        %4687 = vmatpush1.bf16.msra.mxu0 %v4558
        %4688 = vmatprep.subr.bf16.mxu0 %v4561
        %4689 = vmatpush1.bf16.msra.mxu0 %v4560
        %4690 = vmatprep.subr.bf16.mxu0 %v4563
        %4691 = vmatpush1.bf16.msra.mxu0 %v4562
        %4692 = vmatprep.subr.bf16.mxu0 %v4565
        %4693 = vmatpush1.bf16.msra.mxu0 %v4564
        %4694 = vmatprep.subr.bf16.mxu0 %v4567
        %4695 = vmatpush1.bf16.msra.mxu0 %v4566
        %4696 = vmatprep.mubr.bf16.mxu0 %v4205
        %4697 = vmatmul.mubr.bf16.gmra.mrb[0].mxu0 %v4204
        %v4698 = vpop.f32.mrb[0].mxu0
        %v4699 = vadd.f32 %v4337, %v4698
        %v4700 = vpop.f32.mrb[0].mxu0
        %v4701 = vadd.f32 %v4341, %v4700
        %v4702 = vpop.f32.mrb[0].mxu0
        %v4703 = vadd.f32 %v4337, %v4702
        %v4704 = vpop.f32.mrb[0].mxu0
        %v4705 = vadd.f32 %v4341, %v4704
        %4706 = vmatprep.mubr.bf16.mxu0 %v4209
        %4707 = vmatmul.mubr.bf16.gmra.mrb[0].mxu0 %v4208
        %v4708 = vpop.f32.mrb[0].mxu0
        %v4709 = vadd.f32 %v4337, %v4708
        %v4710 = vpop.f32.mrb[0].mxu0
        %v4711 = vadd.f32 %v4341, %v4710
        %v4712 = vpop.f32.mrb[0].mxu0
        %v4713 = vadd.f32 %v4337, %v4712
        %v4714 = vpop.f32.mrb[0].mxu0
        %v4715 = vadd.f32 %v4341, %v4714
        %4716 = vmatprep.mubr.bf16.mxu0 %v4213
        %4717 = vmatmul.mubr.bf16.gmra.mrb[0].mxu0 %v4212
        %v4718 = vpop.f32.mrb[0].mxu0
        %v4719 = vadd.f32 %v4337, %v4718
        %v4720 = vpop.f32.mrb[0].mxu0
        %v4721 = vadd.f32 %v4341, %v4720
        %v4722 = vpop.f32.mrb[0].mxu0
        %v4723 = vadd.f32 %v4337, %v4722
        %v4724 = vpop.f32.mrb[0].mxu0
        %v4725 = vadd.f32 %v4341, %v4724
        %4726 = vmatprep.mubr.bf16.mxu0 %v4217
        %4727 = vmatmul.mubr.bf16.gmra.mrb[0].mxu0 %v4216
        %v4728 = vpop.f32.mrb[0].mxu0
        %v4729 = vadd.f32 %v4337, %v4728
        %v4730 = vpop.f32.mrb[0].mxu0
        %v4731 = vadd.f32 %v4341, %v4730
        %v4732 = vpop.f32.mrb[0].mxu0
        %v4733 = vadd.f32 %v4337, %v4732
        %v4734 = vpop.f32.mrb[0].mxu0
        %v4735 = vadd.f32 %v4341, %v4734
        %4736 = vmatprep.mubr.bf16.mxu0 %v4221
        %4737 = vmatmul.mubr.bf16.gmra.mrb[0].mxu0 %v4220
        %v4738 = vpop.f32.mrb[0].mxu0
        %v4739 = vadd.f32 %v4337, %v4738
        %v4740 = vpop.f32.mrb[0].mxu0
        %v4741 = vadd.f32 %v4341, %v4740
        %v4742 = vpop.f32.mrb[0].mxu0
        %v4743 = vadd.f32 %v4337, %v4742
        %v4744 = vpop.f32.mrb[0].mxu0
        %v4745 = vadd.f32 %v4341, %v4744
        %4746 = vmatprep.mubr.bf16.mxu0 %v4225
        %4747 = vmatmul.mubr.bf16.gmra.mrb[0].mxu0 %v4224
        %v4748 = vpop.f32.mrb[0].mxu0
        %v4749 = vadd.f32 %v4337, %v4748
        %v4750 = vpop.f32.mrb[0].mxu0
        %v4751 = vadd.f32 %v4341, %v4750
        %v4752 = vpop.f32.mrb[0].mxu0
        %v4753 = vadd.f32 %v4337, %v4752
        %v4754 = vpop.f32.mrb[0].mxu0
        %v4755 = vadd.f32 %v4341, %v4754
        %4756 = vmatprep.mubr.bf16.mxu0 %v4229
        %4757 = vmatmul.mubr.bf16.gmra.mrb[0].mxu0 %v4228
        %v4758 = vpop.f32.mrb[0].mxu0
        %v4759 = vadd.f32 %v4337, %v4758
        %v4760 = vpop.f32.mrb[0].mxu0
        %v4761 = vadd.f32 %v4341, %v4760
        %v4762 = vpop.f32.mrb[0].mxu0
        %v4763 = vadd.f32 %v4337, %v4762
        %v4764 = vpop.f32.mrb[0].mxu0
        %v4765 = vadd.f32 %v4341, %v4764
        %4766 = vmatprep.mubr.bf16.mxu0 %v4233
        %4767 = vmatmul.mubr.bf16.gmra.mrb[0].mxu0 %v4232
        %v4768 = vpop.f32.mrb[0].mxu0
        %v4769 = vadd.f32 %v4337, %v4768
        %v4770 = vpop.f32.mrb[0].mxu0
        %v4771 = vadd.f32 %v4341, %v4770
        %v4772 = vpop.f32.mrb[0].mxu0
        %v4773 = vadd.f32 %v4337, %v4772
        %v4774 = vpop.f32.mrb[0].mxu0
        %v4775 = vadd.f32 %v4341, %v4774
        %4776 = vmatprep.mubr.bf16.mxu0 %v4237
        %4777 = vmatmul.mubr.bf16.gmra.mrb[0].mxu0 %v4236
        %v4778 = vpop.f32.mrb[0].mxu0
        %v4779 = vadd.f32 %v4337, %v4778
        %v4780 = vpop.f32.mrb[0].mxu0
        %v4781 = vadd.f32 %v4341, %v4780
        %v4782 = vpop.f32.mrb[0].mxu0
        %v4783 = vadd.f32 %v4337, %v4782
        %v4784 = vpop.f32.mrb[0].mxu0
        %v4785 = vadd.f32 %v4341, %v4784
        %4786 = vmatprep.mubr.bf16.mxu0 %v4241
        %4787 = vmatmul.mubr.bf16.gmra.mrb[0].mxu0 %v4240
        %v4788 = vpop.f32.mrb[0].mxu0
        %v4789 = vadd.f32 %v4337, %v4788
        %v4790 = vpop.f32.mrb[0].mxu0
        %v4791 = vadd.f32 %v4341, %v4790
        %v4792 = vpop.f32.mrb[0].mxu0
        %v4793 = vadd.f32 %v4337, %v4792
        %v4794 = vpop.f32.mrb[0].mxu0
        %v4795 = vadd.f32 %v4341, %v4794
        %4796 = vmatprep.mubr.bf16.mxu0 %v4245
        %4797 = vmatmul.mubr.bf16.gmra.mrb[0].mxu0 %v4244
        %v4798 = vpop.f32.mrb[0].mxu0
        %v4799 = vadd.f32 %v4337, %v4798
        %v4800 = vpop.f32.mrb[0].mxu0
        %v4801 = vadd.f32 %v4341, %v4800
        %v4802 = vpop.f32.mrb[0].mxu0
        %v4803 = vadd.f32 %v4337, %v4802
        %v4804 = vpop.f32.mrb[0].mxu0
        %v4805 = vadd.f32 %v4341, %v4804
        %4806 = vmatprep.mubr.bf16.mxu0 %v4249
        %4807 = vmatmul.mubr.bf16.gmra.mrb[0].mxu0 %v4248
        %v4808 = vpop.f32.mrb[0].mxu0
        %v4809 = vadd.f32 %v4337, %v4808
        %v4810 = vpop.f32.mrb[0].mxu0
        %v4811 = vadd.f32 %v4341, %v4810
        %v4812 = vpop.f32.mrb[0].mxu0
        %v4813 = vadd.f32 %v4337, %v4812
        %v4814 = vpop.f32.mrb[0].mxu0
        %v4815 = vadd.f32 %v4341, %v4814
        %4816 = vmatprep.mubr.bf16.mxu0 %v4253
        %4817 = vmatmul.mubr.bf16.gmra.mrb[0].mxu0 %v4252
        %v4818 = vpop.f32.mrb[0].mxu0
        %v4819 = vadd.f32 %v4337, %v4818
        %v4820 = vpop.f32.mrb[0].mxu0
        %v4821 = vadd.f32 %v4341, %v4820
        %v4822 = vpop.f32.mrb[0].mxu0
        %v4823 = vadd.f32 %v4337, %v4822
        %v4824 = vpop.f32.mrb[0].mxu0
        %v4825 = vadd.f32 %v4341, %v4824
        %4826 = vmatprep.mubr.bf16.mxu0 %v4257
        %4827 = vmatmul.mubr.bf16.gmra.mrb[0].mxu0 %v4256
        %v4828 = vpop.f32.mrb[0].mxu0
        %v4829 = vadd.f32 %v4337, %v4828
        %v4830 = vpop.f32.mrb[0].mxu0
        %v4831 = vadd.f32 %v4341, %v4830
        %v4832 = vpop.f32.mrb[0].mxu0
        %v4833 = vadd.f32 %v4337, %v4832
        %v4834 = vpop.f32.mrb[0].mxu0
        %v4835 = vadd.f32 %v4341, %v4834
        %4836 = vmatprep.mubr.bf16.mxu0 %v4261
        %4837 = vmatmul.mubr.bf16.gmra.mrb[0].mxu0 %v4260
        %v4838 = vpop.f32.mrb[0].mxu0
        %v4839 = vadd.f32 %v4337, %v4838
        %v4840 = vpop.f32.mrb[0].mxu0
        %v4841 = vadd.f32 %v4341, %v4840
        %v4842 = vpop.f32.mrb[0].mxu0
        %v4843 = vadd.f32 %v4337, %v4842
        %v4844 = vpop.f32.mrb[0].mxu0
        %v4845 = vadd.f32 %v4341, %v4844
        %4846 = vmatprep.mubr.bf16.mxu0 %v4265
        %4847 = vmatmul.mubr.bf16.gmra.mrb[0].mxu0 %v4264
        %v4848 = vpop.f32.mrb[0].mxu0
        %v4849 = vadd.f32 %v4337, %v4848
        %v4850 = vpop.f32.mrb[0].mxu0
        %v4851 = vadd.f32 %v4341, %v4850
        %v4852 = vpop.f32.mrb[0].mxu0
        %v4853 = vadd.f32 %v4337, %v4852
        %v4854 = vpop.f32.mrb[0].mxu0
        %v4855 = vadd.f32 %v4341, %v4854
        %4856 = vdwg.mxu0
        %4857 = vmatprep.subr.bf16.mxu0 %v4569
        %4858 = vmatpush1.bf16.msra.mxu0 %v4568
        %4859 = vmatprep.subr.bf16.mxu0 %v4571
        %4860 = vmatpush1.bf16.msra.mxu0 %v4570
        %4861 = vmatprep.subr.bf16.mxu0 %v4573
        %4862 = vmatpush1.bf16.msra.mxu0 %v4572
        %4863 = vmatprep.subr.bf16.mxu0 %v4575
        %4864 = vmatpush1.bf16.msra.mxu0 %v4574
        %4865 = vmatprep.subr.bf16.mxu0 %v4577
        %4866 = vmatpush1.bf16.msra.mxu0 %v4576
        %4867 = vmatprep.subr.bf16.mxu0 %v4579
        %4868 = vmatpush1.bf16.msra.mxu0 %v4578
        %4869 = vmatprep.subr.bf16.mxu0 %v4581
        %4870 = vmatpush1.bf16.msra.mxu0 %v4580
        %4871 = vmatprep.subr.bf16.mxu0 %v4583
        %4872 = vmatpush1.bf16.msra.mxu0 %v4582
        %4873 = vmatprep.subr.bf16.mxu0 %v4585
        %4874 = vmatpush1.bf16.msra.mxu0 %v4584
        %4875 = vmatprep.subr.bf16.mxu0 %v4587
        %4876 = vmatpush1.bf16.msra.mxu0 %v4586
        %4877 = vmatprep.subr.bf16.mxu0 %v4589
        %4878 = vmatpush1.bf16.msra.mxu0 %v4588
        %4879 = vmatprep.subr.bf16.mxu0 %v4591
        %4880 = vmatpush1.bf16.msra.mxu0 %v4590
        %4881 = vmatprep.subr.bf16.mxu0 %v4593
        %4882 = vmatpush1.bf16.msra.mxu0 %v4592
        %4883 = vmatprep.subr.bf16.mxu0 %v4595
        %4884 = vmatpush1.bf16.msra.mxu0 %v4594
        %4885 = vmatprep.subr.bf16.mxu0 %v4597
        %4886 = vmatpush1.bf16.msra.mxu0 %v4596
        %4887 = vmatprep.subr.bf16.mxu0 %v4599
        %4888 = vmatpush1.bf16.msra.mxu0 %v4598
        %4889 = vmatprep.mubr.bf16.mxu0 %v4207
        %4890 = vmatmul.mubr.bf16.gmra.mrb[0].mxu0 %v4206
        %v4891 = vpop.f32.mrb[0].mxu0
        %v4892 = vadd.f32 %v4699, %v4891
        %v4893 = vpop.f32.mrb[0].mxu0
        %v4894 = vadd.f32 %v4701, %v4893
        %v4895 = vpop.f32.mrb[0].mxu0
        %v4896 = vadd.f32 %v4703, %v4895
        %v4897 = vpop.f32.mrb[0].mxu0
        %v4898 = vadd.f32 %v4705, %v4897
        %4899 = vmatprep.mubr.bf16.mxu0 %v4211
        %4900 = vmatmul.mubr.bf16.gmra.mrb[0].mxu0 %v4210
        %v4901 = vpop.f32.mrb[0].mxu0
        %v4902 = vadd.f32 %v4709, %v4901
        %v4903 = vpop.f32.mrb[0].mxu0
        %v4904 = vadd.f32 %v4711, %v4903
        %v4905 = vpop.f32.mrb[0].mxu0
        %v4906 = vadd.f32 %v4713, %v4905
        %v4907 = vpop.f32.mrb[0].mxu0
        %v4908 = vadd.f32 %v4715, %v4907
        %4909 = vmatprep.mubr.bf16.mxu0 %v4215
        %4910 = vmatmul.mubr.bf16.gmra.mrb[0].mxu0 %v4214
        %v4911 = vpop.f32.mrb[0].mxu0
        %v4912 = vadd.f32 %v4719, %v4911
        %v4913 = vpop.f32.mrb[0].mxu0
        %v4914 = vadd.f32 %v4721, %v4913
        %v4915 = vpop.f32.mrb[0].mxu0
        %v4916 = vadd.f32 %v4723, %v4915
        %v4917 = vpop.f32.mrb[0].mxu0
        %v4918 = vadd.f32 %v4725, %v4917
        %4919 = vmatprep.mubr.bf16.mxu0 %v4219
        %4920 = vmatmul.mubr.bf16.gmra.mrb[0].mxu0 %v4218
        %v4921 = vpop.f32.mrb[0].mxu0
        %v4922 = vadd.f32 %v4729, %v4921
        %v4923 = vpop.f32.mrb[0].mxu0
        %v4924 = vadd.f32 %v4731, %v4923
        %v4925 = vpop.f32.mrb[0].mxu0
        %v4926 = vadd.f32 %v4733, %v4925
        %v4927 = vpop.f32.mrb[0].mxu0
        %v4928 = vadd.f32 %v4735, %v4927
        %4929 = vmatprep.mubr.bf16.mxu0 %v4223
        %4930 = vmatmul.mubr.bf16.gmra.mrb[0].mxu0 %v4222
        %v4931 = vpop.f32.mrb[0].mxu0
        %v4932 = vadd.f32 %v4739, %v4931
        %v4933 = vpop.f32.mrb[0].mxu0
        %v4934 = vadd.f32 %v4741, %v4933
        %v4935 = vpop.f32.mrb[0].mxu0
        %v4936 = vadd.f32 %v4743, %v4935
        %v4937 = vpop.f32.mrb[0].mxu0
        %v4938 = vadd.f32 %v4745, %v4937
        %4939 = vmatprep.mubr.bf16.mxu0 %v4227
        %4940 = vmatmul.mubr.bf16.gmra.mrb[0].mxu0 %v4226
        %v4941 = vpop.f32.mrb[0].mxu0
        %v4942 = vadd.f32 %v4749, %v4941
        %v4943 = vpop.f32.mrb[0].mxu0
        %v4944 = vadd.f32 %v4751, %v4943
        %v4945 = vpop.f32.mrb[0].mxu0
        %v4946 = vadd.f32 %v4753, %v4945
        %v4947 = vpop.f32.mrb[0].mxu0
        %v4948 = vadd.f32 %v4755, %v4947
        %4949 = vmatprep.mubr.bf16.mxu0 %v4231
        %4950 = vmatmul.mubr.bf16.gmra.mrb[0].mxu0 %v4230
        %v4951 = vpop.f32.mrb[0].mxu0
        %v4952 = vadd.f32 %v4759, %v4951
        %v4953 = vpop.f32.mrb[0].mxu0
        %v4954 = vadd.f32 %v4761, %v4953
        %v4955 = vpop.f32.mrb[0].mxu0
        %v4956 = vadd.f32 %v4763, %v4955
        %v4957 = vpop.f32.mrb[0].mxu0
        %v4958 = vadd.f32 %v4765, %v4957
        %4959 = vmatprep.mubr.bf16.mxu0 %v4235
        %4960 = vmatmul.mubr.bf16.gmra.mrb[0].mxu0 %v4234
        %v4961 = vpop.f32.mrb[0].mxu0
        %v4962 = vadd.f32 %v4769, %v4961
        %v4963 = vpop.f32.mrb[0].mxu0
        %v4964 = vadd.f32 %v4771, %v4963
        %v4965 = vpop.f32.mrb[0].mxu0
        %v4966 = vadd.f32 %v4773, %v4965
        %v4967 = vpop.f32.mrb[0].mxu0
        %v4968 = vadd.f32 %v4775, %v4967
        %4969 = vmatprep.mubr.bf16.mxu0 %v4239
        %4970 = vmatmul.mubr.bf16.gmra.mrb[0].mxu0 %v4238
        %v4971 = vpop.f32.mrb[0].mxu0
        %v4972 = vadd.f32 %v4779, %v4971
        %v4973 = vpop.f32.mrb[0].mxu0
        %v4974 = vadd.f32 %v4781, %v4973
        %v4975 = vpop.f32.mrb[0].mxu0
        %v4976 = vadd.f32 %v4783, %v4975
        %v4977 = vpop.f32.mrb[0].mxu0
        %v4978 = vadd.f32 %v4785, %v4977
        %4979 = vmatprep.mubr.bf16.mxu0 %v4243
        %4980 = vmatmul.mubr.bf16.gmra.mrb[0].mxu0 %v4242
        %v4981 = vpop.f32.mrb[0].mxu0
        %v4982 = vadd.f32 %v4789, %v4981
        %v4983 = vpop.f32.mrb[0].mxu0
        %v4984 = vadd.f32 %v4791, %v4983
        %v4985 = vpop.f32.mrb[0].mxu0
        %v4986 = vadd.f32 %v4793, %v4985
        %v4987 = vpop.f32.mrb[0].mxu0
        %v4988 = vadd.f32 %v4795, %v4987
        %4989 = vmatprep.mubr.bf16.mxu0 %v4247
        %4990 = vmatmul.mubr.bf16.gmra.mrb[0].mxu0 %v4246
        %v4991 = vpop.f32.mrb[0].mxu0
        %v4992 = vadd.f32 %v4799, %v4991
        %v4993 = vpop.f32.mrb[0].mxu0
        %v4994 = vadd.f32 %v4801, %v4993
        %v4995 = vpop.f32.mrb[0].mxu0
        %v4996 = vadd.f32 %v4803, %v4995
        %v4997 = vpop.f32.mrb[0].mxu0
        %v4998 = vadd.f32 %v4805, %v4997
        %4999 = vmatprep.mubr.bf16.mxu0 %v4251
        %5000 = vmatmul.mubr.bf16.gmra.mrb[0].mxu0 %v4250
        %v5001 = vpop.f32.mrb[0].mxu0
        %v5002 = vadd.f32 %v4809, %v5001
        %v5003 = vpop.f32.mrb[0].mxu0
        %v5004 = vadd.f32 %v4811, %v5003
        %v5005 = vpop.f32.mrb[0].mxu0
        %v5006 = vadd.f32 %v4813, %v5005
        %v5007 = vpop.f32.mrb[0].mxu0
        %v5008 = vadd.f32 %v4815, %v5007
        %5009 = vmatprep.mubr.bf16.mxu0 %v4255
        %5010 = vmatmul.mubr.bf16.gmra.mrb[0].mxu0 %v4254
        %v5011 = vpop.f32.mrb[0].mxu0
        %v5012 = vadd.f32 %v4819, %v5011
        %v5013 = vpop.f32.mrb[0].mxu0
        %v5014 = vadd.f32 %v4821, %v5013
        %v5015 = vpop.f32.mrb[0].mxu0
        %v5016 = vadd.f32 %v4823, %v5015
        %v5017 = vpop.f32.mrb[0].mxu0
        %v5018 = vadd.f32 %v4825, %v5017
        %5019 = vmatprep.mubr.bf16.mxu0 %v4259
        %5020 = vmatmul.mubr.bf16.gmra.mrb[0].mxu0 %v4258
        %v5021 = vpop.f32.mrb[0].mxu0
        %v5022 = vadd.f32 %v4829, %v5021
        %v5023 = vpop.f32.mrb[0].mxu0
        %v5024 = vadd.f32 %v4831, %v5023
        %v5025 = vpop.f32.mrb[0].mxu0
        %v5026 = vadd.f32 %v4833, %v5025
        %v5027 = vpop.f32.mrb[0].mxu0
        %v5028 = vadd.f32 %v4835, %v5027
        %5029 = vmatprep.mubr.bf16.mxu0 %v4263
        %5030 = vmatmul.mubr.bf16.gmra.mrb[0].mxu0 %v4262
        %v5031 = vpop.f32.mrb[0].mxu0
        %v5032 = vadd.f32 %v4839, %v5031
        %v5033 = vpop.f32.mrb[0].mxu0
        %v5034 = vadd.f32 %v4841, %v5033
        %v5035 = vpop.f32.mrb[0].mxu0
        %v5036 = vadd.f32 %v4843, %v5035
        %v5037 = vpop.f32.mrb[0].mxu0
        %v5038 = vadd.f32 %v4845, %v5037
        %5039 = vmatprep.mubr.bf16.mxu0 %v4267
        %5040 = vmatmul.mubr.bf16.gmra.mrb[0].mxu0 %v4266
        %v5041 = vpop.f32.mrb[0].mxu0
        %v5042 = vadd.f32 %v4849, %v5041
        %v5043 = vpop.f32.mrb[0].mxu0
        %v5044 = vadd.f32 %v4851, %v5043
        %v5045 = vpop.f32.mrb[0].mxu0
        %v5046 = vadd.f32 %v4853, %v5045
        %v5047 = vpop.f32.mrb[0].mxu0
        %v5048 = vadd.f32 %v4855, %v5047
        %5049 = vdwg.mxu0
        %v5050 = vmul.f32 %v4892, 0.2
        %v5051 = vmul.f32 %v4894, 0.2
        %v5052 = vmul.f32 %v4896, 0.2
        %v5053 = vmul.f32 %v4898, 0.2
        %v5054 = vmul.f32 %v4902, 0.2
        %v5055 = vmul.f32 %v4904, 0.2
        %v5056 = vmul.f32 %v4906, 0.2
        %v5057 = vmul.f32 %v4908, 0.2
        %v5058 = vmul.f32 %v4912, 0.2
        %v5059 = vmul.f32 %v4914, 0.2
        %v5060 = vmul.f32 %v4916, 0.2
        %v5061 = vmul.f32 %v4918, 0.2
        %v5062 = vmul.f32 %v4922, 0.2
        %v5063 = vmul.f32 %v4924, 0.2
        %v5064 = vmul.f32 %v4926, 0.2
        %v5065 = vmul.f32 %v4928, 0.2
        %v5066 = vmul.f32 %v4932, 0.2
        %v5067 = vmul.f32 %v4934, 0.2
        %v5068 = vmul.f32 %v4936, 0.2
        %v5069 = vmul.f32 %v4938, 0.2
        %v5070 = vmul.f32 %v4942, 0.2
        %v5071 = vmul.f32 %v4944, 0.2
        %v5072 = vmul.f32 %v4946, 0.2
        %v5073 = vmul.f32 %v4948, 0.2
        %v5074 = vmul.f32 %v4952, 0.2
        %v5075 = vmul.f32 %v4954, 0.2
        %v5076 = vmul.f32 %v4956, 0.2
        %v5077 = vmul.f32 %v4958, 0.2
        %v5078 = vmul.f32 %v4962, 0.2
        %v5079 = vmul.f32 %v4964, 0.2
        %v5080 = vmul.f32 %v4966, 0.2
        %v5081 = vmul.f32 %v4968, 0.2
        %v5082 = vmul.f32 %v4972, 0.2
        %v5083 = vmul.f32 %v4974, 0.2
        %v5084 = vmul.f32 %v4976, 0.2
        %v5085 = vmul.f32 %v4978, 0.2
        %v5086 = vmul.f32 %v4982, 0.2
        %v5087 = vmul.f32 %v4984, 0.2
        %v5088 = vmul.f32 %v4986, 0.2
        %v5089 = vmul.f32 %v4988, 0.2
        %v5090 = vmul.f32 %v4992, 0.2
        %v5091 = vmul.f32 %v4994, 0.2
        %v5092 = vmul.f32 %v4996, 0.2
        %v5093 = vmul.f32 %v4998, 0.2
        %v5094 = vmul.f32 %v5002, 0.2
        %v5095 = vmul.f32 %v5004, 0.2
        %v5096 = vmul.f32 %v5006, 0.2
        %v5097 = vmul.f32 %v5008, 0.2
        %v5098 = vmul.f32 %v5012, 0.2
        %v5099 = vmul.f32 %v5014, 0.2
        %v5100 = vmul.f32 %v5016, 0.2
        %v5101 = vmul.f32 %v5018, 0.2
        %v5102 = vmul.f32 %v5022, 0.2
        %v5103 = vmul.f32 %v5024, 0.2
        %v5104 = vmul.f32 %v5026, 0.2
        %v5105 = vmul.f32 %v5028, 0.2
        %v5106 = vmul.f32 %v5032, 0.2
        %v5107 = vmul.f32 %v5034, 0.2
        %v5108 = vmul.f32 %v5036, 0.2
        %v5109 = vmul.f32 %v5038, 0.2
        %v5110 = vmul.f32 %v5042, 0.2
        %v5111 = vmul.f32 %v5044, 0.2
        %v5112 = vmul.f32 %v5046, 0.2
        %v5113 = vmul.f32 %v5048, 0.2
        %v5114 = vmax.f32 %v4892, %v5050
        %v5115 = vmax.f32 %v4894, %v5051
        %v5116 = vmax.f32 %v4896, %v5052
        %v5117 = vmax.f32 %v4898, %v5053
        %v5118 = vmax.f32 %v4902, %v5054
        %v5119 = vmax.f32 %v4904, %v5055
        %v5120 = vmax.f32 %v4906, %v5056
        %v5121 = vmax.f32 %v4908, %v5057
        %v5122 = vmax.f32 %v4912, %v5058
        %v5123 = vmax.f32 %v4914, %v5059
        %v5124 = vmax.f32 %v4916, %v5060
        %v5125 = vmax.f32 %v4918, %v5061
        %v5126 = vmax.f32 %v4922, %v5062
        %v5127 = vmax.f32 %v4924, %v5063
        %v5128 = vmax.f32 %v4926, %v5064
        %v5129 = vmax.f32 %v4928, %v5065
        %v5130 = vmax.f32 %v4932, %v5066
        %v5131 = vmax.f32 %v4934, %v5067
        %v5132 = vmax.f32 %v4936, %v5068
        %v5133 = vmax.f32 %v4938, %v5069
        %v5134 = vmax.f32 %v4942, %v5070
        %v5135 = vmax.f32 %v4944, %v5071
        %v5136 = vmax.f32 %v4946, %v5072
        %v5137 = vmax.f32 %v4948, %v5073
        %v5138 = vmax.f32 %v4952, %v5074
        %v5139 = vmax.f32 %v4954, %v5075
        %v5140 = vmax.f32 %v4956, %v5076
        %v5141 = vmax.f32 %v4958, %v5077
        %v5142 = vmax.f32 %v4962, %v5078
        %v5143 = vmax.f32 %v4964, %v5079
        %v5144 = vmax.f32 %v4966, %v5080
        %v5145 = vmax.f32 %v4968, %v5081
        %v5146 = vmax.f32 %v4972, %v5082
        %v5147 = vmax.f32 %v4974, %v5083
        %v5148 = vmax.f32 %v4976, %v5084
        %v5149 = vmax.f32 %v4978, %v5085
        %v5150 = vmax.f32 %v4982, %v5086
        %v5151 = vmax.f32 %v4984, %v5087
        %v5152 = vmax.f32 %v4986, %v5088
        %v5153 = vmax.f32 %v4988, %v5089
        %v5154 = vmax.f32 %v4992, %v5090
        %v5155 = vmax.f32 %v4994, %v5091
        %v5156 = vmax.f32 %v4996, %v5092
        %v5157 = vmax.f32 %v4998, %v5093
        %v5158 = vmax.f32 %v5002, %v5094
        %v5159 = vmax.f32 %v5004, %v5095
        %v5160 = vmax.f32 %v5006, %v5096
        %v5161 = vmax.f32 %v5008, %v5097
        %v5162 = vmax.f32 %v5012, %v5098
        %v5163 = vmax.f32 %v5014, %v5099
        %v5164 = vmax.f32 %v5016, %v5100
        %v5165 = vmax.f32 %v5018, %v5101
        %v5166 = vmax.f32 %v5022, %v5102
        %v5167 = vmax.f32 %v5024, %v5103
        %v5168 = vmax.f32 %v5026, %v5104
        %v5169 = vmax.f32 %v5028, %v5105
        %v5170 = vmax.f32 %v5032, %v5106
        %v5171 = vmax.f32 %v5034, %v5107
        %v5172 = vmax.f32 %v5036, %v5108
        %v5173 = vmax.f32 %v5038, %v5109
        %v5174 = vmax.f32 %v5042, %v5110
        %v5175 = vmax.f32 %v5044, %v5111
        %v5176 = vmax.f32 %v5046, %v5112
        %v5177 = vmax.f32 %v5048, %v5113
        %v5178 = vld [vmem:[%s5] sm:$0x3]
        %v5180 = vlaneseq
        %v5181 = vshrl.u32 %v5180, 7
        %v5182 = vsub.s32 0, %v5181
        %v5183 = vrot.slane %v5178, %v5182
        %v5184 = vlaneseq
        %v5185 = vshrl.u32 %v5184, 7
        %v5186 = vsub.s32 1, %v5185
        %v5187 = vrot.slane %v5178, %v5186
        %v5190 = vmul.f32 %v5114, %v5183
        %v5191 = vmul.f32 %v5115, %v5187
        %v5192 = vmul.f32 %v5116, %v5183
        %v5193 = vmul.f32 %v5117, %v5187
        %v5194 = vmul.f32 %v5118, %v5183
        %v5195 = vmul.f32 %v5119, %v5187
        %v5196 = vmul.f32 %v5120, %v5183
        %v5197 = vmul.f32 %v5121, %v5187
        %v5198 = vmul.f32 %v5122, %v5183
        %v5199 = vmul.f32 %v5123, %v5187
        %v5200 = vmul.f32 %v5124, %v5183
        %v5201 = vmul.f32 %v5125, %v5187
        %v5202 = vmul.f32 %v5126, %v5183
        %v5203 = vmul.f32 %v5127, %v5187
        %v5204 = vmul.f32 %v5128, %v5183
        %v5205 = vmul.f32 %v5129, %v5187
        %v5206 = vmul.f32 %v5130, %v5183
        %v5207 = vmul.f32 %v5131, %v5187
        %v5208 = vmul.f32 %v5132, %v5183
        %v5209 = vmul.f32 %v5133, %v5187
        %v5210 = vmul.f32 %v5134, %v5183
        %v5211 = vmul.f32 %v5135, %v5187
        %v5212 = vmul.f32 %v5136, %v5183
        %v5213 = vmul.f32 %v5137, %v5187
        %v5214 = vmul.f32 %v5138, %v5183
        %v5215 = vmul.f32 %v5139, %v5187
        %v5216 = vmul.f32 %v5140, %v5183
        %v5217 = vmul.f32 %v5141, %v5187
        %v5218 = vmul.f32 %v5142, %v5183
        %v5219 = vmul.f32 %v5143, %v5187
        %v5220 = vmul.f32 %v5144, %v5183
        %v5221 = vmul.f32 %v5145, %v5187
        %v5222 = vmul.f32 %v5146, %v5183
        %v5223 = vmul.f32 %v5147, %v5187
        %v5224 = vmul.f32 %v5148, %v5183
        %v5225 = vmul.f32 %v5149, %v5187
        %v5226 = vmul.f32 %v5150, %v5183
        %v5227 = vmul.f32 %v5151, %v5187
        %v5228 = vmul.f32 %v5152, %v5183
        %v5229 = vmul.f32 %v5153, %v5187
        %v5230 = vmul.f32 %v5154, %v5183
        %v5231 = vmul.f32 %v5155, %v5187
        %v5232 = vmul.f32 %v5156, %v5183
        %v5233 = vmul.f32 %v5157, %v5187
        %v5234 = vmul.f32 %v5158, %v5183
        %v5235 = vmul.f32 %v5159, %v5187
        %v5236 = vmul.f32 %v5160, %v5183
        %v5237 = vmul.f32 %v5161, %v5187
        %v5238 = vmul.f32 %v5162, %v5183
        %v5239 = vmul.f32 %v5163, %v5187
        %v5240 = vmul.f32 %v5164, %v5183
        %v5241 = vmul.f32 %v5165, %v5187
        %v5242 = vmul.f32 %v5166, %v5183
        %v5243 = vmul.f32 %v5167, %v5187
        %v5244 = vmul.f32 %v5168, %v5183
        %v5245 = vmul.f32 %v5169, %v5187
        %v5246 = vmul.f32 %v5170, %v5183
        %v5247 = vmul.f32 %v5171, %v5187
        %v5248 = vmul.f32 %v5172, %v5183
        %v5249 = vmul.f32 %v5173, %v5187
        %v5250 = vmul.f32 %v5174, %v5183
        %v5251 = vmul.f32 %v5175, %v5187
        %v5252 = vmul.f32 %v5176, %v5183
        %v5253 = vmul.f32 %v5177, %v5187
        %v5254 = vadd.f32 %v5190, %v5191
        %5255 = vadd.xlane.f32.xlu0 %v5254
        %v5256 = vpop.xlane.xlu0 %5255
        %v5257 = vadd.f32 %v5192, %v5193
        %5258 = vadd.xlane.f32.xlu0 %v5257
        %v5259 = vpop.xlane.xlu0 %5258
        %v5260 = vadd.f32 %v5194, %v5195
        %5261 = vadd.xlane.f32.xlu0 %v5260
        %v5262 = vpop.xlane.xlu0 %5261
        %v5263 = vadd.f32 %v5196, %v5197
        %5264 = vadd.xlane.f32.xlu0 %v5263
        %v5265 = vpop.xlane.xlu0 %5264
        %v5266 = vadd.f32 %v5198, %v5199
        %5267 = vadd.xlane.f32.xlu0 %v5266
        %v5268 = vpop.xlane.xlu0 %5267
        %v5269 = vadd.f32 %v5200, %v5201
        %5270 = vadd.xlane.f32.xlu0 %v5269
        %v5271 = vpop.xlane.xlu0 %5270
        %v5272 = vadd.f32 %v5202, %v5203
        %5273 = vadd.xlane.f32.xlu0 %v5272
        %v5274 = vpop.xlane.xlu0 %5273
        %v5275 = vadd.f32 %v5204, %v5205
        %5276 = vadd.xlane.f32.xlu0 %v5275
        %v5277 = vpop.xlane.xlu0 %5276
        %v5278 = vadd.f32 %v5206, %v5207
        %5279 = vadd.xlane.f32.xlu0 %v5278
        %v5280 = vpop.xlane.xlu0 %5279
        %v5281 = vadd.f32 %v5208, %v5209
        %5282 = vadd.xlane.f32.xlu0 %v5281
        %v5283 = vpop.xlane.xlu0 %5282
        %v5284 = vadd.f32 %v5210, %v5211
        %5285 = vadd.xlane.f32.xlu0 %v5284
        %v5286 = vpop.xlane.xlu0 %5285
        %v5287 = vadd.f32 %v5212, %v5213
        %5288 = vadd.xlane.f32.xlu0 %v5287
        %v5289 = vpop.xlane.xlu0 %5288
        %v5290 = vadd.f32 %v5214, %v5215
        %5291 = vadd.xlane.f32.xlu0 %v5290
        %v5292 = vpop.xlane.xlu0 %5291
        %v5293 = vadd.f32 %v5216, %v5217
        %5294 = vadd.xlane.f32.xlu0 %v5293
        %v5295 = vpop.xlane.xlu0 %5294
        %v5296 = vadd.f32 %v5218, %v5219
        %5297 = vadd.xlane.f32.xlu0 %v5296
        %v5298 = vpop.xlane.xlu0 %5297
        %v5299 = vadd.f32 %v5220, %v5221
        %5300 = vadd.xlane.f32.xlu0 %v5299
        %v5301 = vpop.xlane.xlu0 %5300
        %v5302 = vadd.f32 %v5222, %v5223
        %5303 = vadd.xlane.f32.xlu0 %v5302
        %v5304 = vpop.xlane.xlu0 %5303
        %v5305 = vadd.f32 %v5224, %v5225
        %5306 = vadd.xlane.f32.xlu0 %v5305
        %v5307 = vpop.xlane.xlu0 %5306
        %v5308 = vadd.f32 %v5226, %v5227
        %5309 = vadd.xlane.f32.xlu0 %v5308
        %v5310 = vpop.xlane.xlu0 %5309
        %v5311 = vadd.f32 %v5228, %v5229
        %5312 = vadd.xlane.f32.xlu0 %v5311
        %v5313 = vpop.xlane.xlu0 %5312
        %v5314 = vadd.f32 %v5230, %v5231
        %5315 = vadd.xlane.f32.xlu0 %v5314
        %v5316 = vpop.xlane.xlu0 %5315
        %v5317 = vadd.f32 %v5232, %v5233
        %5318 = vadd.xlane.f32.xlu0 %v5317
        %v5319 = vpop.xlane.xlu0 %5318
        %v5320 = vadd.f32 %v5234, %v5235
        %5321 = vadd.xlane.f32.xlu0 %v5320
        %v5322 = vpop.xlane.xlu0 %5321
        %v5323 = vadd.f32 %v5236, %v5237
        %5324 = vadd.xlane.f32.xlu0 %v5323
        %v5325 = vpop.xlane.xlu0 %5324
        %v5326 = vadd.f32 %v5238, %v5239
        %5327 = vadd.xlane.f32.xlu0 %v5326
        %v5328 = vpop.xlane.xlu0 %5327
        %v5329 = vadd.f32 %v5240, %v5241
        %5330 = vadd.xlane.f32.xlu0 %v5329
        %v5331 = vpop.xlane.xlu0 %5330
        %v5332 = vadd.f32 %v5242, %v5243
        %5333 = vadd.xlane.f32.xlu0 %v5332
        %v5334 = vpop.xlane.xlu0 %5333
        %v5335 = vadd.f32 %v5244, %v5245
        %5336 = vadd.xlane.f32.xlu0 %v5335
        %v5337 = vpop.xlane.xlu0 %5336
        %v5338 = vadd.f32 %v5246, %v5247
        %5339 = vadd.xlane.f32.xlu0 %v5338
        %v5340 = vpop.xlane.xlu0 %5339
        %v5341 = vadd.f32 %v5248, %v5249
        %5342 = vadd.xlane.f32.xlu0 %v5341
        %v5343 = vpop.xlane.xlu0 %5342
        %v5344 = vadd.f32 %v5250, %v5251
        %5345 = vadd.xlane.f32.xlu0 %v5344
        %v5346 = vpop.xlane.xlu0 %5345
        %v5347 = vadd.f32 %v5252, %v5253
        %5348 = vadd.xlane.f32.xlu0 %v5347
        %v5349 = vpop.xlane.xlu0 %5348
        %v5350 = vld [vmem:[#allocation2] sm:$0x1]
        %v5352 = vlaneseq
        %v5353 = vshrl.u32 %v5352, 7
        %v5354 = vsub.s32 0, %v5353
        %v5355 = vrot.slane %v5350, %v5354
        %v5357 = vadd.f32 %v5256, %v5355
        %v5358 = vadd.f32 %v5259, %v5355
        %v5359 = vadd.f32 %v5262, %v5355
        %v5360 = vadd.f32 %v5265, %v5355
        %v5361 = vadd.f32 %v5268, %v5355
        %v5362 = vadd.f32 %v5271, %v5355
        %v5363 = vadd.f32 %v5274, %v5355
        %v5364 = vadd.f32 %v5277, %v5355
        %v5365 = vadd.f32 %v5280, %v5355
        %v5366 = vadd.f32 %v5283, %v5355
        %v5367 = vadd.f32 %v5286, %v5355
        %v5368 = vadd.f32 %v5289, %v5355
        %v5369 = vadd.f32 %v5292, %v5355
        %v5370 = vadd.f32 %v5295, %v5355
        %v5371 = vadd.f32 %v5298, %v5355
        %v5372 = vadd.f32 %v5301, %v5355
        %v5373 = vadd.f32 %v5304, %v5355
        %v5374 = vadd.f32 %v5307, %v5355
        %v5375 = vadd.f32 %v5310, %v5355
        %v5376 = vadd.f32 %v5313, %v5355
        %v5377 = vadd.f32 %v5316, %v5355
        %v5378 = vadd.f32 %v5319, %v5355
        %v5379 = vadd.f32 %v5322, %v5355
        %v5380 = vadd.f32 %v5325, %v5355
        %v5381 = vadd.f32 %v5328, %v5355
        %v5382 = vadd.f32 %v5331, %v5355
        %v5383 = vadd.f32 %v5334, %v5355
        %v5384 = vadd.f32 %v5337, %v5355
        %v5385 = vadd.f32 %v5340, %v5355
        %v5386 = vadd.f32 %v5343, %v5355
        %v5387 = vadd.f32 %v5346, %v5355
        %v5388 = vadd.f32 %v5349, %v5355
        %v5389 = vxor.u32 %v5357, 2147483648
        %v5390 = vxor.u32 %v5358, 2147483648
        %v5391 = vxor.u32 %v5359, 2147483648
        %v5392 = vxor.u32 %v5360, 2147483648
        %v5393 = vxor.u32 %v5361, 2147483648
        %v5394 = vxor.u32 %v5362, 2147483648
        %v5395 = vxor.u32 %v5363, 2147483648
        %v5396 = vxor.u32 %v5364, 2147483648
        %v5397 = vxor.u32 %v5365, 2147483648
        %v5398 = vxor.u32 %v5366, 2147483648
        %v5399 = vxor.u32 %v5367, 2147483648
        %v5400 = vxor.u32 %v5368, 2147483648
        %v5401 = vxor.u32 %v5369, 2147483648
        %v5402 = vxor.u32 %v5370, 2147483648
        %v5403 = vxor.u32 %v5371, 2147483648
        %v5404 = vxor.u32 %v5372, 2147483648
        %v5405 = vxor.u32 %v5373, 2147483648
        %v5406 = vxor.u32 %v5374, 2147483648
        %v5407 = vxor.u32 %v5375, 2147483648
        %v5408 = vxor.u32 %v5376, 2147483648
        %v5409 = vxor.u32 %v5377, 2147483648
        %v5410 = vxor.u32 %v5378, 2147483648
        %v5411 = vxor.u32 %v5379, 2147483648
        %v5412 = vxor.u32 %v5380, 2147483648
        %v5413 = vxor.u32 %v5381, 2147483648
        %v5414 = vxor.u32 %v5382, 2147483648
        %v5415 = vxor.u32 %v5383, 2147483648
        %v5416 = vxor.u32 %v5384, 2147483648
        %v5417 = vxor.u32 %v5385, 2147483648
        %v5418 = vxor.u32 %v5386, 2147483648
        %v5419 = vxor.u32 %v5387, 2147483648
        %v5420 = vxor.u32 %v5388, 2147483648
        %v5421 = vmul.f32 %v5389, 1.442695
        %v5422 = vpow.pop %v5421
        %v5423 = vmul.f32 %v5390, 1.442695
        %v5424 = vpow.pop %v5423
        %v5425 = vmul.f32 %v5391, 1.442695
        %v5426 = vpow.pop %v5425
        %v5427 = vmul.f32 %v5392, 1.442695
        %v5428 = vpow.pop %v5427
        %v5429 = vmul.f32 %v5393, 1.442695
        %v5430 = vpow.pop %v5429
        %v5431 = vmul.f32 %v5394, 1.442695
        %v5432 = vpow.pop %v5431
        %v5433 = vmul.f32 %v5395, 1.442695
        %v5434 = vpow.pop %v5433
        %v5435 = vmul.f32 %v5396, 1.442695
        %v5436 = vpow.pop %v5435
        %v5437 = vmul.f32 %v5397, 1.442695
        %v5438 = vpow.pop %v5437
        %v5439 = vmul.f32 %v5398, 1.442695
        %v5440 = vpow.pop %v5439
        %v5441 = vmul.f32 %v5399, 1.442695
        %v5442 = vpow.pop %v5441
        %v5443 = vmul.f32 %v5400, 1.442695
        %v5444 = vpow.pop %v5443
        %v5445 = vmul.f32 %v5401, 1.442695
        %v5446 = vpow.pop %v5445
        %v5447 = vmul.f32 %v5402, 1.442695
        %v5448 = vpow.pop %v5447
        %v5449 = vmul.f32 %v5403, 1.442695
        %v5450 = vpow.pop %v5449
        %v5451 = vmul.f32 %v5404, 1.442695
        %v5452 = vpow.pop %v5451
        %v5453 = vmul.f32 %v5405, 1.442695
        %v5454 = vpow.pop %v5453
        %v5455 = vmul.f32 %v5406, 1.442695
        %v5456 = vpow.pop %v5455
        %v5457 = vmul.f32 %v5407, 1.442695
        %v5458 = vpow.pop %v5457
        %v5459 = vmul.f32 %v5408, 1.442695
        %v5460 = vpow.pop %v5459
        %v5461 = vmul.f32 %v5409, 1.442695
        %v5462 = vpow.pop %v5461
        %v5463 = vmul.f32 %v5410, 1.442695
        %v5464 = vpow.pop %v5463
        %v5465 = vmul.f32 %v5411, 1.442695
        %v5466 = vpow.pop %v5465
        %v5467 = vmul.f32 %v5412, 1.442695
        %v5468 = vpow.pop %v5467
        %v5469 = vmul.f32 %v5413, 1.442695
        %v5470 = vpow.pop %v5469
        %v5471 = vmul.f32 %v5414, 1.442695
        %v5472 = vpow.pop %v5471
        %v5473 = vmul.f32 %v5415, 1.442695
        %v5474 = vpow.pop %v5473
        %v5475 = vmul.f32 %v5416, 1.442695
        %v5476 = vpow.pop %v5475
        %v5477 = vmul.f32 %v5417, 1.442695
        %v5478 = vpow.pop %v5477
        %v5479 = vmul.f32 %v5418, 1.442695
        %v5480 = vpow.pop %v5479
        %v5481 = vmul.f32 %v5419, 1.442695
        %v5482 = vpow.pop %v5481
        %v5483 = vmul.f32 %v5420, 1.442695
        %v5484 = vpow.pop %v5483
        %v5485 = vadd.f32 %v5422, 1.0
        %v5486 = vadd.f32 %v5424, 1.0
        %v5487 = vadd.f32 %v5426, 1.0
        %v5488 = vadd.f32 %v5428, 1.0
        %v5489 = vadd.f32 %v5430, 1.0
        %v5490 = vadd.f32 %v5432, 1.0
        %v5491 = vadd.f32 %v5434, 1.0
        %v5492 = vadd.f32 %v5436, 1.0
        %v5493 = vadd.f32 %v5438, 1.0
        %v5494 = vadd.f32 %v5440, 1.0
        %v5495 = vadd.f32 %v5442, 1.0
        %v5496 = vadd.f32 %v5444, 1.0
        %v5497 = vadd.f32 %v5446, 1.0
        %v5498 = vadd.f32 %v5448, 1.0
        %v5499 = vadd.f32 %v5450, 1.0
        %v5500 = vadd.f32 %v5452, 1.0
        %v5501 = vadd.f32 %v5454, 1.0
        %v5502 = vadd.f32 %v5456, 1.0
        %v5503 = vadd.f32 %v5458, 1.0
        %v5504 = vadd.f32 %v5460, 1.0
        %v5505 = vadd.f32 %v5462, 1.0
        %v5506 = vadd.f32 %v5464, 1.0
        %v5507 = vadd.f32 %v5466, 1.0
        %v5508 = vadd.f32 %v5468, 1.0
        %v5509 = vadd.f32 %v5470, 1.0
        %v5510 = vadd.f32 %v5472, 1.0
        %v5511 = vadd.f32 %v5474, 1.0
        %v5512 = vadd.f32 %v5476, 1.0
        %v5513 = vadd.f32 %v5478, 1.0
        %v5514 = vadd.f32 %v5480, 1.0
        %v5515 = vadd.f32 %v5482, 1.0
        %v5516 = vadd.f32 %v5484, 1.0
        %v5517 = vrcp.pop %v5485
        %v5518 = vmul.f32 1.0, %v5517
        %v5519 = vrcp.pop %v5486
        %v5520 = vmul.f32 1.0, %v5519
        %v5521 = vrcp.pop %v5487
        %v5522 = vmul.f32 1.0, %v5521
        %v5523 = vrcp.pop %v5488
        %v5524 = vmul.f32 1.0, %v5523
        %v5525 = vrcp.pop %v5489
        %v5526 = vmul.f32 1.0, %v5525
        %v5527 = vrcp.pop %v5490
        %v5528 = vmul.f32 1.0, %v5527
        %v5529 = vrcp.pop %v5491
        %v5530 = vmul.f32 1.0, %v5529
        %v5531 = vrcp.pop %v5492
        %v5532 = vmul.f32 1.0, %v5531
        %v5533 = vrcp.pop %v5493
        %v5534 = vmul.f32 1.0, %v5533
        %v5535 = vrcp.pop %v5494
        %v5536 = vmul.f32 1.0, %v5535
        %v5537 = vrcp.pop %v5495
        %v5538 = vmul.f32 1.0, %v5537
        %v5539 = vrcp.pop %v5496
        %v5540 = vmul.f32 1.0, %v5539
        %v5541 = vrcp.pop %v5497
        %v5542 = vmul.f32 1.0, %v5541
        %v5543 = vrcp.pop %v5498
        %v5544 = vmul.f32 1.0, %v5543
        %v5545 = vrcp.pop %v5499
        %v5546 = vmul.f32 1.0, %v5545
        %v5547 = vrcp.pop %v5500
        %v5548 = vmul.f32 1.0, %v5547
        %v5549 = vrcp.pop %v5501
        %v5550 = vmul.f32 1.0, %v5549
        %v5551 = vrcp.pop %v5502
        %v5552 = vmul.f32 1.0, %v5551
        %v5553 = vrcp.pop %v5503
        %v5554 = vmul.f32 1.0, %v5553
        %v5555 = vrcp.pop %v5504
        %v5556 = vmul.f32 1.0, %v5555
        %v5557 = vrcp.pop %v5505
        %v5558 = vmul.f32 1.0, %v5557
        %v5559 = vrcp.pop %v5506
        %v5560 = vmul.f32 1.0, %v5559
        %v5561 = vrcp.pop %v5507
        %v5562 = vmul.f32 1.0, %v5561
        %v5563 = vrcp.pop %v5508
        %v5564 = vmul.f32 1.0, %v5563
        %v5565 = vrcp.pop %v5509
        %v5566 = vmul.f32 1.0, %v5565
        %v5567 = vrcp.pop %v5510
        %v5568 = vmul.f32 1.0, %v5567
        %v5569 = vrcp.pop %v5511
        %v5570 = vmul.f32 1.0, %v5569
        %v5571 = vrcp.pop %v5512
        %v5572 = vmul.f32 1.0, %v5571
        %v5573 = vrcp.pop %v5513
        %v5574 = vmul.f32 1.0, %v5573
        %v5575 = vrcp.pop %v5514
        %v5576 = vmul.f32 1.0, %v5575
        %v5577 = vrcp.pop %v5515
        %v5578 = vmul.f32 1.0, %v5577
        %v5579 = vrcp.pop %v5516
        %v5580 = vmul.f32 1.0, %v5579
        %vm5581 = vcmask 7168
        %5582 = vst.msk [vmem:[%s331] sm:$0xff] %vm5581, %v5518
        %5583 = vst.msk [vmem:[%s331 + $0x8] sm:$0xff] %vm5581, %v5520
        %5584 = vst.msk [vmem:[%s331 + $0x10] sm:$0xff] %vm5581, %v5522
        %5585 = vst.msk [vmem:[%s331 + $0x18] sm:$0xff] %vm5581, %v5524
        %5586 = vst.msk [vmem:[%s331 + $0x20] sm:$0xff] %vm5581, %v5526
        %5587 = vst.msk [vmem:[%s331 + $0x28] sm:$0xff] %vm5581, %v5528
        %5588 = vst.msk [vmem:[%s331 + $0x30] sm:$0xff] %vm5581, %v5530
        %5589 = vst.msk [vmem:[%s331 + $0x38] sm:$0xff] %vm5581, %v5532
        %5590 = vst.msk [vmem:[%s331 + $0x40] sm:$0xff] %vm5581, %v5534
        %5591 = vst.msk [vmem:[%s331 + $0x48] sm:$0xff] %vm5581, %v5536
        %5592 = vst.msk [vmem:[%s331 + $0x50] sm:$0xff] %vm5581, %v5538
        %5593 = vst.msk [vmem:[%s331 + $0x58] sm:$0xff] %vm5581, %v5540
        %5594 = vst.msk [vmem:[%s331 + $0x60] sm:$0xff] %vm5581, %v5542
        %5595 = vst.msk [vmem:[%s331 + $0x68] sm:$0xff] %vm5581, %v5544
        %5596 = vst.msk [vmem:[%s331 + $0x70] sm:$0xff] %vm5581, %v5546
        %5597 = vst.msk [vmem:[%s331 + $0x78] sm:$0xff] %vm5581, %v5548
        %5598 = vst.msk [vmem:[%s331 + $0x80] sm:$0xff] %vm5581, %v5550
        %5599 = vst.msk [vmem:[%s331 + $0x88] sm:$0xff] %vm5581, %v5552
        %5600 = vst.msk [vmem:[%s331 + $0x90] sm:$0xff] %vm5581, %v5554
        %5601 = vst.msk [vmem:[%s331 + $0x98] sm:$0xff] %vm5581, %v5556
        %5602 = vst.msk [vmem:[%s331 + $0xa0] sm:$0xff] %vm5581, %v5558
        %5603 = vst.msk [vmem:[%s331 + $0xa8] sm:$0xff] %vm5581, %v5560
        %5604 = vst.msk [vmem:[%s331 + $0xb0] sm:$0xff] %vm5581, %v5562
        %5605 = vst.msk [vmem:[%s331 + $0xb8] sm:$0xff] %vm5581, %v5564
        %5606 = vst.msk [vmem:[%s331 + $0xc0] sm:$0xff] %vm5581, %v5566
        %5607 = vst.msk [vmem:[%s331 + $0xc8] sm:$0xff] %vm5581, %v5568
        %5608 = vst.msk [vmem:[%s331 + $0xd0] sm:$0xff] %vm5581, %v5570
        %5609 = vst.msk [vmem:[%s331 + $0xd8] sm:$0xff] %vm5581, %v5572
        %5610 = vst.msk [vmem:[%s331 + $0xe0] sm:$0xff] %vm5581, %v5574
        %5611 = vst.msk [vmem:[%s331 + $0xe8] sm:$0xff] %vm5581, %v5576
        %5612 = vst.msk [vmem:[%s331 + $0xf0] sm:$0xff] %vm5581, %v5578
        %5613 = vst.msk [vmem:[%s331 + $0xf8] sm:$0xff] %vm5581, %v5580
        %s5614 = smul.u32 32, %s24
        %p5615 = scmp.lt.s32.totalorder %s5614, 63
        %s5616 = scalar_select %p5615, %s5614, 63
        %s5617 = smul.addr %s5616, 8
        %s5618 = scalar_lea.vmem %s7, %s5617
        // Predicated region
        $region61: #{tpu_custom_call.1} parent=47 // pred_check
          %p5619 = pneg %p194
        $region62: #{tpu_custom_call.1} parent=47 // pred_check_branch
          %5621 = sbr.rel (%p5619) target = $region64
        $region63: #{tpu_custom_call.1} parent=47 // pred_region
          %s5622 = smul.u32 32, %s24
        $region64: #{tpu_custom_call.1} parent=47 // pred_fallthru
          _
      $region48: #{tpu_custom_call.1} parent=5 // pred_fallthru
        _
      %p5623 = scmp.le.s32.totalorder 2, %s19
      // Predicated region
      $region65: #{tpu_custom_call.1} parent=5 // pred_check
        %p5624 = pneg %p5623
      $region66: #{tpu_custom_call.1} parent=5 // pred_check_branch
        %5626 = sbr.rel (%p5624) target = $region68
      $region67: #{tpu_custom_call.1} parent=5 // pred_region
        %s5627 = ssub.s32 %s19, 2
        // Predicated region
        $region69: #{tpu_custom_call.1} parent=67 // pred_check
          %p5628 = pneg %p200
        $region70: #{tpu_custom_call.1} parent=67 // pred_check_branch
          %5630 = sbr.rel (%p5628) target = $region72
        $region71: #{tpu_custom_call.1} parent=67 // pred_region
          %s5631 = smul.u32 32, %s25
          %p5632 = scmp.lt.s32.totalorder %s5631, 63
          %s5633 = scalar_select %p5632, %s5631, 63
          %s5634 = smul.addr %s5633, 8
          %s5635 = scalar_lea.vmem %s7, %s5634
        $region72: #{tpu_custom_call.1} parent=67 // pred_fallthru
          _
      $region68: #{tpu_custom_call.1} parent=5 // pred_fallthru
        _
    $region6: #{tpu_custom_call.1} parent=1 // loop_footer
      %s23 = sadd.s32 1, %s19
    $region7: #{tpu_custom_call.1} parent=1 // loop_footer_branch
      %18 = sbr.rel target = $region3
    $region8: #{tpu_custom_call.1} parent=1 // loop_exit
      _
    %5636 = vsyncpa [#allocation4], 1
    %s5637 = scalar_lea.sflag [#allocation4], 1
    %5638 = vsyncpa %s5637, 1
    %5639 = vsyncpa [#allocation6], 1

</llo_original>
